<compile_context>
chip_gen: v6e
topology: v6e:2x2x1
jax: 0.10.0
libtpu: 0.0.40
codegen_flags: <defaults>
</compile_context>

<pallas_src>
import functools

import jax
import jax.numpy as jnp
from jax.experimental import pallas as pl
from jax.experimental.pallas import tpu as pltpu

_LN_EPS = 1e-5                       # PyTorch nn.LayerNorm default
_VMEM_LIMIT = 48 * 1024 * 1024       # > default scoped VMEM, < v7x physical


# ----------------------------- in-kernel helpers -----------------------------

def _layernorm(x, w, b):
    x = x.astype(jnp.float32)
    mu = jnp.mean(x, axis=-1, keepdims=True)
    var = jnp.mean(jnp.square(x - mu), axis=-1, keepdims=True)
    return (x - mu) * jax.lax.rsqrt(var + _LN_EPS) * w + b


def _gelu_tanh(x):
    # TODO(synk): nn.GELU() default is the exact erf-GELU; tanh approximation
    # is used (erf lowering in Mosaic is not guaranteed).  With the module's
    # zero-initialized adapter D_fc2 weights this does not change the output.
    c = 0.7978845608028654  # sqrt(2/pi)
    return 0.5 * x * (1.0 + jnp.tanh(c * (x + 0.044715 * x * x * x)))


def _quick_gelu(x):
    return x * (1.0 / (1.0 + jnp.exp(-1.702 * x)))


# --------------------------------- the kernel --------------------------------

def _vit_kernel(patch_ref, convw_ref, cls_ref, pos_ref, lnprew, lnpreb,
                ln1w, ln1b, wqkv, bqkv, wo, bo, ln2w, ln2b,
                wfc, bfc, wpj, bpj,
                saw1, sab1, saw2, sab2, maw1, mab1, maw2, mab2,
                lnpostw, lnpostb, fcw, fcb,
                o_ref, x_scr, *, n_head, adapter_scale, n_valid):
    """grid=(B, L); the residual stream lives in the x_scr VMEM scratch."""
    S, D = x_scr.shape
    l = pl.program_id(1)
    dh = D // n_head
    scale = 1.0 / float(dh) ** 0.5

    # ---- layer 0: patch-embed matmul + cls concat + pos emb + ln_pre ----
    @pl.when(l == 0)
    def _():
        # (N, C*p*p) @ (C*p*p, D) == Conv2d(kernel=stride=p, bias=False)
        tok = jnp.dot(patch_ref[0], convw_ref[...],
                      preferred_element_type=jnp.float32)          # (N, D)
        pieces = [cls_ref[...].astype(jnp.float32), tok]
        n_pad = S - n_valid
        if n_pad > 0:
            pieces.append(jnp.zeros((n_pad, D), jnp.float32))
        x0 = jnp.concatenate(pieces, axis=0) + pos_ref[...]
        x_scr[...] = _layernorm(x0, lnprew[...], lnpreb[...])

    x = x_scr[...]                                 # (S, D) residual stream f32

    # ---- multi-head self-attention on ln_1(x), heads batched ----
    xn = _layernorm(x, ln1w[0], ln1b[0]).astype(jnp.bfloat16)
    qkv = jnp.dot(xn, wqkv[0], preferred_element_type=jnp.float32) + bqkv[0]
    q = qkv[:, 0:D].reshape(S, n_head, dh).astype(jnp.bfloat16)
    k = qkv[:, D:2 * D].reshape(S, n_head, dh).astype(jnp.bfloat16)
    v = qkv[:, 2 * D:3 * D].reshape(S, n_head, dh).astype(jnp.bfloat16)

    s = jnp.einsum('qhd,khd->hqk', q, k,
                   preferred_element_type=jnp.float32) * scale     # (H, S, S)
    if S > n_valid:  # mask padded key positions
        kid = jax.lax.broadcasted_iota(jnp.int32, (n_head, S, S), 2)
        s = jnp.where(kid < n_valid, s, -1e30)
    s = s - jnp.max(s, axis=-1, keepdims=True)
    p = jnp.exp(s)
    p = p * pl.reciprocal(jnp.sum(p, axis=-1, keepdims=True), approx=True)
    attn = jnp.einsum('hqk,khd->qhd', p.astype(jnp.bfloat16), v,
                      preferred_element_type=jnp.float32).reshape(S, D)
    attn = jnp.dot(attn.astype(jnp.bfloat16), wo[0],
                   preferred_element_type=jnp.float32) + bo[0]

    # ---- S_Adapter (skip connection) on the attention output ----
    sa = _gelu_tanh(jnp.dot(attn.astype(jnp.bfloat16), saw1[0],
                            preferred_element_type=jnp.float32) + sab1[0])
    sa = jnp.dot(sa.astype(jnp.bfloat16), saw2[0],
                 preferred_element_type=jnp.float32) + sab2[0]
    x = x + attn + sa                      # x + S_Adapter(attention(ln_1(x)))

    # ---- MLP branch + scaled MLP_Adapter (no skip), both on ln_2(x) ----
    xn2 = _layernorm(x, ln2w[0], ln2b[0])
    xn2_bf = xn2.astype(jnp.bfloat16)
    # TODO(synk): for production widths (D>=768) tile wfc/wpj over the 4*D
    # hidden dim (pltpu.emit_pipeline / extra grid axis) to fit v7x 64 MiB VMEM.
    h1 = _quick_gelu(jnp.dot(xn2_bf, wfc[0],
                             preferred_element_type=jnp.float32) + bfc[0])
    mlp = jnp.dot(h1.astype(jnp.bfloat16), wpj[0],
                  preferred_element_type=jnp.float32) + bpj[0]
    ma = _gelu_tanh(jnp.dot(xn2_bf, maw1[0],
                            preferred_element_type=jnp.float32) + mab1[0])
    ma = jnp.dot(ma.astype(jnp.bfloat16), maw2[0],
                 preferred_element_type=jnp.float32) + mab2[0]

    # DropPath / nn.Dropout are inference-mode identities.
    x = x + mlp + adapter_scale * ma
    x_scr[...] = x

    # ---- last layer: ln_post on CLS token only (LN is per-token) + fc_cls ----
    @pl.when(l == pl.num_programs(1) - 1)
    def _():
        cls_tok = x[0:1, :]                                        # (1, D)
        xn_post = _layernorm(cls_tok, lnpostw[...], lnpostb[...])
        o_ref[0] = jnp.dot(xn_post.astype(jnp.bfloat16), fcw[...],
                           preferred_element_type=jnp.float32) + fcb[...]


# ---------------------------------- wrapper -----------------------------------

_BLOCK_PARAM_NAMES = ("ln1w", "ln1b", "wqkv", "bqkv", "wo", "bo", "ln2w", "ln2b",
                      "wfc", "bfc", "wpj", "bpj",
                      "saw1", "sab1", "saw2", "sab2",
                      "maw1", "mab1", "maw2", "mab2")


def vit_forward_call(patches, params, *, n_head, adapter_scale, n_valid, s_pad):
    B, N, Cpp = patches.shape
    D = params["conv_w_t"].shape[1]
    L = params["blocks"]["wqkv"].shape[0]
    num_classes = params["fc_cls_w_t"].shape[1]
    blocks = [params["blocks"][n] for n in _BLOCK_PARAM_NAMES]

    def const2d(b, l):
        return (0, 0)

    in_specs = [
        pl.BlockSpec((1, N, Cpp), lambda b, l: (b, 0, 0)),   # patches (per b)
        pl.BlockSpec((Cpp, D), const2d),                     # conv weight^T
        pl.BlockSpec((1, D), const2d),                       # class embedding
        pl.BlockSpec((s_pad, D), const2d),                   # positional (pad)
        pl.BlockSpec((1, D), const2d),                       # ln_pre w
        pl.BlockSpec((1, D), const2d),                       # ln_pre b
    ]
    # stacked per-layer params, indexed by the layer grid axis
    in_specs += [pl.BlockSpec((1,) + p.shape[1:], lambda b, l: (l, 0, 0))
                 for p in blocks]
    in_specs += [
        pl.BlockSpec((1, D), const2d),                       # ln_post w
        pl.BlockSpec((1, D), const2d),                       # ln_post b
        pl.BlockSpec((D, num_classes), const2d),             # fc_cls weight^T
        pl.BlockSpec((1, num_classes), const2d),             # fc_cls bias
    ]

    pos_pad = jnp.zeros((s_pad, D), jnp.float32).at[:n_valid].set(
        params["positional_embedding"])

    out = pl.pallas_call(
        functools.partial(_vit_kernel, n_head=n_head,
                          adapter_scale=adapter_scale, n_valid=n_valid),
        grid=(B, L),
        in_specs=in_specs,
        out_specs=pl.BlockSpec((1, 1, num_classes), lambda b, l: (b, 0, 0)),
        out_shape=jax.ShapeDtypeStruct((B, 1, num_classes), jnp.float32),
        scratch_shapes=[pltpu.VMEM((s_pad, D), jnp.float32)],
        compiler_params=pltpu.CompilerParams(
            dimension_semantics=("parallel", "arbitrary"),
            vmem_limit_bytes=_VMEM_LIMIT),
    )(patches, params["conv_w_t"], params["class_embedding"], pos_pad,
      params["ln_pre_w"], params["ln_pre_b"], *blocks,
      params["ln_post_w"], params["ln_post_b"],
      params["fc_cls_w_t"], params["fc_cls_b"])
    return out.reshape(B, num_classes)


# --------------------------- params & full forward ----------------------------

def init_params(key, *, in_chans, width, patch_size, layers, heads,
                num_classes, input_resolution):
    D = width
    Dh = int(D * 0.25)                      # adapter hidden width
    n_patches = (input_resolution // patch_size) ** 2
    emb_scale = D ** (-0.5)
    ks = jax.random.split(key, 4 + layers)

    params = {
        # Conv2d weight (D, C, p, p) flattened & transposed for the matmul
        # kernel; bf16 with f32 MXU accumulation.
        "conv_w_t": (0.02 * jax.random.normal(
            ks[0], (D, in_chans, patch_size, patch_size), jnp.float32)
        ).reshape(D, -1).T.astype(jnp.bfloat16),
        "class_embedding": emb_scale * jax.random.normal(ks[1], (1, D),
                                                         jnp.float32),
        "positional_embedding": emb_scale * jax.random.normal(
            ks[2], (n_patches + 1, D), jnp.float32),
        "ln_pre_w": jnp.ones((1, D), jnp.float32),
        "ln_pre_b": jnp.zeros((1, D), jnp.float32),
        "ln_post_w": jnp.ones((1, D), jnp.float32),
        "ln_post_b": jnp.zeros((1, D), jnp.float32),
        "fc_cls_w_t": (0.02 * jax.random.normal(
            ks[3], (D, num_classes), jnp.float32)).astype(jnp.bfloat16),
        "fc_cls_b": jnp.zeros((1, num_classes), jnp.float32),
    }

    per_layer = []
    for i in range(layers):
        kk = jax.random.split(ks[4 + i], 6)
        per_layer.append(dict(
            ln1w=jnp.ones((1, D), jnp.float32),
            ln1b=jnp.zeros((1, D), jnp.float32),
            wqkv=(0.02 * jax.random.normal(kk[0], (D, 3 * D),
                                           jnp.float32)).astype(jnp.bfloat16),
            bqkv=jnp.zeros((1, 3 * D), jnp.float32),
            wo=(0.02 * jax.random.normal(kk[1], (D, D),
                                         jnp.float32)).astype(jnp.bfloat16),
            bo=jnp.zeros((1, D), jnp.float32),
            ln2w=jnp.ones((1, D), jnp.float32),
            ln2b=jnp.zeros((1, D), jnp.float32),
            wfc=(0.02 * jax.random.normal(kk[2], (D, 4 * D),
                                          jnp.float32)).astype(jnp.bfloat16),
            bfc=jnp.zeros((1, 4 * D), jnp.float32),
            wpj=(0.02 * jax.random.normal(kk[3], (4 * D, D),
                                          jnp.float32)).astype(jnp.bfloat16),
            bpj=jnp.zeros((1, D), jnp.float32),
            # S_Adapter: D_fc1 random, D_fc2 zero-init (per init_weights)
            saw1=(0.02 * jax.random.normal(kk[4], (D, Dh),
                                           jnp.float32)).astype(jnp.bfloat16),
            sab1=jnp.zeros((1, Dh), jnp.float32),
            saw2=jnp.zeros((Dh, D), jnp.bfloat16),
            sab2=jnp.zeros((1, D), jnp.float32),
            # MLP_Adapter: D_fc1 random, D_fc2 zero-init (per init_weights)
            maw1=(0.02 * jax.random.normal(kk[5], (D, Dh),
                                           jnp.float32)).astype(jnp.bfloat16),
            mab1=jnp.zeros((1, Dh), jnp.float32),
            maw2=jnp.zeros((Dh, D), jnp.bfloat16),
            mab2=jnp.zeros((1, D), jnp.float32),
        ))
    # Stack per-layer params into (L, ...) arrays for the layer-grid pipeline.
    params["blocks"] = {n: jnp.stack([bl[n] for bl in per_layer], axis=0)
                        for n in _BLOCK_PARAM_NAMES}
    return params


def vit_clip_2d_forward(x, params, *, patch_size, heads, adapter_scale=0.5):
    B, C, H, W = x.shape
    p = patch_size
    Hp, Wp = H // p, W // p
    N = Hp * Wp
    S = N + 1                              # logical sequence (cls + patches)
    S_pad = ((S + 7) // 8) * 8             # pad to an 8-sublane boundary

    # Patch extraction (XLA glue) — equivalent to Conv2d(kernel=stride=p,
    # bias=False) followed by flatten+permute in the module.
    patches = (x.astype(jnp.float32)
                 .reshape(B, C, Hp, p, Wp, p)
                 .transpose(0, 2, 4, 1, 3, 5)
                 .reshape(B, N, C * p * p)).astype(jnp.bfloat16)

    # Everything else runs in a single fused Pallas kernel over (batch, layer).
    return vit_forward_call(patches, params, n_head=heads,
                            adapter_scale=adapter_scale, n_valid=S,
                            s_pad=S_pad)


# ----------------------------------- main -------------------------------------

if __name__ == "__main__":
    # small but consistent config
    B, in_chans, input_resolution = 2, 4, 16
    patch_size, width, layers, heads = 8, 32, 2, 4
    num_classes = 10

    key = jax.random.PRNGKey(0)
    k_x, k_p = jax.random.split(key)
    x = jax.random.normal(k_x, (B, in_chans, input_resolution, input_resolution),
                          jnp.float32)

    params = init_params(k_p, in_chans=in_chans, width=width,
                         patch_size=patch_size, layers=layers, heads=heads,
                         num_classes=num_classes,
                         input_resolution=input_resolution)

    out = vit_clip_2d_forward(x, params, patch_size=patch_size, heads=heads,
                              adapter_scale=0.5)
    out = jax.block_until_ready(out)
    assert out.shape == (B, num_classes)
    assert bool(jnp.all(jnp.isfinite(out)))
    print("KERNEL_OK")
</pallas_src>

<mosaic_0001>
module attributes {stable_mosaic.version = 11 : i64} {
  func.func @_vit_kernel(%arg0: i32, %arg1: i32, %arg2: memref<1x4x256xbf16, #tpu.memory_space<vmem>>, %arg3: memref<256x32xbf16, #tpu.memory_space<vmem>>, %arg4: memref<1x32xf32, #tpu.memory_space<vmem>>, %arg5: memref<8x32xf32, #tpu.memory_space<vmem>>, %arg6: memref<1x32xf32, #tpu.memory_space<vmem>>, %arg7: memref<1x32xf32, #tpu.memory_space<vmem>>, %arg8: memref<1x1x32xf32, #tpu.memory_space<vmem>>, %arg9: memref<1x1x32xf32, #tpu.memory_space<vmem>>, %arg10: memref<1x32x96xbf16, #tpu.memory_space<vmem>>, %arg11: memref<1x1x96xf32, #tpu.memory_space<vmem>>, %arg12: memref<1x32x32xbf16, #tpu.memory_space<vmem>>, %arg13: memref<1x1x32xf32, #tpu.memory_space<vmem>>, %arg14: memref<1x1x32xf32, #tpu.memory_space<vmem>>, %arg15: memref<1x1x32xf32, #tpu.memory_space<vmem>>, %arg16: memref<1x32x128xbf16, #tpu.memory_space<vmem>>, %arg17: memref<1x1x128xf32, #tpu.memory_space<vmem>>, %arg18: memref<1x128x32xbf16, #tpu.memory_space<vmem>>, %arg19: memref<1x1x32xf32, #tpu.memory_space<vmem>>, %arg20: memref<1x32x8xbf16, #tpu.memory_space<vmem>>, %arg21: memref<1x1x8xf32, #tpu.memory_space<vmem>>, %arg22: memref<1x8x32xbf16, #tpu.memory_space<vmem>>, %arg23: memref<1x1x32xf32, #tpu.memory_space<vmem>>, %arg24: memref<1x32x8xbf16, #tpu.memory_space<vmem>>, %arg25: memref<1x1x8xf32, #tpu.memory_space<vmem>>, %arg26: memref<1x8x32xbf16, #tpu.memory_space<vmem>>, %arg27: memref<1x1x32xf32, #tpu.memory_space<vmem>>, %arg28: memref<1x32xf32, #tpu.memory_space<vmem>>, %arg29: memref<1x32xf32, #tpu.memory_space<vmem>>, %arg30: memref<32x10xbf16, #tpu.memory_space<vmem>>, %arg31: memref<1x10xf32, #tpu.memory_space<vmem>>, %arg32: memref<1x1x10xf32, #tpu.memory_space<vmem>>, %arg33: memref<8x32xf32, #tpu.memory_space<vmem>>) attributes {dimension_semantics = [#tpu.dimension_semantics<parallel>, #tpu.dimension_semantics<arbitrary>], iteration_bounds = array<i64: 2, 2>, scalar_prefetch = 0 : i64, scratch_operands = 1 : i64, tpu.core_type = #tpu.core_type<tc>, window_params = [{transform_indices = @transform_0, window_bounds = array<i64: 1, 4, 256>}, {pipeline_mode = #tpu.pipeline_mode<synchronous>, transform_indices = @transform_1, window_bounds = array<i64: 256, 32>}, {pipeline_mode = #tpu.pipeline_mode<synchronous>, transform_indices = @transform_2, window_bounds = array<i64: 1, 32>}, {pipeline_mode = #tpu.pipeline_mode<synchronous>, transform_indices = @transform_3, window_bounds = array<i64: 8, 32>}, {pipeline_mode = #tpu.pipeline_mode<synchronous>, transform_indices = @transform_4, window_bounds = array<i64: 1, 32>}, {pipeline_mode = #tpu.pipeline_mode<synchronous>, transform_indices = @transform_5, window_bounds = array<i64: 1, 32>}, {transform_indices = @transform_6, window_bounds = array<i64: 1, 1, 32>}, {transform_indices = @transform_7, window_bounds = array<i64: 1, 1, 32>}, {transform_indices = @transform_8, window_bounds = array<i64: 1, 32, 96>}, {transform_indices = @transform_9, window_bounds = array<i64: 1, 1, 96>}, {transform_indices = @transform_10, window_bounds = array<i64: 1, 32, 32>}, {transform_indices = @transform_11, window_bounds = array<i64: 1, 1, 32>}, {transform_indices = @transform_12, window_bounds = array<i64: 1, 1, 32>}, {transform_indices = @transform_13, window_bounds = array<i64: 1, 1, 32>}, {transform_indices = @transform_14, window_bounds = array<i64: 1, 32, 128>}, {transform_indices = @transform_15, window_bounds = array<i64: 1, 1, 128>}, {transform_indices = @transform_16, window_bounds = array<i64: 1, 128, 32>}, {transform_indices = @transform_17, window_bounds = array<i64: 1, 1, 32>}, {transform_indices = @transform_18, window_bounds = array<i64: 1, 32, 8>}, {transform_indices = @transform_19, window_bounds = array<i64: 1, 1, 8>}, {transform_indices = @transform_20, window_bounds = array<i64: 1, 8, 32>}, {transform_indices = @transform_21, window_bounds = array<i64: 1, 1, 32>}, {transform_indices = @transform_22, window_bounds = array<i64: 1, 32, 8>}, {transform_indices = @transform_23, window_bounds = array<i64: 1, 1, 8>}, {transform_indices = @transform_24, window_bounds = array<i64: 1, 8, 32>}, {transform_indices = @transform_25, window_bounds = array<i64: 1, 1, 32>}, {pipeline_mode = #tpu.pipeline_mode<synchronous>, transform_indices = @transform_26, window_bounds = array<i64: 1, 32>}, {pipeline_mode = #tpu.pipeline_mode<synchronous>, transform_indices = @transform_27, window_bounds = array<i64: 1, 32>}, {pipeline_mode = #tpu.pipeline_mode<synchronous>, transform_indices = @transform_28, window_bounds = array<i64: 32, 10>}, {pipeline_mode = #tpu.pipeline_mode<synchronous>, transform_indices = @transform_29, window_bounds = array<i64: 1, 10>}, {transform_indices = @transform_30, window_bounds = array<i64: 1, 1, 10>}]} {
    %c0_i32 = arith.constant 0 : i32
    %0 = arith.cmpi eq, %arg1, %c0_i32 : i32
    %1 = arith.extui %0 : i1 to i32
    %c0_i32_0 = arith.constant 0 : i32
    %2 = arith.cmpi ne, %1, %c0_i32_0 : i32
    scf.if %2 {
      %c0_100 = arith.constant 0 : index
      %c0_101 = arith.constant 0 : index
      %c0_102 = arith.constant 0 : index
      %194 = vector.load %arg2[%c0_100, %c0_101, %c0_102] : memref<1x4x256xbf16, #tpu.memory_space<vmem>>, vector<1x4x256xbf16>
      %195 = vector.shape_cast %194 : vector<1x4x256xbf16> to vector<4x256xbf16>
      %c0_103 = arith.constant 0 : index
      %c0_104 = arith.constant 0 : index
      %196 = vector.load %arg3[%c0_103, %c0_104] : memref<256x32xbf16, #tpu.memory_space<vmem>>, vector<256x32xbf16>
      %cst_105 = arith.constant dense<0.000000e+00> : vector<4x32xf32>
      %197 = tpu.matmul %195, %196, %cst_105 {dimension_numbers = #tpu.dot_dimension_numbers<[1], [0], [0], [1], [0, 0, 1, 1], [], []>} : vector<4x256xbf16>, vector<256x32xbf16>, vector<4x32xf32> -> vector<4x32xf32>
      %c0_106 = arith.constant 0 : index
      %c0_107 = arith.constant 0 : index
      %198 = vector.load %arg4[%c0_106, %c0_107] : memref<1x32xf32, #tpu.memory_space<vmem>>, vector<1x32xf32>
      %cst_108 = arith.constant 0.000000e+00 : f32
      %199 = vector.broadcast %cst_108 : f32 to vector<3x32xf32>
      %200 = tpu.concatenate %198, %197, %199 in 0 : vector<1x32xf32>, vector<4x32xf32>, vector<3x32xf32> -> vector<8x32xf32>
      %c0_109 = arith.constant 0 : index
      %c0_110 = arith.constant 0 : index
      %201 = vector.load %arg5[%c0_109, %c0_110] : memref<8x32xf32, #tpu.memory_space<vmem>>, vector<8x32xf32>
      %202 = arith.addf %200, %201 : vector<8x32xf32>
      %c0_111 = arith.constant 0 : index
      %c0_112 = arith.constant 0 : index
      %203 = vector.load %arg6[%c0_111, %c0_112] : memref<1x32xf32, #tpu.memory_space<vmem>>, vector<1x32xf32>
      %c0_113 = arith.constant 0 : index
      %c0_114 = arith.constant 0 : index
      %204 = vector.load %arg7[%c0_113, %c0_114] : memref<1x32xf32, #tpu.memory_space<vmem>>, vector<1x32xf32>
      %cst_115 = arith.constant dense<0.000000e+00> : vector<8xf32>
      %205 = vector.multi_reduction <add>, %202, %cst_115 [1] : vector<8x32xf32> to vector<8xf32>
      %206 = vector.shape_cast %205 : vector<8xf32> to vector<8x1xf32>
      %cst_116 = arith.constant 3.200000e+01 : f32
      %207 = vector.broadcast %cst_116 : f32 to vector<8x1xf32>
      %208 = arith.divf %206, %207 : vector<8x1xf32>
      %209 = vector.broadcast %208 : vector<8x1xf32> to vector<8x32xf32>
      %210 = arith.subf %202, %209 : vector<8x32xf32>
      %211 = arith.mulf %210, %210 : vector<8x32xf32>
      %cst_117 = arith.constant dense<0.000000e+00> : vector<8xf32>
      %212 = vector.multi_reduction <add>, %211, %cst_117 [1] : vector<8x32xf32> to vector<8xf32>
      %213 = vector.shape_cast %212 : vector<8xf32> to vector<8x1xf32>
      %cst_118 = arith.constant 3.200000e+01 : f32
      %214 = vector.broadcast %cst_118 : f32 to vector<8x1xf32>
      %215 = arith.divf %213, %214 : vector<8x1xf32>
      %216 = vector.broadcast %208 : vector<8x1xf32> to vector<8x32xf32>
      %217 = arith.subf %202, %216 : vector<8x32xf32>
      %cst_119 = arith.constant 9.99999974E-6 : f32
      %218 = vector.broadcast %cst_119 : f32 to vector<8x1xf32>
      %219 = arith.addf %215, %218 : vector<8x1xf32>
      %220 = math.rsqrt %219 : vector<8x1xf32>
      %221 = vector.broadcast %220 : vector<8x1xf32> to vector<8x32xf32>
      %222 = arith.mulf %217, %221 : vector<8x32xf32>
      %223 = vector.broadcast %203 : vector<1x32xf32> to vector<8x32xf32>
      %224 = arith.mulf %222, %223 : vector<8x32xf32>
      %225 = vector.broadcast %204 : vector<1x32xf32> to vector<8x32xf32>
      %226 = arith.addf %224, %225 : vector<8x32xf32>
      %c0_120 = arith.constant 0 : index
      %c0_121 = arith.constant 0 : index
      %227 = vector.load %arg33[%c0_120, %c0_121] : memref<8x32xf32, #tpu.memory_space<vmem>>, vector<8x32xf32>
      tpu.vector_store %arg33[%c0_120, %c0_121], %226 {strides = array<i32>} : memref<8x32xf32, #tpu.memory_space<vmem>>, vector<8x32xf32>,
    } else {
    }
    %c0 = arith.constant 0 : index
    %c0_1 = arith.constant 0 : index
    %3 = vector.load %arg33[%c0, %c0_1] : memref<8x32xf32, #tpu.memory_space<vmem>>, vector<8x32xf32>
    %c0_2 = arith.constant 0 : index
    %c0_3 = arith.constant 0 : index
    %c0_4 = arith.constant 0 : index
    %4 = vector.load %arg8[%c0_2, %c0_3, %c0_4] : memref<1x1x32xf32, #tpu.memory_space<vmem>>, vector<1x1x32xf32>
    %5 = vector.shape_cast %4 : vector<1x1x32xf32> to vector<1x32xf32>
    %c0_5 = arith.constant 0 : index
    %c0_6 = arith.constant 0 : index
    %c0_7 = arith.constant 0 : index
    %6 = vector.load %arg9[%c0_5, %c0_6, %c0_7] : memref<1x1x32xf32, #tpu.memory_space<vmem>>, vector<1x1x32xf32>
    %7 = vector.shape_cast %6 : vector<1x1x32xf32> to vector<1x32xf32>
    %cst = arith.constant dense<0.000000e+00> : vector<8xf32>
    %8 = vector.multi_reduction <add>, %3, %cst [1] : vector<8x32xf32> to vector<8xf32>
    %9 = vector.shape_cast %8 : vector<8xf32> to vector<8x1xf32>
    %cst_8 = arith.constant 3.200000e+01 : f32
    %10 = vector.broadcast %cst_8 : f32 to vector<8x1xf32>
    %11 = arith.divf %9, %10 : vector<8x1xf32>
    %12 = vector.broadcast %11 : vector<8x1xf32> to vector<8x32xf32>
    %13 = arith.subf %3, %12 : vector<8x32xf32>
    %14 = arith.mulf %13, %13 : vector<8x32xf32>
    %cst_9 = arith.constant dense<0.000000e+00> : vector<8xf32>
    %15 = vector.multi_reduction <add>, %14, %cst_9 [1] : vector<8x32xf32> to vector<8xf32>
    %16 = vector.shape_cast %15 : vector<8xf32> to vector<8x1xf32>
    %cst_10 = arith.constant 3.200000e+01 : f32
    %17 = vector.broadcast %cst_10 : f32 to vector<8x1xf32>
    %18 = arith.divf %16, %17 : vector<8x1xf32>
    %19 = vector.broadcast %11 : vector<8x1xf32> to vector<8x32xf32>
    %20 = arith.subf %3, %19 : vector<8x32xf32>
    %cst_11 = arith.constant 9.99999974E-6 : f32
    %21 = vector.broadcast %cst_11 : f32 to vector<8x1xf32>
    %22 = arith.addf %18, %21 : vector<8x1xf32>
    %23 = math.rsqrt %22 : vector<8x1xf32>
    %24 = vector.broadcast %23 : vector<8x1xf32> to vector<8x32xf32>
    %25 = arith.mulf %20, %24 : vector<8x32xf32>
    %26 = vector.broadcast %5 : vector<1x32xf32> to vector<8x32xf32>
    %27 = arith.mulf %25, %26 : vector<8x32xf32>
    %28 = vector.broadcast %7 : vector<1x32xf32> to vector<8x32xf32>
    %29 = arith.addf %27, %28 : vector<8x32xf32>
    %30 = arith.truncf %29 : vector<8x32xf32> to vector<8x32xbf16>
    %c0_12 = arith.constant 0 : index
    %c0_13 = arith.constant 0 : index
    %c0_14 = arith.constant 0 : index
    %31 = vector.load %arg10[%c0_12, %c0_13, %c0_14] : memref<1x32x96xbf16, #tpu.memory_space<vmem>>, vector<1x32x96xbf16>
    %32 = vector.shape_cast %31 : vector<1x32x96xbf16> to vector<32x96xbf16>
    %cst_15 = arith.constant dense<0.000000e+00> : vector<8x96xf32>
    %33 = tpu.matmul %30, %32, %cst_15 {dimension_numbers = #tpu.dot_dimension_numbers<[1], [0], [0], [1], [0, 0, 1, 1], [], []>} : vector<8x32xbf16>, vector<32x96xbf16>, vector<8x96xf32> -> vector<8x96xf32>
    %c0_16 = arith.constant 0 : index
    %c0_17 = arith.constant 0 : index
    %c0_18 = arith.constant 0 : index
    %34 = vector.load %arg11[%c0_16, %c0_17, %c0_18] : memref<1x1x96xf32, #tpu.memory_space<vmem>>, vector<1x1x96xf32>
    %35 = vector.shape_cast %34 : vector<1x1x96xf32> to vector<1x96xf32>
    %36 = vector.broadcast %35 : vector<1x96xf32> to vector<8x96xf32>
    %37 = arith.addf %33, %36 : vector<8x96xf32>
    %38 = vector.extract_strided_slice %37 {offsets = [0, 0], sizes = [8, 32], strides = [1, 1]} : vector<8x96xf32> to vector<8x32xf32>
    %39 = vector.shape_cast %38 : vector<8x32xf32> to vector<8x4x8xf32>
    %40 = arith.truncf %39 : vector<8x4x8xf32> to vector<8x4x8xbf16>
    %41 = vector.extract_strided_slice %37 {offsets = [0, 32], sizes = [8, 32], strides = [1, 1]} : vector<8x96xf32> to vector<8x32xf32>
    %42 = vector.shape_cast %41 : vector<8x32xf32> to vector<8x4x8xf32>
    %43 = arith.truncf %42 : vector<8x4x8xf32> to vector<8x4x8xbf16>
    %44 = vector.extract_strided_slice %37 {offsets = [0, 64], sizes = [8, 32], strides = [1, 1]} : vector<8x96xf32> to vector<8x32xf32>
    %45 = vector.shape_cast %44 : vector<8x32xf32> to vector<8x4x8xf32>
    %46 = arith.truncf %45 : vector<8x4x8xf32> to vector<8x4x8xbf16>
    "tpu.trace_start"() <{level = 10 : i32, message = "qhd,khd->hqk"}> : () -> ()
    %cst_19 = arith.constant dense<0.000000e+00> : vector<4x8x8xf32>
    %47 = tpu.matmul %40, %43, %cst_19 {dimension_numbers = #tpu.dot_dimension_numbers<[2], [2], [0], [0], [0, 1, 0, 0, 1, 0], [1], [1]>} : vector<8x4x8xbf16>, vector<8x4x8xbf16>, vector<4x8x8xf32> -> vector<4x8x8xf32>
    "tpu.trace_stop"() : () -> ()
    %cst_20 = arith.constant 0.353553385 : f32
    %48 = vector.broadcast %cst_20 : f32 to vector<4x8x8xf32>
    %49 = arith.mulf %47, %48 : vector<4x8x8xf32>
    %50 = tpu.iota {dimensions = array<i32: 2>} : vector<4x8x8xi32>
    %c5_i32 = arith.constant 5 : i32
    %51 = vector.broadcast %c5_i32 : i32 to vector<4x8x8xi32>
    %52 = arith.cmpi slt, %50, %51 : vector<4x8x8xi32>
    %cst_21 = arith.constant -1.000000e+30 : f32
    %53 = vector.broadcast %cst_21 : f32 to vector<4x8x8xf32>
    %54 = arith.select %52, %49, %53 : vector<4x8x8xi1>, vector<4x8x8xf32>
    %cst_22 = arith.constant dense<0xFF800000> : vector<4x8xf32>
    %55 = vector.multi_reduction <maximumf>, %54, %cst_22 [2] : vector<4x8x8xf32> to vector<4x8xf32>
    %56 = vector.shape_cast %55 : vector<4x8xf32> to vector<4x8x1xf32>
    %57 = vector.broadcast %56 : vector<4x8x1xf32> to vector<4x8x8xf32>
    %58 = arith.subf %54, %57 : vector<4x8x8xf32>
    %59 = math.exp %58 : vector<4x8x8xf32>
    %cst_23 = arith.constant dense<0.000000e+00> : vector<4x8xf32>
    %60 = vector.multi_reduction <add>, %59, %cst_23 [2] : vector<4x8x8xf32> to vector<4x8xf32>
    %61 = vector.shape_cast %60 : vector<4x8xf32> to vector<4x8x1xf32>
    %62 = tpu.reciprocal %61 {approx = true} : vector<4x8x1xf32> -> vector<4x8x1xf32>
    %63 = vector.broadcast %62 : vector<4x8x1xf32> to vector<4x8x8xf32>
    %64 = arith.mulf %59, %63 : vector<4x8x8xf32>
    %65 = arith.truncf %64 : vector<4x8x8xf32> to vector<4x8x8xbf16>
    "tpu.trace_start"() <{level = 10 : i32, message = "hqk,khd->qhd"}> : () -> ()
    %cst_24 = arith.constant dense<0.000000e+00> : vector<4x8x8xf32>
    %66 = tpu.matmul %46, %65, %cst_24 {dimension_numbers = #tpu.dot_dimension_numbers<[0], [2], [2], [1], [0, 1, 0, 2, 1, 1], [1], [0]>} : vector<8x4x8xbf16>, vector<4x8x8xbf16>, vector<4x8x8xf32> -> vector<4x8x8xf32>
    %67 = tpu.transpose %66, [2, 0, 1] : vector<4x8x8xf32> -> vector<8x4x8xf32>
    "tpu.trace_stop"() : () -> ()
    %68 = vector.shape_cast %67 : vector<8x4x8xf32> to vector<8x32xf32>
    %69 = arith.truncf %68 : vector<8x32xf32> to vector<8x32xbf16>
    %c0_25 = arith.constant 0 : index
    %c0_26 = arith.constant 0 : index
    %c0_27 = arith.constant 0 : index
    %70 = vector.load %arg12[%c0_25, %c0_26, %c0_27] : memref<1x32x32xbf16, #tpu.memory_space<vmem>>, vector<1x32x32xbf16>
    %71 = vector.shape_cast %70 : vector<1x32x32xbf16> to vector<32x32xbf16>
    %cst_28 = arith.constant dense<0.000000e+00> : vector<8x32xf32>
    %72 = tpu.matmul %69, %71, %cst_28 {dimension_numbers = #tpu.dot_dimension_numbers<[1], [0], [0], [1], [0, 0, 1, 1], [], []>} : vector<8x32xbf16>, vector<32x32xbf16>, vector<8x32xf32> -> vector<8x32xf32>
    %c0_29 = arith.constant 0 : index
    %c0_30 = arith.constant 0 : index
    %c0_31 = arith.constant 0 : index
    %73 = vector.load %arg13[%c0_29, %c0_30, %c0_31] : memref<1x1x32xf32, #tpu.memory_space<vmem>>, vector<1x1x32xf32>
    %74 = vector.shape_cast %73 : vector<1x1x32xf32> to vector<1x32xf32>
    %75 = vector.broadcast %74 : vector<1x32xf32> to vector<8x32xf32>
    %76 = arith.addf %72, %75 : vector<8x32xf32>
    %77 = arith.truncf %76 : vector<8x32xf32> to vector<8x32xbf16>
    %c0_32 = arith.constant 0 : index
    %c0_33 = arith.constant 0 : index
    %c0_34 = arith.constant 0 : index
    %78 = vector.load %arg20[%c0_32, %c0_33, %c0_34] : memref<1x32x8xbf16, #tpu.memory_space<vmem>>, vector<1x32x8xbf16>
    %79 = vector.shape_cast %78 : vector<1x32x8xbf16> to vector<32x8xbf16>
    %cst_35 = arith.constant dense<0.000000e+00> : vector<8x8xf32>
    %80 = tpu.matmul %77, %79, %cst_35 {dimension_numbers = #tpu.dot_dimension_numbers<[1], [0], [0], [1], [0, 0, 1, 1], [], []>} : vector<8x32xbf16>, vector<32x8xbf16>, vector<8x8xf32> -> vector<8x8xf32>
    %c0_36 = arith.constant 0 : index
    %c0_37 = arith.constant 0 : index
    %c0_38 = arith.constant 0 : index
    %81 = vector.load %arg21[%c0_36, %c0_37, %c0_38] : memref<1x1x8xf32, #tpu.memory_space<vmem>>, vector<1x1x8xf32>
    %82 = vector.shape_cast %81 : vector<1x1x8xf32> to vector<1x8xf32>
    %83 = vector.broadcast %82 : vector<1x8xf32> to vector<8x8xf32>
    %84 = arith.addf %80, %83 : vector<8x8xf32>
    %cst_39 = arith.constant 5.000000e-01 : f32
    %85 = vector.broadcast %cst_39 : f32 to vector<8x8xf32>
    %86 = arith.mulf %85, %84 : vector<8x8xf32>
    %cst_40 = arith.constant 4.471500e-02 : f32
    %87 = vector.broadcast %cst_40 : f32 to vector<8x8xf32>
    %88 = arith.mulf %87, %84 : vector<8x8xf32>
    %89 = arith.mulf %88, %84 : vector<8x8xf32>
    %90 = arith.mulf %89, %84 : vector<8x8xf32>
    %91 = arith.addf %84, %90 : vector<8x8xf32>
    %cst_41 = arith.constant 0.797884583 : f32
    %92 = vector.broadcast %cst_41 : f32 to vector<8x8xf32>
    %93 = arith.mulf %92, %91 : vector<8x8xf32>
    %94 = math.tanh %93 : vector<8x8xf32>
    %cst_42 = arith.constant 1.000000e+00 : f32
    %95 = vector.broadcast %cst_42 : f32 to vector<8x8xf32>
    %96 = arith.addf %95, %94 : vector<8x8xf32>
    %97 = arith.mulf %86, %96 : vector<8x8xf32>
    %98 = arith.truncf %97 : vector<8x8xf32> to vector<8x8xbf16>
    %c0_43 = arith.constant 0 : index
    %c0_44 = arith.constant 0 : index
    %c0_45 = arith.constant 0 : index
    %99 = vector.load %arg22[%c0_43, %c0_44, %c0_45] : memref<1x8x32xbf16, #tpu.memory_space<vmem>>, vector<1x8x32xbf16>
    %100 = vector.shape_cast %99 : vector<1x8x32xbf16> to vector<8x32xbf16>
    %cst_46 = arith.constant dense<0.000000e+00> : vector<8x32xf32>
    %101 = tpu.matmul %98, %100, %cst_46 {dimension_numbers = #tpu.dot_dimension_numbers<[1], [0], [0], [1], [0, 0, 1, 1], [], []>} : vector<8x8xbf16>, vector<8x32xbf16>, vector<8x32xf32> -> vector<8x32xf32>
    %c0_47 = arith.constant 0 : index
    %c0_48 = arith.constant 0 : index
    %c0_49 = arith.constant 0 : index
    %102 = vector.load %arg23[%c0_47, %c0_48, %c0_49] : memref<1x1x32xf32, #tpu.memory_space<vmem>>, vector<1x1x32xf32>
    %103 = vector.shape_cast %102 : vector<1x1x32xf32> to vector<1x32xf32>
    %104 = vector.broadcast %103 : vector<1x32xf32> to vector<8x32xf32>
    %105 = arith.addf %101, %104 : vector<8x32xf32>
    %106 = arith.addf %3, %76 : vector<8x32xf32>
    %107 = arith.addf %106, %105 : vector<8x32xf32>
    %c0_50 = arith.constant 0 : index
    %c0_51 = arith.constant 0 : index
    %c0_52 = arith.constant 0 : index
    %108 = vector.load %arg14[%c0_50, %c0_51, %c0_52] : memref<1x1x32xf32, #tpu.memory_space<vmem>>, vector<1x1x32xf32>
    %109 = vector.shape_cast %108 : vector<1x1x32xf32> to vector<1x32xf32>
    %c0_53 = arith.constant 0 : index
    %c0_54 = arith.constant 0 : index
    %c0_55 = arith.constant 0 : index
    %110 = vector.load %arg15[%c0_53, %c0_54, %c0_55] : memref<1x1x32xf32, #tpu.memory_space<vmem>>, vector<1x1x32xf32>
    %111 = vector.shape_cast %110 : vector<1x1x32xf32> to vector<1x32xf32>
    %cst_56 = arith.constant dense<0.000000e+00> : vector<8xf32>
    %112 = vector.multi_reduction <add>, %107, %cst_56 [1] : vector<8x32xf32> to vector<8xf32>
    %113 = vector.shape_cast %112 : vector<8xf32> to vector<8x1xf32>
    %cst_57 = arith.constant 3.200000e+01 : f32
    %114 = vector.broadcast %cst_57 : f32 to vector<8x1xf32>
    %115 = arith.divf %113, %114 : vector<8x1xf32>
    %116 = vector.broadcast %115 : vector<8x1xf32> to vector<8x32xf32>
    %117 = arith.subf %107, %116 : vector<8x32xf32>
    %118 = arith.mulf %117, %117 : vector<8x32xf32>
    %cst_58 = arith.constant dense<0.000000e+00> : vector<8xf32>
    %119 = vector.multi_reduction <add>, %118, %cst_58 [1] : vector<8x32xf32> to vector<8xf32>
    %120 = vector.shape_cast %119 : vector<8xf32> to vector<8x1xf32>
    %cst_59 = arith.constant 3.200000e+01 : f32
    %121 = vector.broadcast %cst_59 : f32 to vector<8x1xf32>
    %122 = arith.divf %120, %121 : vector<8x1xf32>
    %123 = vector.broadcast %115 : vector<8x1xf32> to vector<8x32xf32>
    %124 = arith.subf %107, %123 : vector<8x32xf32>
    %cst_60 = arith.constant 9.99999974E-6 : f32
    %125 = vector.broadcast %cst_60 : f32 to vector<8x1xf32>
    %126 = arith.addf %122, %125 : vector<8x1xf32>
    %127 = math.rsqrt %126 : vector<8x1xf32>
    %128 = vector.broadcast %127 : vector<8x1xf32> to vector<8x32xf32>
    %129 = arith.mulf %124, %128 : vector<8x32xf32>
    %130 = vector.broadcast %109 : vector<1x32xf32> to vector<8x32xf32>
    %131 = arith.mulf %129, %130 : vector<8x32xf32>
    %132 = vector.broadcast %111 : vector<1x32xf32> to vector<8x32xf32>
    %133 = arith.addf %131, %132 : vector<8x32xf32>
    %134 = arith.truncf %133 : vector<8x32xf32> to vector<8x32xbf16>
    %c0_61 = arith.constant 0 : index
    %c0_62 = arith.constant 0 : index
    %c0_63 = arith.constant 0 : index
    %135 = vector.load %arg16[%c0_61, %c0_62, %c0_63] : memref<1x32x128xbf16, #tpu.memory_space<vmem>>, vector<1x32x128xbf16>
    %136 = vector.shape_cast %135 : vector<1x32x128xbf16> to vector<32x128xbf16>
    %cst_64 = arith.constant dense<0.000000e+00> : vector<8x128xf32>
    %137 = tpu.matmul %134, %136, %cst_64 {dimension_numbers = #tpu.dot_dimension_numbers<[1], [0], [0], [1], [0, 0, 1, 1], [], []>} : vector<8x32xbf16>, vector<32x128xbf16>, vector<8x128xf32> -> vector<8x128xf32>
    %c0_65 = arith.constant 0 : index
    %c0_66 = arith.constant 0 : index
    %c0_67 = arith.constant 0 : index
    %138 = vector.load %arg17[%c0_65, %c0_66, %c0_67] : memref<1x1x128xf32, #tpu.memory_space<vmem>>, vector<1x1x128xf32>
    %139 = vector.shape_cast %138 : vector<1x1x128xf32> to vector<1x128xf32>
    %140 = vector.broadcast %139 : vector<1x128xf32> to vector<8x128xf32>
    %141 = arith.addf %137, %140 : vector<8x128xf32>
    %cst_68 = arith.constant -1.702000e+00 : f32
    %142 = vector.broadcast %cst_68 : f32 to vector<8x128xf32>
    %143 = arith.mulf %142, %141 : vector<8x128xf32>
    %144 = math.exp %143 : vector<8x128xf32>
    %cst_69 = arith.constant 1.000000e+00 : f32
    %145 = vector.broadcast %cst_69 : f32 to vector<8x128xf32>
    %146 = arith.addf %145, %144 : vector<8x128xf32>
    %cst_70 = arith.constant 1.000000e+00 : f32
    %147 = vector.broadcast %cst_70 : f32 to vector<8x128xf32>
    %148 = arith.divf %147, %146 : vector<8x128xf32>
    %149 = arith.mulf %141, %148 : vector<8x128xf32>
    %150 = arith.truncf %149 : vector<8x128xf32> to vector<8x128xbf16>
    %c0_71 = arith.constant 0 : index
    %c0_72 = arith.constant 0 : index
    %c0_73 = arith.constant 0 : index
    %151 = vector.load %arg18[%c0_71, %c0_72, %c0_73] : memref<1x128x32xbf16, #tpu.memory_space<vmem>>, vector<1x128x32xbf16>
    %152 = vector.shape_cast %151 : vector<1x128x32xbf16> to vector<128x32xbf16>
    %cst_74 = arith.constant dense<0.000000e+00> : vector<8x32xf32>
    %153 = tpu.matmul %150, %152, %cst_74 {dimension_numbers = #tpu.dot_dimension_numbers<[1], [0], [0], [1], [0, 0, 1, 1], [], []>} : vector<8x128xbf16>, vector<128x32xbf16>, vector<8x32xf32> -> vector<8x32xf32>
    %c0_75 = arith.constant 0 : index
    %c0_76 = arith.constant 0 : index
    %c0_77 = arith.constant 0 : index
    %154 = vector.load %arg19[%c0_75, %c0_76, %c0_77] : memref<1x1x32xf32, #tpu.memory_space<vmem>>, vector<1x1x32xf32>
    %155 = vector.shape_cast %154 : vector<1x1x32xf32> to vector<1x32xf32>
    %156 = vector.broadcast %155 : vector<1x32xf32> to vector<8x32xf32>
    %157 = arith.addf %153, %156 : vector<8x32xf32>
    %c0_78 = arith.constant 0 : index
    %c0_79 = arith.constant 0 : index
    %c0_80 = arith.constant 0 : index
    %158 = vector.load %arg24[%c0_78, %c0_79, %c0_80] : memref<1x32x8xbf16, #tpu.memory_space<vmem>>, vector<1x32x8xbf16>
    %159 = vector.shape_cast %158 : vector<1x32x8xbf16> to vector<32x8xbf16>
    %cst_81 = arith.constant dense<0.000000e+00> : vector<8x8xf32>
    %160 = tpu.matmul %134, %159, %cst_81 {dimension_numbers = #tpu.dot_dimension_numbers<[1], [0], [0], [1], [0, 0, 1, 1], [], []>} : vector<8x32xbf16>, vector<32x8xbf16>, vector<8x8xf32> -> vector<8x8xf32>
    %c0_82 = arith.constant 0 : index
    %c0_83 = arith.constant 0 : index
    %c0_84 = arith.constant 0 : index
    %161 = vector.load %arg25[%c0_82, %c0_83, %c0_84] : memref<1x1x8xf32, #tpu.memory_space<vmem>>, vector<1x1x8xf32>
    %162 = vector.shape_cast %161 : vector<1x1x8xf32> to vector<1x8xf32>
    %163 = vector.broadcast %162 : vector<1x8xf32> to vector<8x8xf32>
    %164 = arith.addf %160, %163 : vector<8x8xf32>
    %cst_85 = arith.constant 5.000000e-01 : f32
    %165 = vector.broadcast %cst_85 : f32 to vector<8x8xf32>
    %166 = arith.mulf %165, %164 : vector<8x8xf32>
    %cst_86 = arith.constant 4.471500e-02 : f32
    %167 = vector.broadcast %cst_86 : f32 to vector<8x8xf32>
    %168 = arith.mulf %167, %164 : vector<8x8xf32>
    %169 = arith.mulf %168, %164 : vector<8x8xf32>
    %170 = arith.mulf %169, %164 : vector<8x8xf32>
    %171 = arith.addf %164, %170 : vector<8x8xf32>
    %cst_87 = arith.constant 0.797884583 : f32
    %172 = vector.broadcast %cst_87 : f32 to vector<8x8xf32>
    %173 = arith.mulf %172, %171 : vector<8x8xf32>
    %174 = math.tanh %173 : vector<8x8xf32>
    %cst_88 = arith.constant 1.000000e+00 : f32
    %175 = vector.broadcast %cst_88 : f32 to vector<8x8xf32>
    %176 = arith.addf %175, %174 : vector<8x8xf32>
    %177 = arith.mulf %166, %176 : vector<8x8xf32>
    %178 = arith.truncf %177 : vector<8x8xf32> to vector<8x8xbf16>
    %c0_89 = arith.constant 0 : index
    %c0_90 = arith.constant 0 : index
    %c0_91 = arith.constant 0 : index
    %179 = vector.load %arg26[%c0_89, %c0_90, %c0_91] : memref<1x8x32xbf16, #tpu.memory_space<vmem>>, vector<1x8x32xbf16>
    %180 = vector.shape_cast %179 : vector<1x8x32xbf16> to vector<8x32xbf16>
    %cst_92 = arith.constant dense<0.000000e+00> : vector<8x32xf32>
    %181 = tpu.matmul %178, %180, %cst_92 {dimension_numbers = #tpu.dot_dimension_numbers<[1], [0], [0], [1], [0, 0, 1, 1], [], []>} : vector<8x8xbf16>, vector<8x32xbf16>, vector<8x32xf32> -> vector<8x32xf32>
    %c0_93 = arith.constant 0 : index
    %c0_94 = arith.constant 0 : index
    %c0_95 = arith.constant 0 : index
    %182 = vector.load %arg27[%c0_93, %c0_94, %c0_95] : memref<1x1x32xf32, #tpu.memory_space<vmem>>, vector<1x1x32xf32>
    %183 = vector.shape_cast %182 : vector<1x1x32xf32> to vector<1x32xf32>
    %184 = vector.broadcast %183 : vector<1x32xf32> to vector<8x32xf32>
    %185 = arith.addf %181, %184 : vector<8x32xf32>
    %186 = arith.addf %107, %157 : vector<8x32xf32>
    %cst_96 = arith.constant 5.000000e-01 : f32
    %187 = vector.broadcast %cst_96 : f32 to vector<8x32xf32>
    %188 = arith.mulf %187, %185 : vector<8x32xf32>
    %189 = arith.addf %186, %188 : vector<8x32xf32>
    %c0_97 = arith.constant 0 : index
    %c0_98 = arith.constant 0 : index
    %190 = vector.load %arg33[%c0_97, %c0_98] : memref<8x32xf32, #tpu.memory_space<vmem>>, vector<8x32xf32>
    tpu.vector_store %arg33[%c0_97, %c0_98], %189 {strides = array<i32>} : memref<8x32xf32, #tpu.memory_space<vmem>>, vector<8x32xf32>,
    %c1_i32 = arith.constant 1 : i32
    %191 = arith.cmpi eq, %arg1, %c1_i32 : i32
    %192 = arith.extui %191 : i1 to i32
    %c0_i32_99 = arith.constant 0 : i32
    %193 = arith.cmpi ne, %192, %c0_i32_99 : i32
    scf.if %193 {
      %194 = vector.extract_strided_slice %189 {offsets = [0, 0], sizes = [1, 32], strides = [1, 1]} : vector<8x32xf32> to vector<1x32xf32>
      %c0_100 = arith.constant 0 : index
      %c0_101 = arith.constant 0 : index
      %195 = vector.load %arg28[%c0_100, %c0_101] : memref<1x32xf32, #tpu.memory_space<vmem>>, vector<1x32xf32>
      %c0_102 = arith.constant 0 : index
      %c0_103 = arith.constant 0 : index
      %196 = vector.load %arg29[%c0_102, %c0_103] : memref<1x32xf32, #tpu.memory_space<vmem>>, vector<1x32xf32>
      %cst_104 = arith.constant dense<0.000000e+00> : vector<1xf32>
      %197 = vector.multi_reduction <add>, %194, %cst_104 [1] : vector<1x32xf32> to vector<1xf32>
      %198 = vector.shape_cast %197 : vector<1xf32> to vector<1x1xf32>
      %cst_105 = arith.constant 3.200000e+01 : f32
      %199 = vector.broadcast %cst_105 : f32 to vector<1x1xf32>
      %200 = arith.divf %198, %199 : vector<1x1xf32>
      %201 = vector.broadcast %200 : vector<1x1xf32> to vector<1x32xf32>
      %202 = arith.subf %194, %201 : vector<1x32xf32>
      %203 = arith.mulf %202, %202 : vector<1x32xf32>
      %cst_106 = arith.constant dense<0.000000e+00> : vector<1xf32>
      %204 = vector.multi_reduction <add>, %203, %cst_106 [1] : vector<1x32xf32> to vector<1xf32>
      %205 = vector.shape_cast %204 : vector<1xf32> to vector<1x1xf32>
      %cst_107 = arith.constant 3.200000e+01 : f32
      %206 = vector.broadcast %cst_107 : f32 to vector<1x1xf32>
      %207 = arith.divf %205, %206 : vector<1x1xf32>
      %208 = vector.broadcast %200 : vector<1x1xf32> to vector<1x32xf32>
      %209 = arith.subf %194, %208 : vector<1x32xf32>
      %cst_108 = arith.constant 9.99999974E-6 : f32
      %210 = vector.broadcast %cst_108 : f32 to vector<1x1xf32>
      %211 = arith.addf %207, %210 : vector<1x1xf32>
      %212 = math.rsqrt %211 : vector<1x1xf32>
      %213 = vector.broadcast %212 : vector<1x1xf32> to vector<1x32xf32>
      %214 = arith.mulf %209, %213 : vector<1x32xf32>
      %215 = arith.mulf %214, %195 : vector<1x32xf32>
      %216 = arith.addf %215, %196 : vector<1x32xf32>
      %217 = arith.truncf %216 : vector<1x32xf32> to vector<1x32xbf16>
      %c0_109 = arith.constant 0 : index
      %c0_110 = arith.constant 0 : index
      %218 = vector.load %arg30[%c0_109, %c0_110] : memref<32x10xbf16, #tpu.memory_space<vmem>>, vector<32x10xbf16>
      %cst_111 = arith.constant dense<0.000000e+00> : vector<1x10xf32>
      %219 = tpu.matmul %217, %218, %cst_111 {dimension_numbers = #tpu.dot_dimension_numbers<[1], [0], [0], [1], [0, 0, 1, 1], [], []>} : vector<1x32xbf16>, vector<32x10xbf16>, vector<1x10xf32> -> vector<1x10xf32>
      %c0_112 = arith.constant 0 : index
      %c0_113 = arith.constant 0 : index
      %220 = vector.load %arg31[%c0_112, %c0_113] : memref<1x10xf32, #tpu.memory_space<vmem>>, vector<1x10xf32>
      %221 = arith.addf %219, %220 : vector<1x10xf32>
      %c0_114 = arith.constant 0 : index
      %c0_115 = arith.constant 0 : index
      %c0_116 = arith.constant 0 : index
      %222 = vector.load %arg32[%c0_114, %c0_115, %c0_116] : memref<1x1x10xf32, #tpu.memory_space<vmem>>, vector<1x1x10xf32>
      %223 = vector.shape_cast %222 : vector<1x1x10xf32> to vector<1x10xf32>
      %224 = vector.shape_cast %221 : vector<1x10xf32> to vector<1x1x10xf32>
      tpu.vector_store %arg32[%c0_114, %c0_115, %c0_116], %224 {strides = array<i32>} : memref<1x1x10xf32, #tpu.memory_space<vmem>>, vector<1x1x10xf32>,
    } else {
    }
    return
  }
  func.func @transform_0(%arg0: i32, %arg1: i32) -> (i32, i32, i32) {
    %c0_i32 = arith.constant 0 : i32
    %c0_i32_0 = arith.constant 0 : i32
    %c0_i32_1 = arith.constant 0 : i32
    return %arg0, %c0_i32, %c0_i32_0 : i32, i32, i32
  }
  func.func @transform_1(%arg0: i32, %arg1: i32) -> (i32, i32) {
    %c0_i32 = arith.constant 0 : i32
    %c0_i32_0 = arith.constant 0 : i32
    %c0_i32_1 = arith.constant 0 : i32
    return %c0_i32, %c0_i32_0 : i32, i32
  }
  func.func @transform_2(%arg0: i32, %arg1: i32) -> (i32, i32) {
    %c0_i32 = arith.constant 0 : i32
    %c0_i32_0 = arith.constant 0 : i32
    %c0_i32_1 = arith.constant 0 : i32
    return %c0_i32, %c0_i32_0 : i32, i32
  }
  func.func @transform_3(%arg0: i32, %arg1: i32) -> (i32, i32) {
    %c0_i32 = arith.constant 0 : i32
    %c0_i32_0 = arith.constant 0 : i32
    %c0_i32_1 = arith.constant 0 : i32
    return %c0_i32, %c0_i32_0 : i32, i32
  }
  func.func @transform_4(%arg0: i32, %arg1: i32) -> (i32, i32) {
    %c0_i32 = arith.constant 0 : i32
    %c0_i32_0 = arith.constant 0 : i32
    %c0_i32_1 = arith.constant 0 : i32
    return %c0_i32, %c0_i32_0 : i32, i32
  }
  func.func @transform_5(%arg0: i32, %arg1: i32) -> (i32, i32) {
    %c0_i32 = arith.constant 0 : i32
    %c0_i32_0 = arith.constant 0 : i32
    %c0_i32_1 = arith.constant 0 : i32
    return %c0_i32, %c0_i32_0 : i32, i32
  }
  func.func @transform_6(%arg0: i32, %arg1: i32) -> (i32, i32, i32) {
    %c0_i32 = arith.constant 0 : i32
    %c0_i32_0 = arith.constant 0 : i32
    %c0_i32_1 = arith.constant 0 : i32
    return %arg1, %c0_i32, %c0_i32_0 : i32, i32, i32
  }
  func.func @transform_7(%arg0: i32, %arg1: i32) -> (i32, i32, i32) {
    %c0_i32 = arith.constant 0 : i32
    %c0_i32_0 = arith.constant 0 : i32
    %c0_i32_1 = arith.constant 0 : i32
    return %arg1, %c0_i32, %c0_i32_0 : i32, i32, i32
  }
  func.func @transform_8(%arg0: i32, %arg1: i32) -> (i32, i32, i32) {
    %c0_i32 = arith.constant 0 : i32
    %c0_i32_0 = arith.constant 0 : i32
    %c0_i32_1 = arith.constant 0 : i32
    return %arg1, %c0_i32, %c0_i32_0 : i32, i32, i32
  }
  func.func @transform_9(%arg0: i32, %arg1: i32) -> (i32, i32, i32) {
    %c0_i32 = arith.constant 0 : i32
    %c0_i32_0 = arith.constant 0 : i32
    %c0_i32_1 = arith.constant 0 : i32
    return %arg1, %c0_i32, %c0_i32_0 : i32, i32, i32
  }
  func.func @transform_10(%arg0: i32, %arg1: i32) -> (i32, i32, i32) {
    %c0_i32 = arith.constant 0 : i32
    %c0_i32_0 = arith.constant 0 : i32
    %c0_i32_1 = arith.constant 0 : i32
    return %arg1, %c0_i32, %c0_i32_0 : i32, i32, i32
  }
  func.func @transform_11(%arg0: i32, %arg1: i32) -> (i32, i32, i32) {
    %c0_i32 = arith.constant 0 : i32
    %c0_i32_0 = arith.constant 0 : i32
    %c0_i32_1 = arith.constant 0 : i32
    return %arg1, %c0_i32, %c0_i32_0 : i32, i32, i32
  }
  func.func @transform_12(%arg0: i32, %arg1: i32) -> (i32, i32, i32) {
    %c0_i32 = arith.constant 0 : i32
    %c0_i32_0 = arith.constant 0 : i32
    %c0_i32_1 = arith.constant 0 : i32
    return %arg1, %c0_i32, %c0_i32_0 : i32, i32, i32
  }
  func.func @transform_13(%arg0: i32, %arg1: i32) -> (i32, i32, i32) {
    %c0_i32 = arith.constant 0 : i32
    %c0_i32_0 = arith.constant 0 : i32
    %c0_i32_1 = arith.constant 0 : i32
    return %arg1, %c0_i32, %c0_i32_0 : i32, i32, i32
  }
  func.func @transform_14(%arg0: i32, %arg1: i32) -> (i32, i32, i32) {
    %c0_i32 = arith.constant 0 : i32
    %c0_i32_0 = arith.constant 0 : i32
    %c0_i32_1 = arith.constant 0 : i32
    return %arg1, %c0_i32, %c0_i32_0 : i32, i32, i32
  }
  func.func @transform_15(%arg0: i32, %arg1: i32) -> (i32, i32, i32) {
    %c0_i32 = arith.constant 0 : i32
    %c0_i32_0 = arith.constant 0 : i32
    %c0_i32_1 = arith.constant 0 : i32
    return %arg1, %c0_i32, %c0_i32_0 : i32, i32, i32
  }
  func.func @transform_16(%arg0: i32, %arg1: i32) -> (i32, i32, i32) {
    %c0_i32 = arith.constant 0 : i32
    %c0_i32_0 = arith.constant 0 : i32
    %c0_i32_1 = arith.constant 0 : i32
    return %arg1, %c0_i32, %c0_i32_0 : i32, i32, i32
  }
  func.func @transform_17(%arg0: i32, %arg1: i32) -> (i32, i32, i32) {
    %c0_i32 = arith.constant 0 : i32
    %c0_i32_0 = arith.constant 0 : i32
    %c0_i32_1 = arith.constant 0 : i32
    return %arg1, %c0_i32, %c0_i32_0 : i32, i32, i32
  }
  func.func @transform_18(%arg0: i32, %arg1: i32) -> (i32, i32, i32) {
    %c0_i32 = arith.constant 0 : i32
    %c0_i32_0 = arith.constant 0 : i32
    %c0_i32_1 = arith.constant 0 : i32
    return %arg1, %c0_i32, %c0_i32_0 : i32, i32, i32
  }
  func.func @transform_19(%arg0: i32, %arg1: i32) -> (i32, i32, i32) {
    %c0_i32 = arith.constant 0 : i32
    %c0_i32_0 = arith.constant 0 : i32
    %c0_i32_1 = arith.constant 0 : i32
    return %arg1, %c0_i32, %c0_i32_0 : i32, i32, i32
  }
  func.func @transform_20(%arg0: i32, %arg1: i32) -> (i32, i32, i32) {
    %c0_i32 = arith.constant 0 : i32
    %c0_i32_0 = arith.constant 0 : i32
    %c0_i32_1 = arith.constant 0 : i32
    return %arg1, %c0_i32, %c0_i32_0 : i32, i32, i32
  }
  func.func @transform_21(%arg0: i32, %arg1: i32) -> (i32, i32, i32) {
    %c0_i32 = arith.constant 0 : i32
    %c0_i32_0 = arith.constant 0 : i32
    %c0_i32_1 = arith.constant 0 : i32
    return %arg1, %c0_i32, %c0_i32_0 : i32, i32, i32
  }
  func.func @transform_22(%arg0: i32, %arg1: i32) -> (i32, i32, i32) {
    %c0_i32 = arith.constant 0 : i32
    %c0_i32_0 = arith.constant 0 : i32
    %c0_i32_1 = arith.constant 0 : i32
    return %arg1, %c0_i32, %c0_i32_0 : i32, i32, i32
  }
  func.func @transform_23(%arg0: i32, %arg1: i32) -> (i32, i32, i32) {
    %c0_i32 = arith.constant 0 : i32
    %c0_i32_0 = arith.constant 0 : i32
    %c0_i32_1 = arith.constant 0 : i32
    return %arg1, %c0_i32, %c0_i32_0 : i32, i32, i32
  }
  func.func @transform_24(%arg0: i32, %arg1: i32) -> (i32, i32, i32) {
    %c0_i32 = arith.constant 0 : i32
    %c0_i32_0 = arith.constant 0 : i32
    %c0_i32_1 = arith.constant 0 : i32
    return %arg1, %c0_i32, %c0_i32_0 : i32, i32, i32
  }
  func.func @transform_25(%arg0: i32, %arg1: i32) -> (i32, i32, i32) {
    %c0_i32 = arith.constant 0 : i32
    %c0_i32_0 = arith.constant 0 : i32
    %c0_i32_1 = arith.constant 0 : i32
    return %arg1, %c0_i32, %c0_i32_0 : i32, i32, i32
  }
  func.func @transform_26(%arg0: i32, %arg1: i32) -> (i32, i32) {
    %c0_i32 = arith.constant 0 : i32
    %c0_i32_0 = arith.constant 0 : i32
    %c0_i32_1 = arith.constant 0 : i32
    return %c0_i32, %c0_i32_0 : i32, i32
  }
  func.func @transform_27(%arg0: i32, %arg1: i32) -> (i32, i32) {
    %c0_i32 = arith.constant 0 : i32
    %c0_i32_0 = arith.constant 0 : i32
    %c0_i32_1 = arith.constant 0 : i32
    return %c0_i32, %c0_i32_0 : i32, i32
  }
  func.func @transform_28(%arg0: i32, %arg1: i32) -> (i32, i32) {
    %c0_i32 = arith.constant 0 : i32
    %c0_i32_0 = arith.constant 0 : i32
    %c0_i32_1 = arith.constant 0 : i32
    return %c0_i32, %c0_i32_0 : i32, i32
  }
  func.func @transform_29(%arg0: i32, %arg1: i32) -> (i32, i32) {
    %c0_i32 = arith.constant 0 : i32
    %c0_i32_0 = arith.constant 0 : i32
    %c0_i32_1 = arith.constant 0 : i32
    return %c0_i32, %c0_i32_0 : i32, i32
  }
  func.func @transform_30(%arg0: i32, %arg1: i32) -> (i32, i32, i32) {
    %c0_i32 = arith.constant 0 : i32
    %c0_i32_0 = arith.constant 0 : i32
    %c0_i32_1 = arith.constant 0 : i32
    return %arg0, %c0_i32, %c0_i32_0 : i32, i32, i32
  }
}

</mosaic_0001>

<llo_original>
// kernel: tpu_custom_call.1
$region0: #{tpu_custom_call.1}
  #allocation0 [shape = 'u32[]', space=smem, size = 0x4, offset = 0x4, fixed_abs, tag = 'smem constant byte address 0x4 - core index']
  #allocation1 [shape = 'u32[144,128]{1,0:T(1,128)}', space=vmem, size = 0x12000, scoped, tag = 'internal scratch']
  #allocation2 [shape = 'f32[8,32]{1,0:T(8,128)}', space=vmem, size = 0x1000, scoped, tag = 'scratch operand']
  %s0 = inlined_call_operand.smem [shape: u32[31], index: -1, kind: input, shape index: {}]
  %s1 = sld [smem:[%s0]]
  %s2 = scalar_lea.smem %s0, 1
  %s3 = sld [smem:[%s2]]
  %s4 = scalar_lea.smem %s0, 2
  %s5 = sld [smem:[%s4]]
  %s6 = scalar_lea.smem %s0, 3
  %s7 = sld [smem:[%s6]]
  %s8 = scalar_lea.smem %s0, 4
  %s9 = sld [smem:[%s8]]
  %s10 = scalar_lea.smem %s0, 5
  %s11 = sld [smem:[%s10]]
  %s12 = scalar_lea.smem %s0, 6
  %s13 = sld [smem:[%s12]]
  %s14 = scalar_lea.smem %s0, 7
  %s15 = sld [smem:[%s14]]
  %s16 = scalar_lea.smem %s0, 8
  %s17 = sld [smem:[%s16]]
  %s18 = scalar_lea.smem %s0, 9
  %s19 = sld [smem:[%s18]]
  %s20 = scalar_lea.smem %s0, 10
  %s21 = sld [smem:[%s20]]
  %s22 = scalar_lea.smem %s0, 11
  %s23 = sld [smem:[%s22]]
  %s24 = scalar_lea.smem %s0, 12
  %s25 = sld [smem:[%s24]]
  %s26 = scalar_lea.smem %s0, 13
  %s27 = sld [smem:[%s26]]
  %s28 = scalar_lea.smem %s0, 14
  %s29 = sld [smem:[%s28]]
  %s30 = scalar_lea.smem %s0, 15
  %s31 = sld [smem:[%s30]]
  %s32 = scalar_lea.smem %s0, 16
  %s33 = sld [smem:[%s32]]
  %s34 = scalar_lea.smem %s0, 17
  %s35 = sld [smem:[%s34]]
  %s36 = scalar_lea.smem %s0, 18
  %s37 = sld [smem:[%s36]]
  %s38 = scalar_lea.smem %s0, 19
  %s39 = sld [smem:[%s38]]
  %s40 = scalar_lea.smem %s0, 20
  %s41 = sld [smem:[%s40]]
  %s42 = scalar_lea.smem %s0, 21
  %s43 = sld [smem:[%s42]]
  %s44 = scalar_lea.smem %s0, 22
  %s45 = sld [smem:[%s44]]
  %s46 = scalar_lea.smem %s0, 23
  %s47 = sld [smem:[%s46]]
  %s48 = scalar_lea.smem %s0, 24
  %s49 = sld [smem:[%s48]]
  %s50 = scalar_lea.smem %s0, 25
  %s51 = sld [smem:[%s50]]
  %s52 = scalar_lea.smem %s0, 26
  %s53 = sld [smem:[%s52]]
  %s54 = scalar_lea.smem %s0, 27
  %s55 = sld [smem:[%s54]]
  %s56 = scalar_lea.smem %s0, 28
  %s57 = sld [smem:[%s56]]
  %s58 = scalar_lea.smem %s0, 29
  %s59 = sld [smem:[%s58]]
  %s60 = scalar_lea.smem %s0, 30
  %s61 = sld [smem:[%s60]]
  %s62 = sld [smem:[#allocation0]]
  $region161: #{tpu_custom_call.1} parent=0
    _
  %s64 = ssub.s32 1, %s62
  %s65 = scalar_select 0, %s64, %s62
  $region1: #{tpu_custom_call.1} parent=0
    #allocation3 [shape = 'u8[1024]{0}', space=vmem, size = 0x400, scoped, tag = 'output window, operand 0']
    #allocation4 [shape = 's32[2]{0}', space=sflag, size = 0x8, scoped, tag = 'scoped memory for tpu_custom_call.1']
    %66 = vsyncpa [#allocation4], 0
    %s67 = scalar_lea.sflag [#allocation4], 1
    %68 = vsyncpa %s67, 0
    loop: start=0, step=1, limit=6
    $region2: #{tpu_custom_call.1} parent=1 // loop_pre_header
      _
    $region3: #{tpu_custom_call.1} parent=1 // loop_header
      %s70 = sphi 0, %s74
      %p71 = scmp.ge.s32.totalorder %s70, 6
      %s77 = sphi 0, %s89
      %s78 = sphi 0, %s85
      %s79 = sphi 0, %s77
      %s80 = sphi 0, %s78
      %s81 = sphi 0, %s79
      %s82 = sphi 0, %s80
      %s92 = sphi 0, %s94
      %s95 = sphi 0, %s92
      %s96 = sphi 0, %s95
      %s112 = sphi 0, %s96
      %s116 = sphi 0, %s116
      %s118 = sphi 0, %s116
      %s119 = sphi 0, %s118
      %s133 = sphi 0, %s119
      %s137 = sphi 0, %s137
      %s139 = sphi 0, %s137
      %s140 = sphi 0, %s139
      %s154 = sphi 0, %s140
      %s158 = sphi 0, %s158
      %s160 = sphi 0, %s158
      %s161 = sphi 0, %s160
      %s175 = sphi 0, %s161
      %s179 = sphi 0, %s179
      %s181 = sphi 0, %s179
      %s182 = sphi 0, %s181
      %s196 = sphi 0, %s182
      %s200 = sphi 0, %s200
      %s202 = sphi 0, %s200
      %s203 = sphi 0, %s202
      %s217 = sphi 0, %s203
      %s223 = sphi 0, %s225
      %s226 = sphi 0, %s223
      %s227 = sphi 0, %s226
      %s243 = sphi 0, %s227
      %s249 = sphi 0, %s251
      %s252 = sphi 0, %s249
      %s253 = sphi 0, %s252
      %s269 = sphi 0, %s253
      %s275 = sphi 0, %s277
      %s278 = sphi 0, %s275
      %s279 = sphi 0, %s278
      %s295 = sphi 0, %s279
      %s301 = sphi 0, %s303
      %s304 = sphi 0, %s301
      %s305 = sphi 0, %s304
      %s321 = sphi 0, %s305
      %s327 = sphi 0, %s329
      %s330 = sphi 0, %s327
      %s331 = sphi 0, %s330
      %s347 = sphi 0, %s331
      %s353 = sphi 0, %s355
      %s356 = sphi 0, %s353
      %s357 = sphi 0, %s356
      %s373 = sphi 0, %s357
      %s379 = sphi 0, %s381
      %s382 = sphi 0, %s379
      %s383 = sphi 0, %s382
      %s399 = sphi 0, %s383
      %s405 = sphi 0, %s407
      %s408 = sphi 0, %s405
      %s409 = sphi 0, %s408
      %s425 = sphi 0, %s409
      %s431 = sphi 0, %s433
      %s434 = sphi 0, %s431
      %s435 = sphi 0, %s434
      %s451 = sphi 0, %s435
      %s457 = sphi 0, %s459
      %s460 = sphi 0, %s457
      %s461 = sphi 0, %s460
      %s477 = sphi 0, %s461
      %s483 = sphi 0, %s485
      %s486 = sphi 0, %s483
      %s487 = sphi 0, %s486
      %s503 = sphi 0, %s487
      %s509 = sphi 0, %s511
      %s512 = sphi 0, %s509
      %s513 = sphi 0, %s512
      %s529 = sphi 0, %s513
      %s535 = sphi 0, %s537
      %s538 = sphi 0, %s535
      %s539 = sphi 0, %s538
      %s555 = sphi 0, %s539
      %s561 = sphi 0, %s563
      %s564 = sphi 0, %s561
      %s565 = sphi 0, %s564
      %s581 = sphi 0, %s565
      %s587 = sphi 0, %s589
      %s590 = sphi 0, %s587
      %s591 = sphi 0, %s590
      %s607 = sphi 0, %s591
      %s613 = sphi 0, %s615
      %s616 = sphi 0, %s613
      %s617 = sphi 0, %s616
      %s633 = sphi 0, %s617
      %s639 = sphi 0, %s641
      %s642 = sphi 0, %s639
      %s643 = sphi 0, %s642
      %s659 = sphi 0, %s643
      %s665 = sphi 0, %s667
      %s668 = sphi 0, %s665
      %s669 = sphi 0, %s668
      %s685 = sphi 0, %s669
      %s691 = sphi 0, %s693
      %s694 = sphi 0, %s691
      %s695 = sphi 0, %s694
      %s711 = sphi 0, %s695
      %s717 = sphi 0, %s719
      %s720 = sphi 0, %s717
      %s721 = sphi 0, %s720
      %s737 = sphi 0, %s721
      %s741 = sphi 0, %s741
      %s743 = sphi 0, %s741
      %s744 = sphi 0, %s743
      %s758 = sphi 0, %s744
      %s762 = sphi 0, %s762
      %s764 = sphi 0, %s762
      %s765 = sphi 0, %s764
      %s779 = sphi 0, %s765
      %s783 = sphi 0, %s783
      %s785 = sphi 0, %s783
      %s786 = sphi 0, %s785
      %s800 = sphi 0, %s786
      %s804 = sphi 0, %s804
      %s806 = sphi 0, %s804
      %s807 = sphi 0, %s806
      %s821 = sphi 0, %s807
      %s827 = sphi 0, %s829
      %s830 = sphi 0, %s827
      %s831 = sphi 0, %s830
      %s847 = sphi 0, %s831
    $region4: #{tpu_custom_call.1} parent=1 // loop_header_branch
      %73 = sbr.rel (%p71) target = $region8
    $region5: #{tpu_custom_call.1} parent=1 // loop_body
      %s75 = ssub.s32 %s70, 1
      %s76 = ssub.s32 %s70, 2
      %s83 = sadd.s32 1, %s78
      %p84 = scmp.ge.s32.totalorder %s83, 2
      %s85 = scalar_select %p84, 0, %s83
      %s86 = sadd.s32 1, %s77
      %s87 = scalar_select %p84, %s86, %s77
      %p88 = scmp.ge.s32.totalorder %s87, 2
      %s89 = scalar_select %p88, 0, %s87
      %s90 = ssub.s32 %s77, %s89
      %p91 = scmp.eq.s32.totalorder %s90, 0
      %s93 = sadd.s32 %s92, 1
      %s94 = scalar_select %p91, %s92, %s93
      %p97 = pneg %p91
      %p98 = scmp.eq.s32.totalorder %s70, 3
      %p99 = por %p97, %p98
      %p100 = scmp.ne.s32.totalorder %s92, %s95
      %p101 = scmp.eq.s32.totalorder %s70, 0
      %p102 = por %p100, %p101
      %p103 = scmp.ne.s32.totalorder %s92, %s95
      %p104 = scmp.eq.s32.totalorder %s75, 3
      %p105 = por %p103, %p104
      %p106 = scmp.ne.s32.totalorder %s95, %s96
      %p107 = scmp.eq.s32.totalorder %s75, 0
      %p108 = por %p106, %p107
      %p109 = scmp.ne.s32.totalorder %s95, %s96
      %p110 = scmp.eq.s32.totalorder %s76, 3
      %p111 = por %p109, %p110
      %p113 = scmp.ne.s32.totalorder %s96, %s112
      %p114 = scmp.eq.s32.totalorder %s76, 0
      %p115 = por %p113, %p114
      %s117 = sadd.s32 %s116, 1
      %p120 = scmp.eq.s32.totalorder %s70, 3
      %p121 = scmp.ne.s32.totalorder %s116, %s118
      %p122 = scmp.eq.s32.totalorder %s70, 0
      %p123 = por %p121, %p122
      %p124 = scmp.ne.s32.totalorder %s116, %s118
      %p125 = scmp.eq.s32.totalorder %s75, 3
      %p126 = por %p124, %p125
      %p127 = scmp.ne.s32.totalorder %s118, %s119
      %p128 = scmp.eq.s32.totalorder %s75, 0
      %p129 = por %p127, %p128
      %p130 = scmp.ne.s32.totalorder %s118, %s119
      %p131 = scmp.eq.s32.totalorder %s76, 3
      %p132 = por %p130, %p131
      %p134 = scmp.ne.s32.totalorder %s119, %s133
      %p135 = scmp.eq.s32.totalorder %s76, 0
      %p136 = por %p134, %p135
      %s138 = sadd.s32 %s137, 1
      %p141 = scmp.eq.s32.totalorder %s70, 3
      %p142 = scmp.ne.s32.totalorder %s137, %s139
      %p143 = scmp.eq.s32.totalorder %s70, 0
      %p144 = por %p142, %p143
      %p145 = scmp.ne.s32.totalorder %s137, %s139
      %p146 = scmp.eq.s32.totalorder %s75, 3
      %p147 = por %p145, %p146
      %p148 = scmp.ne.s32.totalorder %s139, %s140
      %p149 = scmp.eq.s32.totalorder %s75, 0
      %p150 = por %p148, %p149
      %p151 = scmp.ne.s32.totalorder %s139, %s140
      %p152 = scmp.eq.s32.totalorder %s76, 3
      %p153 = por %p151, %p152
      %p155 = scmp.ne.s32.totalorder %s140, %s154
      %p156 = scmp.eq.s32.totalorder %s76, 0
      %p157 = por %p155, %p156
      %s159 = sadd.s32 %s158, 1
      %p162 = scmp.eq.s32.totalorder %s70, 3
      %p163 = scmp.ne.s32.totalorder %s158, %s160
      %p164 = scmp.eq.s32.totalorder %s70, 0
      %p165 = por %p163, %p164
      %p166 = scmp.ne.s32.totalorder %s158, %s160
      %p167 = scmp.eq.s32.totalorder %s75, 3
      %p168 = por %p166, %p167
      %p169 = scmp.ne.s32.totalorder %s160, %s161
      %p170 = scmp.eq.s32.totalorder %s75, 0
      %p171 = por %p169, %p170
      %p172 = scmp.ne.s32.totalorder %s160, %s161
      %p173 = scmp.eq.s32.totalorder %s76, 3
      %p174 = por %p172, %p173
      %p176 = scmp.ne.s32.totalorder %s161, %s175
      %p177 = scmp.eq.s32.totalorder %s76, 0
      %p178 = por %p176, %p177
      %s180 = sadd.s32 %s179, 1
      %p183 = scmp.eq.s32.totalorder %s70, 3
      %p184 = scmp.ne.s32.totalorder %s179, %s181
      %p185 = scmp.eq.s32.totalorder %s70, 0
      %p186 = por %p184, %p185
      %p187 = scmp.ne.s32.totalorder %s179, %s181
      %p188 = scmp.eq.s32.totalorder %s75, 3
      %p189 = por %p187, %p188
      %p190 = scmp.ne.s32.totalorder %s181, %s182
      %p191 = scmp.eq.s32.totalorder %s75, 0
      %p192 = por %p190, %p191
      %p193 = scmp.ne.s32.totalorder %s181, %s182
      %p194 = scmp.eq.s32.totalorder %s76, 3
      %p195 = por %p193, %p194
      %p197 = scmp.ne.s32.totalorder %s182, %s196
      %p198 = scmp.eq.s32.totalorder %s76, 0
      %p199 = por %p197, %p198
      %s201 = sadd.s32 %s200, 1
      %p204 = scmp.eq.s32.totalorder %s70, 3
      %p205 = scmp.ne.s32.totalorder %s200, %s202
      %p206 = scmp.eq.s32.totalorder %s70, 0
      %p207 = por %p205, %p206
      %p208 = scmp.ne.s32.totalorder %s200, %s202
      %p209 = scmp.eq.s32.totalorder %s75, 3
      %p210 = por %p208, %p209
      %p211 = scmp.ne.s32.totalorder %s202, %s203
      %p212 = scmp.eq.s32.totalorder %s75, 0
      %p213 = por %p211, %p212
      %p214 = scmp.ne.s32.totalorder %s202, %s203
      %p215 = scmp.eq.s32.totalorder %s76, 3
      %p216 = por %p214, %p215
      %p218 = scmp.ne.s32.totalorder %s203, %s217
      %p219 = scmp.eq.s32.totalorder %s76, 0
      %p220 = por %p218, %p219
      %s221 = ssub.s32 %s78, %s85
      %p222 = scmp.eq.s32.totalorder %s221, 0
      %s224 = sadd.s32 %s223, 1
      %s225 = scalar_select %p222, %s223, %s224
      %p228 = pneg %p222
      %p229 = scmp.eq.s32.totalorder %s70, 3
      %p230 = por %p228, %p229
      %p231 = scmp.ne.s32.totalorder %s223, %s226
      %p232 = scmp.eq.s32.totalorder %s70, 0
      %p233 = por %p231, %p232
      %p234 = scmp.ne.s32.totalorder %s223, %s226
      %p235 = scmp.eq.s32.totalorder %s75, 3
      %p236 = por %p234, %p235
      %p237 = scmp.ne.s32.totalorder %s226, %s227
      %p238 = scmp.eq.s32.totalorder %s75, 0
      %p239 = por %p237, %p238
      %p240 = scmp.ne.s32.totalorder %s226, %s227
      %p241 = scmp.eq.s32.totalorder %s76, 3
      %p242 = por %p240, %p241
      %p244 = scmp.ne.s32.totalorder %s227, %s243
      %p245 = scmp.eq.s32.totalorder %s76, 0
      %p246 = por %p244, %p245
      %s247 = ssub.s32 %s78, %s85
      %p248 = scmp.eq.s32.totalorder %s247, 0
      %s250 = sadd.s32 %s249, 1
      %s251 = scalar_select %p248, %s249, %s250
      %p254 = pneg %p248
      %p255 = scmp.eq.s32.totalorder %s70, 3
      %p256 = por %p254, %p255
      %p257 = scmp.ne.s32.totalorder %s249, %s252
      %p258 = scmp.eq.s32.totalorder %s70, 0
      %p259 = por %p257, %p258
      %p260 = scmp.ne.s32.totalorder %s249, %s252
      %p261 = scmp.eq.s32.totalorder %s75, 3
      %p262 = por %p260, %p261
      %p263 = scmp.ne.s32.totalorder %s252, %s253
      %p264 = scmp.eq.s32.totalorder %s75, 0
      %p265 = por %p263, %p264
      %p266 = scmp.ne.s32.totalorder %s252, %s253
      %p267 = scmp.eq.s32.totalorder %s76, 3
      %p268 = por %p266, %p267
      %p270 = scmp.ne.s32.totalorder %s253, %s269
      %p271 = scmp.eq.s32.totalorder %s76, 0
      %p272 = por %p270, %p271
      %s273 = ssub.s32 %s78, %s85
      %p274 = scmp.eq.s32.totalorder %s273, 0
      %s276 = sadd.s32 %s275, 1
      %s277 = scalar_select %p274, %s275, %s276
      %p280 = pneg %p274
      %p281 = scmp.eq.s32.totalorder %s70, 3
      %p282 = por %p280, %p281
      %p283 = scmp.ne.s32.totalorder %s275, %s278
      %p284 = scmp.eq.s32.totalorder %s70, 0
      %p285 = por %p283, %p284
      %p286 = scmp.ne.s32.totalorder %s275, %s278
      %p287 = scmp.eq.s32.totalorder %s75, 3
      %p288 = por %p286, %p287
      %p289 = scmp.ne.s32.totalorder %s278, %s279
      %p290 = scmp.eq.s32.totalorder %s75, 0
      %p291 = por %p289, %p290
      %p292 = scmp.ne.s32.totalorder %s278, %s279
      %p293 = scmp.eq.s32.totalorder %s76, 3
      %p294 = por %p292, %p293
      %p296 = scmp.ne.s32.totalorder %s279, %s295
      %p297 = scmp.eq.s32.totalorder %s76, 0
      %p298 = por %p296, %p297
      %s299 = ssub.s32 %s78, %s85
      %p300 = scmp.eq.s32.totalorder %s299, 0
      %s302 = sadd.s32 %s301, 1
      %s303 = scalar_select %p300, %s301, %s302
      %p306 = pneg %p300
      %p307 = scmp.eq.s32.totalorder %s70, 3
      %p308 = por %p306, %p307
      %p309 = scmp.ne.s32.totalorder %s301, %s304
      %p310 = scmp.eq.s32.totalorder %s70, 0
      %p311 = por %p309, %p310
      %p312 = scmp.ne.s32.totalorder %s301, %s304
      %p313 = scmp.eq.s32.totalorder %s75, 3
      %p314 = por %p312, %p313
      %p315 = scmp.ne.s32.totalorder %s304, %s305
      %p316 = scmp.eq.s32.totalorder %s75, 0
      %p317 = por %p315, %p316
      %p318 = scmp.ne.s32.totalorder %s304, %s305
      %p319 = scmp.eq.s32.totalorder %s76, 3
      %p320 = por %p318, %p319
      %p322 = scmp.ne.s32.totalorder %s305, %s321
      %p323 = scmp.eq.s32.totalorder %s76, 0
      %p324 = por %p322, %p323
      %s325 = ssub.s32 %s78, %s85
      %p326 = scmp.eq.s32.totalorder %s325, 0
      %s328 = sadd.s32 %s327, 1
      %s329 = scalar_select %p326, %s327, %s328
      %p332 = pneg %p326
      %p333 = scmp.eq.s32.totalorder %s70, 3
      %p334 = por %p332, %p333
      %p335 = scmp.ne.s32.totalorder %s327, %s330
      %p336 = scmp.eq.s32.totalorder %s70, 0
      %p337 = por %p335, %p336
      %p338 = scmp.ne.s32.totalorder %s327, %s330
      %p339 = scmp.eq.s32.totalorder %s75, 3
      %p340 = por %p338, %p339
      %p341 = scmp.ne.s32.totalorder %s330, %s331
      %p342 = scmp.eq.s32.totalorder %s75, 0
      %p343 = por %p341, %p342
      %p344 = scmp.ne.s32.totalorder %s330, %s331
      %p345 = scmp.eq.s32.totalorder %s76, 3
      %p346 = por %p344, %p345
      %p348 = scmp.ne.s32.totalorder %s331, %s347
      %p349 = scmp.eq.s32.totalorder %s76, 0
      %p350 = por %p348, %p349
      %s351 = ssub.s32 %s78, %s85
      %p352 = scmp.eq.s32.totalorder %s351, 0
      %s354 = sadd.s32 %s353, 1
      %s355 = scalar_select %p352, %s353, %s354
      %p358 = pneg %p352
      %p359 = scmp.eq.s32.totalorder %s70, 3
      %p360 = por %p358, %p359
      %p361 = scmp.ne.s32.totalorder %s353, %s356
      %p362 = scmp.eq.s32.totalorder %s70, 0
      %p363 = por %p361, %p362
      %p364 = scmp.ne.s32.totalorder %s353, %s356
      %p365 = scmp.eq.s32.totalorder %s75, 3
      %p366 = por %p364, %p365
      %p367 = scmp.ne.s32.totalorder %s356, %s357
      %p368 = scmp.eq.s32.totalorder %s75, 0
      %p369 = por %p367, %p368
      %p370 = scmp.ne.s32.totalorder %s356, %s357
      %p371 = scmp.eq.s32.totalorder %s76, 3
      %p372 = por %p370, %p371
      %p374 = scmp.ne.s32.totalorder %s357, %s373
      %p375 = scmp.eq.s32.totalorder %s76, 0
      %p376 = por %p374, %p375
      %s377 = ssub.s32 %s78, %s85
      %p378 = scmp.eq.s32.totalorder %s377, 0
      %s380 = sadd.s32 %s379, 1
      %s381 = scalar_select %p378, %s379, %s380
      %p384 = pneg %p378
      %p385 = scmp.eq.s32.totalorder %s70, 3
      %p386 = por %p384, %p385
      %p387 = scmp.ne.s32.totalorder %s379, %s382
      %p388 = scmp.eq.s32.totalorder %s70, 0
      %p389 = por %p387, %p388
      %p390 = scmp.ne.s32.totalorder %s379, %s382
      %p391 = scmp.eq.s32.totalorder %s75, 3
      %p392 = por %p390, %p391
      %p393 = scmp.ne.s32.totalorder %s382, %s383
      %p394 = scmp.eq.s32.totalorder %s75, 0
      %p395 = por %p393, %p394
      %p396 = scmp.ne.s32.totalorder %s382, %s383
      %p397 = scmp.eq.s32.totalorder %s76, 3
      %p398 = por %p396, %p397
      %p400 = scmp.ne.s32.totalorder %s383, %s399
      %p401 = scmp.eq.s32.totalorder %s76, 0
      %p402 = por %p400, %p401
      %s403 = ssub.s32 %s78, %s85
      %p404 = scmp.eq.s32.totalorder %s403, 0
      %s406 = sadd.s32 %s405, 1
      %s407 = scalar_select %p404, %s405, %s406
      %p410 = pneg %p404
      %p411 = scmp.eq.s32.totalorder %s70, 3
      %p412 = por %p410, %p411
      %p413 = scmp.ne.s32.totalorder %s405, %s408
      %p414 = scmp.eq.s32.totalorder %s70, 0
      %p415 = por %p413, %p414
      %p416 = scmp.ne.s32.totalorder %s405, %s408
      %p417 = scmp.eq.s32.totalorder %s75, 3
      %p418 = por %p416, %p417
      %p419 = scmp.ne.s32.totalorder %s408, %s409
      %p420 = scmp.eq.s32.totalorder %s75, 0
      %p421 = por %p419, %p420
      %p422 = scmp.ne.s32.totalorder %s408, %s409
      %p423 = scmp.eq.s32.totalorder %s76, 3
      %p424 = por %p422, %p423
      %p426 = scmp.ne.s32.totalorder %s409, %s425
      %p427 = scmp.eq.s32.totalorder %s76, 0
      %p428 = por %p426, %p427
      %s429 = ssub.s32 %s78, %s85
      %p430 = scmp.eq.s32.totalorder %s429, 0
      %s432 = sadd.s32 %s431, 1
      %s433 = scalar_select %p430, %s431, %s432
      %p436 = pneg %p430
      %p437 = scmp.eq.s32.totalorder %s70, 3
      %p438 = por %p436, %p437
      %p439 = scmp.ne.s32.totalorder %s431, %s434
      %p440 = scmp.eq.s32.totalorder %s70, 0
      %p441 = por %p439, %p440
      %p442 = scmp.ne.s32.totalorder %s431, %s434
      %p443 = scmp.eq.s32.totalorder %s75, 3
      %p444 = por %p442, %p443
      %p445 = scmp.ne.s32.totalorder %s434, %s435
      %p446 = scmp.eq.s32.totalorder %s75, 0
      %p447 = por %p445, %p446
      %p448 = scmp.ne.s32.totalorder %s434, %s435
      %p449 = scmp.eq.s32.totalorder %s76, 3
      %p450 = por %p448, %p449
      %p452 = scmp.ne.s32.totalorder %s435, %s451
      %p453 = scmp.eq.s32.totalorder %s76, 0
      %p454 = por %p452, %p453
      %s455 = ssub.s32 %s78, %s85
      %p456 = scmp.eq.s32.totalorder %s455, 0
      %s458 = sadd.s32 %s457, 1
      %s459 = scalar_select %p456, %s457, %s458
      %p462 = pneg %p456
      %p463 = scmp.eq.s32.totalorder %s70, 3
      %p464 = por %p462, %p463
      %p465 = scmp.ne.s32.totalorder %s457, %s460
      %p466 = scmp.eq.s32.totalorder %s70, 0
      %p467 = por %p465, %p466
      %p468 = scmp.ne.s32.totalorder %s457, %s460
      %p469 = scmp.eq.s32.totalorder %s75, 3
      %p470 = por %p468, %p469
      %p471 = scmp.ne.s32.totalorder %s460, %s461
      %p472 = scmp.eq.s32.totalorder %s75, 0
      %p473 = por %p471, %p472
      %p474 = scmp.ne.s32.totalorder %s460, %s461
      %p475 = scmp.eq.s32.totalorder %s76, 3
      %p476 = por %p474, %p475
      %p478 = scmp.ne.s32.totalorder %s461, %s477
      %p479 = scmp.eq.s32.totalorder %s76, 0
      %p480 = por %p478, %p479
      %s481 = ssub.s32 %s78, %s85
      %p482 = scmp.eq.s32.totalorder %s481, 0
      %s484 = sadd.s32 %s483, 1
      %s485 = scalar_select %p482, %s483, %s484
      %p488 = pneg %p482
      %p489 = scmp.eq.s32.totalorder %s70, 3
      %p490 = por %p488, %p489
      %p491 = scmp.ne.s32.totalorder %s483, %s486
      %p492 = scmp.eq.s32.totalorder %s70, 0
      %p493 = por %p491, %p492
      %p494 = scmp.ne.s32.totalorder %s483, %s486
      %p495 = scmp.eq.s32.totalorder %s75, 3
      %p496 = por %p494, %p495
      %p497 = scmp.ne.s32.totalorder %s486, %s487
      %p498 = scmp.eq.s32.totalorder %s75, 0
      %p499 = por %p497, %p498
      %p500 = scmp.ne.s32.totalorder %s486, %s487
      %p501 = scmp.eq.s32.totalorder %s76, 3
      %p502 = por %p500, %p501
      %p504 = scmp.ne.s32.totalorder %s487, %s503
      %p505 = scmp.eq.s32.totalorder %s76, 0
      %p506 = por %p504, %p505
      %s507 = ssub.s32 %s78, %s85
      %p508 = scmp.eq.s32.totalorder %s507, 0
      %s510 = sadd.s32 %s509, 1
      %s511 = scalar_select %p508, %s509, %s510
      %p514 = pneg %p508
      %p515 = scmp.eq.s32.totalorder %s70, 3
      %p516 = por %p514, %p515
      %p517 = scmp.ne.s32.totalorder %s509, %s512
      %p518 = scmp.eq.s32.totalorder %s70, 0
      %p519 = por %p517, %p518
      %p520 = scmp.ne.s32.totalorder %s509, %s512
      %p521 = scmp.eq.s32.totalorder %s75, 3
      %p522 = por %p520, %p521
      %p523 = scmp.ne.s32.totalorder %s512, %s513
      %p524 = scmp.eq.s32.totalorder %s75, 0
      %p525 = por %p523, %p524
      %p526 = scmp.ne.s32.totalorder %s512, %s513
      %p527 = scmp.eq.s32.totalorder %s76, 3
      %p528 = por %p526, %p527
      %p530 = scmp.ne.s32.totalorder %s513, %s529
      %p531 = scmp.eq.s32.totalorder %s76, 0
      %p532 = por %p530, %p531
      %s533 = ssub.s32 %s78, %s85
      %p534 = scmp.eq.s32.totalorder %s533, 0
      %s536 = sadd.s32 %s535, 1
      %s537 = scalar_select %p534, %s535, %s536
      %p540 = pneg %p534
      %p541 = scmp.eq.s32.totalorder %s70, 3
      %p542 = por %p540, %p541
      %p543 = scmp.ne.s32.totalorder %s535, %s538
      %p544 = scmp.eq.s32.totalorder %s70, 0
      %p545 = por %p543, %p544
      %p546 = scmp.ne.s32.totalorder %s535, %s538
      %p547 = scmp.eq.s32.totalorder %s75, 3
      %p548 = por %p546, %p547
      %p549 = scmp.ne.s32.totalorder %s538, %s539
      %p550 = scmp.eq.s32.totalorder %s75, 0
      %p551 = por %p549, %p550
      %p552 = scmp.ne.s32.totalorder %s538, %s539
      %p553 = scmp.eq.s32.totalorder %s76, 3
      %p554 = por %p552, %p553
      %p556 = scmp.ne.s32.totalorder %s539, %s555
      %p557 = scmp.eq.s32.totalorder %s76, 0
      %p558 = por %p556, %p557
      %s559 = ssub.s32 %s78, %s85
      %p560 = scmp.eq.s32.totalorder %s559, 0
      %s562 = sadd.s32 %s561, 1
      %s563 = scalar_select %p560, %s561, %s562
      %p566 = pneg %p560
      %p567 = scmp.eq.s32.totalorder %s70, 3
      %p568 = por %p566, %p567
      %p569 = scmp.ne.s32.totalorder %s561, %s564
      %p570 = scmp.eq.s32.totalorder %s70, 0
      %p571 = por %p569, %p570
      %p572 = scmp.ne.s32.totalorder %s561, %s564
      %p573 = scmp.eq.s32.totalorder %s75, 3
      %p574 = por %p572, %p573
      %p575 = scmp.ne.s32.totalorder %s564, %s565
      %p576 = scmp.eq.s32.totalorder %s75, 0
      %p577 = por %p575, %p576
      %p578 = scmp.ne.s32.totalorder %s564, %s565
      %p579 = scmp.eq.s32.totalorder %s76, 3
      %p580 = por %p578, %p579
      %p582 = scmp.ne.s32.totalorder %s565, %s581
      %p583 = scmp.eq.s32.totalorder %s76, 0
      %p584 = por %p582, %p583
      %s585 = ssub.s32 %s78, %s85
      %p586 = scmp.eq.s32.totalorder %s585, 0
      %s588 = sadd.s32 %s587, 1
      %s589 = scalar_select %p586, %s587, %s588
      %p592 = pneg %p586
      %p593 = scmp.eq.s32.totalorder %s70, 3
      %p594 = por %p592, %p593
      %p595 = scmp.ne.s32.totalorder %s587, %s590
      %p596 = scmp.eq.s32.totalorder %s70, 0
      %p597 = por %p595, %p596
      %p598 = scmp.ne.s32.totalorder %s587, %s590
      %p599 = scmp.eq.s32.totalorder %s75, 3
      %p600 = por %p598, %p599
      %p601 = scmp.ne.s32.totalorder %s590, %s591
      %p602 = scmp.eq.s32.totalorder %s75, 0
      %p603 = por %p601, %p602
      %p604 = scmp.ne.s32.totalorder %s590, %s591
      %p605 = scmp.eq.s32.totalorder %s76, 3
      %p606 = por %p604, %p605
      %p608 = scmp.ne.s32.totalorder %s591, %s607
      %p609 = scmp.eq.s32.totalorder %s76, 0
      %p610 = por %p608, %p609
      %s611 = ssub.s32 %s78, %s85
      %p612 = scmp.eq.s32.totalorder %s611, 0
      %s614 = sadd.s32 %s613, 1
      %s615 = scalar_select %p612, %s613, %s614
      %p618 = pneg %p612
      %p619 = scmp.eq.s32.totalorder %s70, 3
      %p620 = por %p618, %p619
      %p621 = scmp.ne.s32.totalorder %s613, %s616
      %p622 = scmp.eq.s32.totalorder %s70, 0
      %p623 = por %p621, %p622
      %p624 = scmp.ne.s32.totalorder %s613, %s616
      %p625 = scmp.eq.s32.totalorder %s75, 3
      %p626 = por %p624, %p625
      %p627 = scmp.ne.s32.totalorder %s616, %s617
      %p628 = scmp.eq.s32.totalorder %s75, 0
      %p629 = por %p627, %p628
      %p630 = scmp.ne.s32.totalorder %s616, %s617
      %p631 = scmp.eq.s32.totalorder %s76, 3
      %p632 = por %p630, %p631
      %p634 = scmp.ne.s32.totalorder %s617, %s633
      %p635 = scmp.eq.s32.totalorder %s76, 0
      %p636 = por %p634, %p635
      %s637 = ssub.s32 %s78, %s85
      %p638 = scmp.eq.s32.totalorder %s637, 0
      %s640 = sadd.s32 %s639, 1
      %s641 = scalar_select %p638, %s639, %s640
      %p644 = pneg %p638
      %p645 = scmp.eq.s32.totalorder %s70, 3
      %p646 = por %p644, %p645
      %p647 = scmp.ne.s32.totalorder %s639, %s642
      %p648 = scmp.eq.s32.totalorder %s70, 0
      %p649 = por %p647, %p648
      %p650 = scmp.ne.s32.totalorder %s639, %s642
      %p651 = scmp.eq.s32.totalorder %s75, 3
      %p652 = por %p650, %p651
      %p653 = scmp.ne.s32.totalorder %s642, %s643
      %p654 = scmp.eq.s32.totalorder %s75, 0
      %p655 = por %p653, %p654
      %p656 = scmp.ne.s32.totalorder %s642, %s643
      %p657 = scmp.eq.s32.totalorder %s76, 3
      %p658 = por %p656, %p657
      %p660 = scmp.ne.s32.totalorder %s643, %s659
      %p661 = scmp.eq.s32.totalorder %s76, 0
      %p662 = por %p660, %p661
      %s663 = ssub.s32 %s78, %s85
      %p664 = scmp.eq.s32.totalorder %s663, 0
      %s666 = sadd.s32 %s665, 1
      %s667 = scalar_select %p664, %s665, %s666
      %p670 = pneg %p664
      %p671 = scmp.eq.s32.totalorder %s70, 3
      %p672 = por %p670, %p671
      %p673 = scmp.ne.s32.totalorder %s665, %s668
      %p674 = scmp.eq.s32.totalorder %s70, 0
      %p675 = por %p673, %p674
      %p676 = scmp.ne.s32.totalorder %s665, %s668
      %p677 = scmp.eq.s32.totalorder %s75, 3
      %p678 = por %p676, %p677
      %p679 = scmp.ne.s32.totalorder %s668, %s669
      %p680 = scmp.eq.s32.totalorder %s75, 0
      %p681 = por %p679, %p680
      %p682 = scmp.ne.s32.totalorder %s668, %s669
      %p683 = scmp.eq.s32.totalorder %s76, 3
      %p684 = por %p682, %p683
      %p686 = scmp.ne.s32.totalorder %s669, %s685
      %p687 = scmp.eq.s32.totalorder %s76, 0
      %p688 = por %p686, %p687
      %s689 = ssub.s32 %s78, %s85
      %p690 = scmp.eq.s32.totalorder %s689, 0
      %s692 = sadd.s32 %s691, 1
      %s693 = scalar_select %p690, %s691, %s692
      %p696 = pneg %p690
      %p697 = scmp.eq.s32.totalorder %s70, 3
      %p698 = por %p696, %p697
      %p699 = scmp.ne.s32.totalorder %s691, %s694
      %p700 = scmp.eq.s32.totalorder %s70, 0
      %p701 = por %p699, %p700
      %p702 = scmp.ne.s32.totalorder %s691, %s694
      %p703 = scmp.eq.s32.totalorder %s75, 3
      %p704 = por %p702, %p703
      %p705 = scmp.ne.s32.totalorder %s694, %s695
      %p706 = scmp.eq.s32.totalorder %s75, 0
      %p707 = por %p705, %p706
      %p708 = scmp.ne.s32.totalorder %s694, %s695
      %p709 = scmp.eq.s32.totalorder %s76, 3
      %p710 = por %p708, %p709
      %p712 = scmp.ne.s32.totalorder %s695, %s711
      %p713 = scmp.eq.s32.totalorder %s76, 0
      %p714 = por %p712, %p713
      %s715 = ssub.s32 %s78, %s85
      %p716 = scmp.eq.s32.totalorder %s715, 0
      %s718 = sadd.s32 %s717, 1
      %s719 = scalar_select %p716, %s717, %s718
      %p722 = pneg %p716
      %p723 = scmp.eq.s32.totalorder %s70, 3
      %p724 = por %p722, %p723
      %p725 = scmp.ne.s32.totalorder %s717, %s720
      %p726 = scmp.eq.s32.totalorder %s70, 0
      %p727 = por %p725, %p726
      %p728 = scmp.ne.s32.totalorder %s717, %s720
      %p729 = scmp.eq.s32.totalorder %s75, 3
      %p730 = por %p728, %p729
      %p731 = scmp.ne.s32.totalorder %s720, %s721
      %p732 = scmp.eq.s32.totalorder %s75, 0
      %p733 = por %p731, %p732
      %p734 = scmp.ne.s32.totalorder %s720, %s721
      %p735 = scmp.eq.s32.totalorder %s76, 3
      %p736 = por %p734, %p735
      %p738 = scmp.ne.s32.totalorder %s721, %s737
      %p739 = scmp.eq.s32.totalorder %s76, 0
      %p740 = por %p738, %p739
      %s742 = sadd.s32 %s741, 1
      %p745 = scmp.eq.s32.totalorder %s70, 3
      %p746 = scmp.ne.s32.totalorder %s741, %s743
      %p747 = scmp.eq.s32.totalorder %s70, 0
      %p748 = por %p746, %p747
      %p749 = scmp.ne.s32.totalorder %s741, %s743
      %p750 = scmp.eq.s32.totalorder %s75, 3
      %p751 = por %p749, %p750
      %p752 = scmp.ne.s32.totalorder %s743, %s744
      %p753 = scmp.eq.s32.totalorder %s75, 0
      %p754 = por %p752, %p753
      %p755 = scmp.ne.s32.totalorder %s743, %s744
      %p756 = scmp.eq.s32.totalorder %s76, 3
      %p757 = por %p755, %p756
      %p759 = scmp.ne.s32.totalorder %s744, %s758
      %p760 = scmp.eq.s32.totalorder %s76, 0
      %p761 = por %p759, %p760
      %s763 = sadd.s32 %s762, 1
      %p766 = scmp.eq.s32.totalorder %s70, 3
      %p767 = scmp.ne.s32.totalorder %s762, %s764
      %p768 = scmp.eq.s32.totalorder %s70, 0
      %p769 = por %p767, %p768
      %p770 = scmp.ne.s32.totalorder %s762, %s764
      %p771 = scmp.eq.s32.totalorder %s75, 3
      %p772 = por %p770, %p771
      %p773 = scmp.ne.s32.totalorder %s764, %s765
      %p774 = scmp.eq.s32.totalorder %s75, 0
      %p775 = por %p773, %p774
      %p776 = scmp.ne.s32.totalorder %s764, %s765
      %p777 = scmp.eq.s32.totalorder %s76, 3
      %p778 = por %p776, %p777
      %p780 = scmp.ne.s32.totalorder %s765, %s779
      %p781 = scmp.eq.s32.totalorder %s76, 0
      %p782 = por %p780, %p781
      %s784 = sadd.s32 %s783, 1
      %p787 = scmp.eq.s32.totalorder %s70, 3
      %p788 = scmp.ne.s32.totalorder %s783, %s785
      %p789 = scmp.eq.s32.totalorder %s70, 0
      %p790 = por %p788, %p789
      %p791 = scmp.ne.s32.totalorder %s783, %s785
      %p792 = scmp.eq.s32.totalorder %s75, 3
      %p793 = por %p791, %p792
      %p794 = scmp.ne.s32.totalorder %s785, %s786
      %p795 = scmp.eq.s32.totalorder %s75, 0
      %p796 = por %p794, %p795
      %p797 = scmp.ne.s32.totalorder %s785, %s786
      %p798 = scmp.eq.s32.totalorder %s76, 3
      %p799 = por %p797, %p798
      %p801 = scmp.ne.s32.totalorder %s786, %s800
      %p802 = scmp.eq.s32.totalorder %s76, 0
      %p803 = por %p801, %p802
      %s805 = sadd.s32 %s804, 1
      %p808 = scmp.eq.s32.totalorder %s70, 3
      %p809 = scmp.ne.s32.totalorder %s804, %s806
      %p810 = scmp.eq.s32.totalorder %s70, 0
      %p811 = por %p809, %p810
      %p812 = scmp.ne.s32.totalorder %s804, %s806
      %p813 = scmp.eq.s32.totalorder %s75, 3
      %p814 = por %p812, %p813
      %p815 = scmp.ne.s32.totalorder %s806, %s807
      %p816 = scmp.eq.s32.totalorder %s75, 0
      %p817 = por %p815, %p816
      %p818 = scmp.ne.s32.totalorder %s806, %s807
      %p819 = scmp.eq.s32.totalorder %s76, 3
      %p820 = por %p818, %p819
      %p822 = scmp.ne.s32.totalorder %s807, %s821
      %p823 = scmp.eq.s32.totalorder %s76, 0
      %p824 = por %p822, %p823
      %s825 = ssub.s32 %s77, %s89
      %p826 = scmp.eq.s32.totalorder %s825, 0
      %s828 = sadd.s32 %s827, 1
      %s829 = scalar_select %p826, %s827, %s828
      %p832 = pneg %p826
      %p833 = scmp.eq.s32.totalorder %s70, 3
      %p834 = por %p832, %p833
      %p835 = scmp.ne.s32.totalorder %s827, %s830
      %p836 = scmp.eq.s32.totalorder %s70, 0
      %p837 = por %p835, %p836
      %p838 = scmp.ne.s32.totalorder %s827, %s830
      %p839 = scmp.eq.s32.totalorder %s75, 3
      %p840 = por %p838, %p839
      %p841 = scmp.ne.s32.totalorder %s830, %s831
      %p842 = scmp.eq.s32.totalorder %s75, 0
      %p843 = por %p841, %p842
      %p844 = scmp.ne.s32.totalorder %s830, %s831
      %p845 = scmp.eq.s32.totalorder %s76, 3
      %p846 = por %p844, %p845
      %p848 = scmp.ne.s32.totalorder %s831, %s847
      %p849 = scmp.eq.s32.totalorder %s76, 0
      %p850 = por %p848, %p849
      %p851 = scmp.le.s32.totalorder 1, %s70
      %p852 = scmp.lt.s32.totalorder %s70, 5
      %p853 = pnand %p851, %p852
      %p854 = pneg %p853
      // Predicated region
      $region9: #{tpu_custom_call.1} parent=5 // pred_check
        _
      $region10: #{tpu_custom_call.1} parent=5 // pred_check_branch
        %856 = sbr.rel (%p853) target = $region12
      $region11: #{tpu_custom_call.1} parent=5 // pred_region
        %s857 = ssub.s32 %s70, 1
        // Predicated region
        $region13: #{tpu_custom_call.1} parent=11 // pred_check
          %p858 = pneg %p129
        $region14: #{tpu_custom_call.1} parent=11 // pred_check_branch
          %860 = sbr.rel (%p858) target = $region16
        $region15: #{tpu_custom_call.1} parent=11 // pred_region
          _
        $region16: #{tpu_custom_call.1} parent=11 // pred_fallthru
          _
        // Predicated region
        $region17: #{tpu_custom_call.1} parent=11 // pred_check
          %p861 = pneg %p150
        $region18: #{tpu_custom_call.1} parent=11 // pred_check_branch
          %863 = sbr.rel (%p861) target = $region20
        $region19: #{tpu_custom_call.1} parent=11 // pred_region
          _
        $region20: #{tpu_custom_call.1} parent=11 // pred_fallthru
          _
        // Predicated region
        $region21: #{tpu_custom_call.1} parent=11 // pred_check
          %p864 = pneg %p171
        $region22: #{tpu_custom_call.1} parent=11 // pred_check_branch
          %866 = sbr.rel (%p864) target = $region24
        $region23: #{tpu_custom_call.1} parent=11 // pred_region
          _
        $region24: #{tpu_custom_call.1} parent=11 // pred_fallthru
          _
        // Predicated region
        $region25: #{tpu_custom_call.1} parent=11 // pred_check
          %p867 = pneg %p192
        $region26: #{tpu_custom_call.1} parent=11 // pred_check_branch
          %869 = sbr.rel (%p867) target = $region28
        $region27: #{tpu_custom_call.1} parent=11 // pred_region
          _
        $region28: #{tpu_custom_call.1} parent=11 // pred_fallthru
          _
        // Predicated region
        $region29: #{tpu_custom_call.1} parent=11 // pred_check
          %p870 = pneg %p213
        $region30: #{tpu_custom_call.1} parent=11 // pred_check_branch
          %872 = sbr.rel (%p870) target = $region32
        $region31: #{tpu_custom_call.1} parent=11 // pred_region
          _
        $region32: #{tpu_custom_call.1} parent=11 // pred_fallthru
          _
        // Predicated region
        $region33: #{tpu_custom_call.1} parent=11 // pred_check
          %p873 = pneg %p754
        $region34: #{tpu_custom_call.1} parent=11 // pred_check_branch
          %875 = sbr.rel (%p873) target = $region36
        $region35: #{tpu_custom_call.1} parent=11 // pred_region
          _
        $region36: #{tpu_custom_call.1} parent=11 // pred_fallthru
          _
        // Predicated region
        $region37: #{tpu_custom_call.1} parent=11 // pred_check
          %p876 = pneg %p775
        $region38: #{tpu_custom_call.1} parent=11 // pred_check_branch
          %878 = sbr.rel (%p876) target = $region40
        $region39: #{tpu_custom_call.1} parent=11 // pred_region
          _
        $region40: #{tpu_custom_call.1} parent=11 // pred_fallthru
          _
        // Predicated region
        $region41: #{tpu_custom_call.1} parent=11 // pred_check
          %p879 = pneg %p796
        $region42: #{tpu_custom_call.1} parent=11 // pred_check_branch
          %881 = sbr.rel (%p879) target = $region44
        $region43: #{tpu_custom_call.1} parent=11 // pred_region
          _
        $region44: #{tpu_custom_call.1} parent=11 // pred_fallthru
          _
        // Predicated region
        $region45: #{tpu_custom_call.1} parent=11 // pred_check
          %p882 = pneg %p817
        $region46: #{tpu_custom_call.1} parent=11 // pred_check_branch
          %884 = sbr.rel (%p882) target = $region48
        $region47: #{tpu_custom_call.1} parent=11 // pred_region
          _
        $region48: #{tpu_custom_call.1} parent=11 // pred_fallthru
          _
      $region12: #{tpu_custom_call.1} parent=5 // pred_fallthru
        _
      %p885 = scmp.lt.s32.totalorder %s70, 4
      // Predicated region
      $region49: #{tpu_custom_call.1} parent=5 // pred_check
        %p886 = pneg %p885
      $region50: #{tpu_custom_call.1} parent=5 // pred_check_branch
        %888 = sbr.rel (%p886) target = $region52
      $region51: #{tpu_custom_call.1} parent=5 // pred_region
        // Predicated region
        $region53: #{tpu_custom_call.1} parent=51 // pred_check
          %p889 = pneg %p102
        $region54: #{tpu_custom_call.1} parent=51 // pred_check_branch
          %891 = sbr.rel (%p889) target = $region56
        $region55: #{tpu_custom_call.1} parent=51 // pred_region
          %p892 = scmp.lt.s32.totalorder %s77, 1
          %s893 = scalar_select %p892, %s77, 1
          %s894 = smul.addr %s893, 2
          %s895 = smul.addr %s894, 2
          %s896 = scalar_lea.vmem %s1, %s895
        $region56: #{tpu_custom_call.1} parent=51 // pred_fallthru
          _
        // Predicated region
        $region57: #{tpu_custom_call.1} parent=51 // pred_check
          %p897 = pneg %p233
        $region58: #{tpu_custom_call.1} parent=51 // pred_check_branch
          %899 = sbr.rel (%p897) target = $region60
        $region59: #{tpu_custom_call.1} parent=51 // pred_region
          %p900 = scmp.lt.s32.totalorder %s78, 1
          %s901 = scalar_select %p900, %s78, 1
          %s902 = scalar_lea.vmem %s13, %s901
        $region60: #{tpu_custom_call.1} parent=51 // pred_fallthru
          _
        // Predicated region
        $region61: #{tpu_custom_call.1} parent=51 // pred_check
          %p903 = pneg %p259
        $region62: #{tpu_custom_call.1} parent=51 // pred_check_branch
          %905 = sbr.rel (%p903) target = $region64
        $region63: #{tpu_custom_call.1} parent=51 // pred_region
          %p906 = scmp.lt.s32.totalorder %s78, 1
          %s907 = scalar_select %p906, %s78, 1
          %s908 = scalar_lea.vmem %s15, %s907
        $region64: #{tpu_custom_call.1} parent=51 // pred_fallthru
          _
        // Predicated region
        $region65: #{tpu_custom_call.1} parent=51 // pred_check
          %p909 = pneg %p285
        $region66: #{tpu_custom_call.1} parent=51 // pred_check_branch
          %911 = sbr.rel (%p909) target = $region68
        $region67: #{tpu_custom_call.1} parent=51 // pred_region
          %p912 = scmp.lt.s32.totalorder %s78, 1
          %s913 = scalar_select %p912, %s78, 1
          %s914 = smul.addr %s913, 4
          %s915 = smul.addr %s914, 4
          %s916 = scalar_lea.vmem %s17, %s915
        $region68: #{tpu_custom_call.1} parent=51 // pred_fallthru
          _
        // Predicated region
        $region69: #{tpu_custom_call.1} parent=51 // pred_check
          %p917 = pneg %p311
        $region70: #{tpu_custom_call.1} parent=51 // pred_check_branch
          %919 = sbr.rel (%p917) target = $region72
        $region71: #{tpu_custom_call.1} parent=51 // pred_region
          %p920 = scmp.lt.s32.totalorder %s78, 1
          %s921 = scalar_select %p920, %s78, 1
          %s922 = scalar_lea.vmem %s19, %s921
        $region72: #{tpu_custom_call.1} parent=51 // pred_fallthru
          _
        // Predicated region
        $region73: #{tpu_custom_call.1} parent=51 // pred_check
          %p923 = pneg %p337
        $region74: #{tpu_custom_call.1} parent=51 // pred_check_branch
          %925 = sbr.rel (%p923) target = $region76
        $region75: #{tpu_custom_call.1} parent=51 // pred_region
          %p926 = scmp.lt.s32.totalorder %s78, 1
          %s927 = scalar_select %p926, %s78, 1
          %s928 = smul.addr %s927, 4
          %s929 = smul.addr %s928, 4
          %s930 = scalar_lea.vmem %s21, %s929
        $region76: #{tpu_custom_call.1} parent=51 // pred_fallthru
          _
        // Predicated region
        $region77: #{tpu_custom_call.1} parent=51 // pred_check
          %p931 = pneg %p363
        $region78: #{tpu_custom_call.1} parent=51 // pred_check_branch
          %933 = sbr.rel (%p931) target = $region80
        $region79: #{tpu_custom_call.1} parent=51 // pred_region
          %p934 = scmp.lt.s32.totalorder %s78, 1
          %s935 = scalar_select %p934, %s78, 1
          %s936 = scalar_lea.vmem %s23, %s935
        $region80: #{tpu_custom_call.1} parent=51 // pred_fallthru
          _
        // Predicated region
        $region81: #{tpu_custom_call.1} parent=51 // pred_check
          %p937 = pneg %p389
        $region82: #{tpu_custom_call.1} parent=51 // pred_check_branch
          %939 = sbr.rel (%p937) target = $region84
        $region83: #{tpu_custom_call.1} parent=51 // pred_region
          %p940 = scmp.lt.s32.totalorder %s78, 1
          %s941 = scalar_select %p940, %s78, 1
          %s942 = scalar_lea.vmem %s25, %s941
        $region84: #{tpu_custom_call.1} parent=51 // pred_fallthru
          _
        // Predicated region
        $region85: #{tpu_custom_call.1} parent=51 // pred_check
          %p943 = pneg %p415
        $region86: #{tpu_custom_call.1} parent=51 // pred_check_branch
          %945 = sbr.rel (%p943) target = $region88
        $region87: #{tpu_custom_call.1} parent=51 // pred_region
          %p946 = scmp.lt.s32.totalorder %s78, 1
          %s947 = scalar_select %p946, %s78, 1
          %s948 = scalar_lea.vmem %s27, %s947
        $region88: #{tpu_custom_call.1} parent=51 // pred_fallthru
          _
        // Predicated region
        $region89: #{tpu_custom_call.1} parent=51 // pred_check
          %p949 = pneg %p441
        $region90: #{tpu_custom_call.1} parent=51 // pred_check_branch
          %951 = sbr.rel (%p949) target = $region92
        $region91: #{tpu_custom_call.1} parent=51 // pred_region
          %p952 = scmp.lt.s32.totalorder %s78, 1
          %s953 = scalar_select %p952, %s78, 1
          %s954 = smul.addr %s953, 4
          %s955 = smul.addr %s954, 4
          %s956 = scalar_lea.vmem %s29, %s955
        $region92: #{tpu_custom_call.1} parent=51 // pred_fallthru
          _
        // Predicated region
        $region93: #{tpu_custom_call.1} parent=51 // pred_check
          %p957 = pneg %p467
        $region94: #{tpu_custom_call.1} parent=51 // pred_check_branch
          %959 = sbr.rel (%p957) target = $region96
        $region95: #{tpu_custom_call.1} parent=51 // pred_region
          %p960 = scmp.lt.s32.totalorder %s78, 1
          %s961 = scalar_select %p960, %s78, 1
          %s962 = scalar_lea.vmem %s31, %s961
        $region96: #{tpu_custom_call.1} parent=51 // pred_fallthru
          _
        // Predicated region
        $region97: #{tpu_custom_call.1} parent=51 // pred_check
          %p963 = pneg %p493
        $region98: #{tpu_custom_call.1} parent=51 // pred_check_branch
          %965 = sbr.rel (%p963) target = $region100
        $region99: #{tpu_custom_call.1} parent=51 // pred_region
          %p966 = scmp.lt.s32.totalorder %s78, 1
          %s967 = scalar_select %p966, %s78, 1
          %s968 = smul.addr %s967, 16
          %s969 = smul.addr %s968, 4
          %s970 = scalar_lea.vmem %s33, %s969
        $region100: #{tpu_custom_call.1} parent=51 // pred_fallthru
          _
        // Predicated region
        $region101: #{tpu_custom_call.1} parent=51 // pred_check
          %p971 = pneg %p519
        $region102: #{tpu_custom_call.1} parent=51 // pred_check_branch
          %973 = sbr.rel (%p971) target = $region104
        $region103: #{tpu_custom_call.1} parent=51 // pred_region
          %p974 = scmp.lt.s32.totalorder %s78, 1
          %s975 = scalar_select %p974, %s78, 1
          %s976 = scalar_lea.vmem %s35, %s975
        $region104: #{tpu_custom_call.1} parent=51 // pred_fallthru
          _
        // Predicated region
        $region105: #{tpu_custom_call.1} parent=51 // pred_check
          %p977 = pneg %p545
        $region106: #{tpu_custom_call.1} parent=51 // pred_check_branch
          %979 = sbr.rel (%p977) target = $region108
        $region107: #{tpu_custom_call.1} parent=51 // pred_region
          %p980 = scmp.lt.s32.totalorder %s78, 1
          %s981 = scalar_select %p980, %s78, 1
          %s982 = smul.addr %s981, 4
          %s983 = smul.addr %s982, 4
          %s984 = scalar_lea.vmem %s37, %s983
        $region108: #{tpu_custom_call.1} parent=51 // pred_fallthru
          _
        // Predicated region
        $region109: #{tpu_custom_call.1} parent=51 // pred_check
          %p985 = pneg %p571
        $region110: #{tpu_custom_call.1} parent=51 // pred_check_branch
          %987 = sbr.rel (%p985) target = $region112
        $region111: #{tpu_custom_call.1} parent=51 // pred_region
          %p988 = scmp.lt.s32.totalorder %s78, 1
          %s989 = scalar_select %p988, %s78, 1
          %s990 = scalar_lea.vmem %s39, %s989
        $region112: #{tpu_custom_call.1} parent=51 // pred_fallthru
          _
        // Predicated region
        $region113: #{tpu_custom_call.1} parent=51 // pred_check
          %p991 = pneg %p597
        $region114: #{tpu_custom_call.1} parent=51 // pred_check_branch
          %993 = sbr.rel (%p991) target = $region116
        $region115: #{tpu_custom_call.1} parent=51 // pred_region
          %p994 = scmp.lt.s32.totalorder %s78, 1
          %s995 = scalar_select %p994, %s78, 1
          %s996 = smul.addr %s995, 4
          %s997 = scalar_lea.vmem %s41, %s996
        $region116: #{tpu_custom_call.1} parent=51 // pred_fallthru
          _
        // Predicated region
        $region117: #{tpu_custom_call.1} parent=51 // pred_check
          %p998 = pneg %p623
        $region118: #{tpu_custom_call.1} parent=51 // pred_check_branch
          %1000 = sbr.rel (%p998) target = $region120
        $region119: #{tpu_custom_call.1} parent=51 // pred_region
          %p1001 = scmp.lt.s32.totalorder %s78, 1
          %s1002 = scalar_select %p1001, %s78, 1
          %s1003 = scalar_lea.vmem %s43, %s1002
        $region120: #{tpu_custom_call.1} parent=51 // pred_fallthru
          _
        // Predicated region
        $region121: #{tpu_custom_call.1} parent=51 // pred_check
          %p1004 = pneg %p649
        $region122: #{tpu_custom_call.1} parent=51 // pred_check_branch
          %1006 = sbr.rel (%p1004) target = $region124
        $region123: #{tpu_custom_call.1} parent=51 // pred_region
          %p1007 = scmp.lt.s32.totalorder %s78, 1
          %s1008 = scalar_select %p1007, %s78, 1
          %s1009 = smul.addr %s1008, 4
          %s1010 = smul.addr %s1009, 4
          %s1011 = scalar_lea.vmem %s45, %s1010
        $region124: #{tpu_custom_call.1} parent=51 // pred_fallthru
          _
        // Predicated region
        $region125: #{tpu_custom_call.1} parent=51 // pred_check
          %p1012 = pneg %p675
        $region126: #{tpu_custom_call.1} parent=51 // pred_check_branch
          %1014 = sbr.rel (%p1012) target = $region128
        $region127: #{tpu_custom_call.1} parent=51 // pred_region
          %p1015 = scmp.lt.s32.totalorder %s78, 1
          %s1016 = scalar_select %p1015, %s78, 1
          %s1017 = scalar_lea.vmem %s47, %s1016
        $region128: #{tpu_custom_call.1} parent=51 // pred_fallthru
          _
        // Predicated region
        $region129: #{tpu_custom_call.1} parent=51 // pred_check
          %p1018 = pneg %p701
        $region130: #{tpu_custom_call.1} parent=51 // pred_check_branch
          %1020 = sbr.rel (%p1018) target = $region132
        $region131: #{tpu_custom_call.1} parent=51 // pred_region
          %p1021 = scmp.lt.s32.totalorder %s78, 1
          %s1022 = scalar_select %p1021, %s78, 1
          %s1023 = smul.addr %s1022, 4
          %s1024 = scalar_lea.vmem %s49, %s1023
        $region132: #{tpu_custom_call.1} parent=51 // pred_fallthru
          _
        // Predicated region
        $region133: #{tpu_custom_call.1} parent=51 // pred_check
          %p1025 = pneg %p727
        $region134: #{tpu_custom_call.1} parent=51 // pred_check_branch
          %1027 = sbr.rel (%p1025) target = $region136
        $region135: #{tpu_custom_call.1} parent=51 // pred_region
          %p1028 = scmp.lt.s32.totalorder %s78, 1
          %s1029 = scalar_select %p1028, %s78, 1
          %s1030 = scalar_lea.vmem %s51, %s1029
        $region136: #{tpu_custom_call.1} parent=51 // pred_fallthru
          _
      $region52: #{tpu_custom_call.1} parent=5 // pred_fallthru
        _
      %p1031 = scmp.le.s32.totalorder 1, %s70
      %p1032 = scmp.lt.s32.totalorder %s70, 5
      %p1033 = pnand %p1031, %p1032
      %p1034 = pneg %p1033
      // Predicated region
      $region137: #{tpu_custom_call.1} parent=5 // pred_check
        _
      $region138: #{tpu_custom_call.1} parent=5 // pred_check_branch
        %1036 = sbr.rel (%p1033) target = $region140
      $region139: #{tpu_custom_call.1} parent=5 // pred_region
        %s1037 = ssub.s32 %s70, 1
        %p1038 = scmp.lt.s32.totalorder %s79, 1
        %s1039 = scalar_select %p1038, %s79, 1
        %s1040 = smul.addr %s1039, 2
        %s1041 = smul.addr %s1040, 2
        %s1042 = scalar_lea.vmem %s1, %s1041
        %p1043 = pneg %p108
        %p1044 = pneg %p105
        %p1045 = pneg %p129
        %p1046 = pneg %p126
        %p1047 = pneg %p150
        %p1048 = pneg %p147
        %p1049 = pneg %p171
        %p1050 = pneg %p168
        %p1051 = pneg %p192
        %p1052 = pneg %p189
        %p1053 = pneg %p213
        %p1054 = pneg %p210
        %p1055 = scmp.lt.s32.totalorder %s80, 1
        %s1056 = scalar_select %p1055, %s80, 1
        %s1057 = scalar_lea.vmem %s13, %s1056
        %p1058 = pneg %p239
        %p1059 = pneg %p236
        %p1060 = scmp.lt.s32.totalorder %s80, 1
        %s1061 = scalar_select %p1060, %s80, 1
        %s1062 = scalar_lea.vmem %s15, %s1061
        %p1063 = pneg %p265
        %p1064 = pneg %p262
        %p1065 = scmp.lt.s32.totalorder %s80, 1
        %s1066 = scalar_select %p1065, %s80, 1
        %s1067 = smul.addr %s1066, 4
        %s1068 = smul.addr %s1067, 4
        %s1069 = scalar_lea.vmem %s17, %s1068
        %p1070 = pneg %p291
        %p1071 = pneg %p288
        %p1072 = scmp.lt.s32.totalorder %s80, 1
        %s1073 = scalar_select %p1072, %s80, 1
        %s1074 = scalar_lea.vmem %s19, %s1073
        %p1075 = pneg %p317
        %p1076 = pneg %p314
        %p1077 = scmp.lt.s32.totalorder %s80, 1
        %s1078 = scalar_select %p1077, %s80, 1
        %s1079 = smul.addr %s1078, 4
        %s1080 = smul.addr %s1079, 4
        %s1081 = scalar_lea.vmem %s21, %s1080
        %p1082 = pneg %p343
        %p1083 = pneg %p340
        %p1084 = scmp.lt.s32.totalorder %s80, 1
        %s1085 = scalar_select %p1084, %s80, 1
        %s1086 = scalar_lea.vmem %s23, %s1085
        %p1087 = pneg %p369
        %p1088 = pneg %p366
        %p1089 = scmp.lt.s32.totalorder %s80, 1
        %s1090 = scalar_select %p1089, %s80, 1
        %s1091 = scalar_lea.vmem %s25, %s1090
        %p1092 = pneg %p395
        %p1093 = pneg %p392
        %p1094 = scmp.lt.s32.totalorder %s80, 1
        %s1095 = scalar_select %p1094, %s80, 1
        %s1096 = scalar_lea.vmem %s27, %s1095
        %p1097 = pneg %p421
        %p1098 = pneg %p418
        %p1099 = scmp.lt.s32.totalorder %s80, 1
        %s1100 = scalar_select %p1099, %s80, 1
        %s1101 = smul.addr %s1100, 4
        %s1102 = smul.addr %s1101, 4
        %s1103 = scalar_lea.vmem %s29, %s1102
        %p1104 = pneg %p447
        %p1105 = pneg %p444
        %p1106 = scmp.lt.s32.totalorder %s80, 1
        %s1107 = scalar_select %p1106, %s80, 1
        %s1108 = scalar_lea.vmem %s31, %s1107
        %p1109 = pneg %p473
        %p1110 = pneg %p470
        %p1111 = scmp.lt.s32.totalorder %s80, 1
        %s1112 = scalar_select %p1111, %s80, 1
        %s1113 = smul.addr %s1112, 16
        %s1114 = smul.addr %s1113, 4
        %s1115 = scalar_lea.vmem %s33, %s1114
        %p1116 = pneg %p499
        %p1117 = pneg %p496
        %p1118 = scmp.lt.s32.totalorder %s80, 1
        %s1119 = scalar_select %p1118, %s80, 1
        %s1120 = scalar_lea.vmem %s35, %s1119
        %p1121 = pneg %p525
        %p1122 = pneg %p522
        %p1123 = scmp.lt.s32.totalorder %s80, 1
        %s1124 = scalar_select %p1123, %s80, 1
        %s1125 = smul.addr %s1124, 4
        %s1126 = smul.addr %s1125, 4
        %s1127 = scalar_lea.vmem %s37, %s1126
        %p1128 = pneg %p551
        %p1129 = pneg %p548
        %p1130 = scmp.lt.s32.totalorder %s80, 1
        %s1131 = scalar_select %p1130, %s80, 1
        %s1132 = scalar_lea.vmem %s39, %s1131
        %p1133 = pneg %p577
        %p1134 = pneg %p574
        %p1135 = scmp.lt.s32.totalorder %s80, 1
        %s1136 = scalar_select %p1135, %s80, 1
        %s1137 = smul.addr %s1136, 4
        %s1138 = scalar_lea.vmem %s41, %s1137
        %p1139 = pneg %p603
        %p1140 = pneg %p600
        %p1141 = scmp.lt.s32.totalorder %s80, 1
        %s1142 = scalar_select %p1141, %s80, 1
        %s1143 = scalar_lea.vmem %s43, %s1142
        %p1144 = pneg %p629
        %p1145 = pneg %p626
        %p1146 = scmp.lt.s32.totalorder %s80, 1
        %s1147 = scalar_select %p1146, %s80, 1
        %s1148 = smul.addr %s1147, 4
        %s1149 = smul.addr %s1148, 4
        %s1150 = scalar_lea.vmem %s45, %s1149
        %p1151 = pneg %p655
        %p1152 = pneg %p652
        %p1153 = scmp.lt.s32.totalorder %s80, 1
        %s1154 = scalar_select %p1153, %s80, 1
        %s1155 = scalar_lea.vmem %s47, %s1154
        %p1156 = pneg %p681
        %p1157 = pneg %p678
        %p1158 = scmp.lt.s32.totalorder %s80, 1
        %s1159 = scalar_select %p1158, %s80, 1
        %s1160 = smul.addr %s1159, 4
        %s1161 = scalar_lea.vmem %s49, %s1160
        %p1162 = pneg %p707
        %p1163 = pneg %p704
        %p1164 = scmp.lt.s32.totalorder %s80, 1
        %s1165 = scalar_select %p1164, %s80, 1
        %s1166 = scalar_lea.vmem %s51, %s1165
        %p1167 = pneg %p733
        %p1168 = pneg %p730
        %p1169 = pneg %p754
        %p1170 = pneg %p751
        %p1171 = pneg %p775
        %p1172 = pneg %p772
        %p1173 = pneg %p796
        %p1174 = pneg %p793
        %p1175 = pneg %p817
        %p1176 = pneg %p814
        %p1177 = pneg %p843
        %p1178 = pneg %p840
        %s1179 = sand.u32 %s830, 1
        %s1180 = scalar_lea.sflag [#allocation4], %s1179
        %s1181 = sand.u32 %s830, 1
        %s1182 = scalar_lea.vmem [#allocation3], %s1181
        %p1183 = scmp.lt.s32.totalorder %s79, 1
        %s1184 = scalar_select %p1183, %s79, 1
        %s1185 = smul.addr %s1184, 2
        %s1186 = smul.addr %s1185, 2
        %s1187 = scalar_lea.vmem %s1, %s1186
        %p1188 = scmp.lt.s32.totalorder %s80, 1
        %s1189 = scalar_select %p1188, %s80, 1
        %s1190 = scalar_lea.vmem %s13, %s1189
        %p1191 = scmp.lt.s32.totalorder %s80, 1
        %s1192 = scalar_select %p1191, %s80, 1
        %s1193 = scalar_lea.vmem %s15, %s1192
        %p1194 = scmp.lt.s32.totalorder %s80, 1
        %s1195 = scalar_select %p1194, %s80, 1
        %s1196 = smul.addr %s1195, 4
        %s1197 = smul.addr %s1196, 4
        %s1198 = scalar_lea.vmem %s17, %s1197
        %p1199 = scmp.lt.s32.totalorder %s80, 1
        %s1200 = scalar_select %p1199, %s80, 1
        %s1201 = scalar_lea.vmem %s19, %s1200
        %p1202 = scmp.lt.s32.totalorder %s80, 1
        %s1203 = scalar_select %p1202, %s80, 1
        %s1204 = smul.addr %s1203, 4
        %s1205 = smul.addr %s1204, 4
        %s1206 = scalar_lea.vmem %s21, %s1205
        %p1207 = scmp.lt.s32.totalorder %s80, 1
        %s1208 = scalar_select %p1207, %s80, 1
        %s1209 = scalar_lea.vmem %s23, %s1208
        %p1210 = scmp.lt.s32.totalorder %s80, 1
        %s1211 = scalar_select %p1210, %s80, 1
        %s1212 = scalar_lea.vmem %s25, %s1211
        %p1213 = scmp.lt.s32.totalorder %s80, 1
        %s1214 = scalar_select %p1213, %s80, 1
        %s1215 = scalar_lea.vmem %s27, %s1214
        %p1216 = scmp.lt.s32.totalorder %s80, 1
        %s1217 = scalar_select %p1216, %s80, 1
        %s1218 = smul.addr %s1217, 4
        %s1219 = smul.addr %s1218, 4
        %s1220 = scalar_lea.vmem %s29, %s1219
        %p1221 = scmp.lt.s32.totalorder %s80, 1
        %s1222 = scalar_select %p1221, %s80, 1
        %s1223 = scalar_lea.vmem %s31, %s1222
        %p1224 = scmp.lt.s32.totalorder %s80, 1
        %s1225 = scalar_select %p1224, %s80, 1
        %s1226 = smul.addr %s1225, 16
        %s1227 = smul.addr %s1226, 4
        %s1228 = scalar_lea.vmem %s33, %s1227
        %p1229 = scmp.lt.s32.totalorder %s80, 1
        %s1230 = scalar_select %p1229, %s80, 1
        %s1231 = scalar_lea.vmem %s35, %s1230
        %p1232 = scmp.lt.s32.totalorder %s80, 1
        %s1233 = scalar_select %p1232, %s80, 1
        %s1234 = smul.addr %s1233, 4
        %s1235 = smul.addr %s1234, 4
        %s1236 = scalar_lea.vmem %s37, %s1235
        %p1237 = scmp.lt.s32.totalorder %s80, 1
        %s1238 = scalar_select %p1237, %s80, 1
        %s1239 = scalar_lea.vmem %s39, %s1238
        %p1240 = scmp.lt.s32.totalorder %s80, 1
        %s1241 = scalar_select %p1240, %s80, 1
        %s1242 = smul.addr %s1241, 4
        %s1243 = scalar_lea.vmem %s41, %s1242
        %p1244 = scmp.lt.s32.totalorder %s80, 1
        %s1245 = scalar_select %p1244, %s80, 1
        %s1246 = scalar_lea.vmem %s43, %s1245
        %p1247 = scmp.lt.s32.totalorder %s80, 1
        %s1248 = scalar_select %p1247, %s80, 1
        %s1249 = smul.addr %s1248, 4
        %s1250 = smul.addr %s1249, 4
        %s1251 = scalar_lea.vmem %s45, %s1250
        %p1252 = scmp.lt.s32.totalorder %s80, 1
        %s1253 = scalar_select %p1252, %s80, 1
        %s1254 = scalar_lea.vmem %s47, %s1253
        %p1255 = scmp.lt.s32.totalorder %s80, 1
        %s1256 = scalar_select %p1255, %s80, 1
        %s1257 = smul.addr %s1256, 4
        %s1258 = scalar_lea.vmem %s49, %s1257
        %p1259 = scmp.lt.s32.totalorder %s80, 1
        %s1260 = scalar_select %p1259, %s80, 1
        %s1261 = scalar_lea.vmem %s51, %s1260
        %p1263 = scmp.eq.s32.totalorder %s80, 0
        // Predicated region
        $region141: #{tpu_custom_call.1} parent=139 // pred_check
          %p1264 = pneg %p1263
        $region142: #{tpu_custom_call.1} parent=139 // pred_check_branch
          %1266 = sbr.rel (%p1264) target = $region144
        $region143: #{tpu_custom_call.1} parent=139 // pred_region
          %v1267 = vld [vmem:[%s1187] sm:$0xf]
          %v1268 = vld [vmem:[%s3] sm:$0xf]
          %v1269 = vld [vmem:[%s3 + $0x4] sm:$0xf]
          %v1270 = vld [vmem:[%s3 + $0x8] sm:$0xf]
          %v1271 = vld [vmem:[%s3 + $0xc] sm:$0xf]
          %v1272 = vld [vmem:[%s3 + $0x10] sm:$0xf]
          %v1273 = vld [vmem:[%s3 + $0x14] sm:$0xf]
          %v1274 = vld [vmem:[%s3 + $0x18] sm:$0xf]
          %v1275 = vld [vmem:[%s3 + $0x1c] sm:$0xf]
          %v1276 = vld [vmem:[%s3 + $0x20] sm:$0xf]
          %v1277 = vld [vmem:[%s3 + $0x24] sm:$0xf]
          %v1278 = vld [vmem:[%s3 + $0x28] sm:$0xf]
          %v1279 = vld [vmem:[%s3 + $0x2c] sm:$0xf]
          %v1280 = vld [vmem:[%s3 + $0x30] sm:$0xf]
          %v1281 = vld [vmem:[%s3 + $0x34] sm:$0xf]
          %v1282 = vld [vmem:[%s3 + $0x38] sm:$0xf]
          %v1283 = vld [vmem:[%s3 + $0x3c] sm:$0xf]
          %v1284 = vld [vmem:[%s3 + $0x40] sm:$0xf]
          %v1285 = vld [vmem:[%s3 + $0x44] sm:$0xf]
          %v1286 = vld [vmem:[%s3 + $0x48] sm:$0xf]
          %v1287 = vld [vmem:[%s3 + $0x4c] sm:$0xf]
          %v1288 = vld [vmem:[%s3 + $0x50] sm:$0xf]
          %v1289 = vld [vmem:[%s3 + $0x54] sm:$0xf]
          %v1290 = vld [vmem:[%s3 + $0x58] sm:$0xf]
          %v1291 = vld [vmem:[%s3 + $0x5c] sm:$0xf]
          %v1292 = vld [vmem:[%s3 + $0x60] sm:$0xf]
          %v1293 = vld [vmem:[%s3 + $0x64] sm:$0xf]
          %v1294 = vld [vmem:[%s3 + $0x68] sm:$0xf]
          %v1295 = vld [vmem:[%s3 + $0x6c] sm:$0xf]
          %v1296 = vld [vmem:[%s3 + $0x70] sm:$0xf]
          %v1297 = vld [vmem:[%s3 + $0x74] sm:$0xf]
          %v1298 = vld [vmem:[%s3 + $0x78] sm:$0xf]
          %v1299 = vld [vmem:[%s3 + $0x7c] sm:$0xf]
          %v1302 = vunpack.c.l.s4 1983009808
          %v1303 = vunpack.c.0.s8 %v1302
          %v1304 = vlaneseq
          %v1305 = vshrl.u32 %v1304, 7
          %v1306 = vsub.s32 %v1303, %v1305
          %v1307 = vrot.slane %v1267, %v1306
          %v1308 = vcombine.high %v1307, %v1307
          %v1343 = vunpack.c.l.b16 %v1268
          %v1344 = vunpack.c.l.b16 %v1269
          %v1345 = vunpack.c.l.b16 %v1270
          %v1346 = vunpack.c.l.b16 %v1271
          %v1347 = vunpack.c.l.b16 %v1272
          %v1348 = vunpack.c.l.b16 %v1273
          %v1349 = vunpack.c.l.b16 %v1274
          %v1350 = vunpack.c.l.b16 %v1275
          %v1351 = vunpack.c.l.b16 %v1276
          %v1352 = vunpack.c.l.b16 %v1277
          %v1353 = vunpack.c.l.b16 %v1278
          %v1354 = vunpack.c.l.b16 %v1279
          %v1355 = vunpack.c.l.b16 %v1280
          %v1356 = vunpack.c.l.b16 %v1281
          %v1357 = vunpack.c.l.b16 %v1282
          %v1358 = vunpack.c.l.b16 %v1283
          %v1359 = vunpack.c.l.b16 %v1284
          %v1360 = vunpack.c.l.b16 %v1285
          %v1361 = vunpack.c.l.b16 %v1286
          %v1362 = vunpack.c.l.b16 %v1287
          %v1363 = vunpack.c.l.b16 %v1288
          %v1364 = vunpack.c.l.b16 %v1289
          %v1365 = vunpack.c.l.b16 %v1290
          %v1366 = vunpack.c.l.b16 %v1291
          %v1367 = vunpack.c.l.b16 %v1292
          %v1368 = vunpack.c.l.b16 %v1293
          %v1369 = vunpack.c.l.b16 %v1294
          %v1370 = vunpack.c.l.b16 %v1295
          %v1371 = vunpack.c.l.b16 %v1296
          %v1372 = vunpack.c.l.b16 %v1297
          %v1373 = vunpack.c.l.b16 %v1298
          %v1374 = vunpack.c.l.b16 %v1299
          %v1375 = vpack.c.b16 %v1344, %v1343
          %v1376 = vpack.c.b16 %v1346, %v1345
          %v1377 = vpack.c.b16 %v1348, %v1347
          %v1378 = vpack.c.b16 %v1350, %v1349
          %v1379 = vpack.c.b16 %v1352, %v1351
          %v1380 = vpack.c.b16 %v1354, %v1353
          %v1381 = vpack.c.b16 %v1356, %v1355
          %v1382 = vpack.c.b16 %v1358, %v1357
          %v1383 = vpack.c.b16 %v1360, %v1359
          %v1384 = vpack.c.b16 %v1362, %v1361
          %v1385 = vpack.c.b16 %v1364, %v1363
          %v1386 = vpack.c.b16 %v1366, %v1365
          %v1387 = vpack.c.b16 %v1368, %v1367
          %v1388 = vpack.c.b16 %v1370, %v1369
          %v1389 = vpack.c.b16 %v1372, %v1371
          %v1390 = vpack.c.b16 %v1374, %v1373
          %1407 = vmatprep.subr.bf16.mxu0 0
          %1408 = vmatpush1.bf16.msra.mxu0 %v1382
          %1409 = vmatprep.subr.bf16.mxu0 0
          %1410 = vmatpush1.bf16.msra.mxu0 %v1381
          %1411 = vmatprep.subr.bf16.mxu0 0
          %1412 = vmatpush1.bf16.msra.mxu0 %v1380
          %1413 = vmatprep.subr.bf16.mxu0 0
          %1414 = vmatpush1.bf16.msra.mxu0 %v1379
          %1415 = vmatprep.subr.bf16.mxu0 0
          %1416 = vmatpush1.bf16.msra.mxu0 %v1378
          %1417 = vmatprep.subr.bf16.mxu0 0
          %1418 = vmatpush1.bf16.msra.mxu0 %v1377
          %1419 = vmatprep.subr.bf16.mxu0 0
          %1420 = vmatpush1.bf16.msra.mxu0 %v1376
          %1421 = vmatprep.subr.bf16.mxu0 0
          %1422 = vmatpush1.bf16.msra.mxu0 %v1375
          %1423 = vmatprep.subr.bf16.mxu0 0
          %1424 = vmatpush2.bf16.msra.mxu0 %v1390
          %1425 = vmatprep.subr.bf16.mxu0 0
          %1426 = vmatpush2.bf16.msra.mxu0 %v1389
          %1427 = vmatprep.subr.bf16.mxu0 0
          %1428 = vmatpush2.bf16.msra.mxu0 %v1388
          %1429 = vmatprep.subr.bf16.mxu0 0
          %1430 = vmatpush2.bf16.msra.mxu0 %v1387
          %1431 = vmatprep.subr.bf16.mxu0 0
          %1432 = vmatpush2.bf16.msra.mxu0 %v1386
          %1433 = vmatprep.subr.bf16.mxu0 0
          %1434 = vmatpush2.bf16.msra.mxu0 %v1385
          %1435 = vmatprep.subr.bf16.mxu0 0
          %1436 = vmatpush2.bf16.msra.mxu0 %v1384
          %1437 = vmatprep.subr.bf16.mxu0 0
          %1438 = vmatpush2.bf16.msra.mxu0 %v1383
          %1439 = vmatprep.mubr.bf16.mxu0 %v1308
          %1440 = vmatmul.mubr.bf16.gmra.mxu0 %v1307
          %v1441 = vpop.f32.mrf.mxu0
          %v1442 = vadd.f32 0.0, %v1441
          %v1443 = vpop.f32.mrf.mxu0
          %v1444 = vpop.f32.mrf.mxu0
          %v1445 = vpop.f32.mrf.mxu0
          %1446 = vdwg.mxu0
          %v1447 = vld [vmem:[%s5] sm:$0x1]
          %v1449 = vrot.slane %v1442, 7
          %vm1451 = vcmask 1040384
          %v1452 = vsel %vm1451, %v1447, %v1449
          %vm1453 = vcmask 1044480
          %v1454 = vsel %vm1453, %v1452, 0.0
          %v1455 = vld [vmem:[%s7] sm:$0xff]
          %v1456 = vadd.f32 %v1454, %v1455
          %v1457 = vld [vmem:[%s9] sm:$0x1]
          %v1458 = vld [vmem:[%s11] sm:$0x1]
          %vm1459 = vcmask 261120
          %v1460 = vsel %vm1459, %v1456, 0.0
          %1461 = vadd.xlane.f32.xlu0 %v1460
          %v1462 = vpop.xlane.xlu0 %1461
          %v1463 = vrcp.pop 32.0
          %v1464 = vmul.f32 %v1462, %v1463
          %v1465 = vsub.f32 %v1456, %v1464
          %v1466 = vmul.f32 %v1465, %v1465
          %v1467 = vsel %vm1459, %v1466, 0.0
          %1468 = vadd.xlane.f32.xlu0 %v1467
          %v1469 = vpop.xlane.xlu0 %1468
          %v1470 = vmul.f32 %v1469, %v1463
          %v1471 = vadd.f32 %v1470, 1e-05
          %v1472 = vrsqrt.pop %v1471
          %v1473 = vmul.f32 %v1465, %v1472
          %v1475 = vlaneseq
          %v1476 = vshrl.u32 %v1475, 7
          %v1477 = vsub.s32 0, %v1476
          %v1478 = vrot.slane %v1457, %v1477
          %v1480 = vmul.f32 %v1473, %v1478
          %v1482 = vlaneseq
          %v1483 = vshrl.u32 %v1482, 7
          %v1484 = vsub.s32 0, %v1483
          %v1485 = vrot.slane %v1458, %v1484
          %v1487 = vadd.f32 %v1480, %v1485
          %1488 = vst.msk [vmem:[#allocation2] sm:$0xff] %vm1459, %v1487
        $region144: #{tpu_custom_call.1} parent=139 // pred_fallthru
          _
        %v1489 = vld [vmem:[#allocation2] sm:$0xff]
        %v1490 = vld [vmem:[%s1190] sm:$0x1]
        %v1491 = vld [vmem:[%s1193] sm:$0x1]
        %vm1492 = vcmask 261120
        %v1493 = vsel %vm1492, %v1489, 0.0
        %1494 = vadd.xlane.f32.xlu0 %v1493
        %v1495 = vpop.xlane.xlu0 %1494
        %v1496 = vrcp.pop 32.0
        %v1497 = vmul.f32 %v1495, %v1496
        %v1498 = vsub.f32 %v1489, %v1497
        %v1499 = vmul.f32 %v1498, %v1498
        %v1500 = vsel %vm1492, %v1499, 0.0
        %1501 = vadd.xlane.f32.xlu0 %v1500
        %v1502 = vpop.xlane.xlu0 %1501
        %v1503 = vmul.f32 %v1502, %v1496
        %v1504 = vadd.f32 %v1503, 1e-05
        %v1505 = vrsqrt.pop %v1504
        %v1506 = vmul.f32 %v1498, %v1505
        %v1508 = vlaneseq
        %v1509 = vshrl.u32 %v1508, 7
        %v1510 = vsub.s32 0, %v1509
        %v1511 = vrot.slane %v1490, %v1510
        %v1513 = vmul.f32 %v1506, %v1511
        %v1515 = vlaneseq
        %v1516 = vshrl.u32 %v1515, 7
        %v1517 = vsub.s32 0, %v1516
        %v1518 = vrot.slane %v1491, %v1517
        %v1520 = vadd.f32 %v1513, %v1518
        %v1521 = vpack.c.bf16 %v1520, %v1520
        %v1522 = vld [vmem:[%s1198] sm:$0xf]
        %v1523 = vld [vmem:[%s1198 + $0x4] sm:$0xf]
        %v1524 = vld [vmem:[%s1198 + $0x8] sm:$0xf]
        %v1525 = vld [vmem:[%s1198 + $0xc] sm:$0xf]
        %v1526 = vld [vmem:[%s1201] sm:$0x1]
        %v1528 = vlaneseq
        %v1529 = vshrl.u32 %v1528, 7
        %v1530 = vsub.s32 0, %v1529
        %v1531 = vrot.slane %v1526, %v1530
        %v1537 = vunpack.c.l.b16 %v1522
        %v1538 = vunpack.c.l.b16 %v1523
        %v1539 = vunpack.c.l.b16 %v1524
        %v1540 = vunpack.c.l.b16 %v1525
        %v1541 = vpack.c.b16 %v1538, %v1537
        %v1542 = vpack.c.b16 %v1540, %v1539
        %v1546 = vsel %vm1492, %v1521, 0
        %1548 = vmatprep.subr.bf16.mxu0 0
        %1549 = vmatpush1.bf16.msra.mxu0 0
        %1550 = vmatprep.subr.bf16.mxu0 0
        %1551 = vmatpush1.bf16.msra.mxu0 0
        %1552 = vmatprep.subr.bf16.mxu0 0
        %1553 = vmatpush1.bf16.msra.mxu0 0
        %1554 = vmatprep.subr.bf16.mxu0 0
        %1555 = vmatpush1.bf16.msra.mxu0 0
        %1556 = vmatprep.subr.bf16.mxu0 0
        %1557 = vmatpush1.bf16.msra.mxu0 0
        %1558 = vmatprep.subr.bf16.mxu0 0
        %1559 = vmatpush1.bf16.msra.mxu0 0
        %1560 = vmatprep.subr.bf16.mxu0 0
        %1561 = vmatpush1.bf16.msra.mxu0 %v1542
        %1562 = vmatprep.subr.bf16.mxu0 0
        %1563 = vmatpush1.bf16.msra.mxu0 %v1541
        %1564 = vmatprep.subr.bf16.mxu0 0
        %1565 = vmatpush2.bf16.msra.mxu0 0
        %1566 = vmatprep.subr.bf16.mxu0 0
        %1567 = vmatpush2.bf16.msra.mxu0 0
        %1568 = vmatprep.subr.bf16.mxu0 0
        %1569 = vmatpush2.bf16.msra.mxu0 0
        %1570 = vmatprep.subr.bf16.mxu0 0
        %1571 = vmatpush2.bf16.msra.mxu0 0
        %1572 = vmatprep.subr.bf16.mxu0 0
        %1573 = vmatpush2.bf16.msra.mxu0 0
        %1574 = vmatprep.subr.bf16.mxu0 0
        %1575 = vmatpush2.bf16.msra.mxu0 0
        %1576 = vmatprep.subr.bf16.mxu0 0
        %1577 = vmatpush2.bf16.msra.mxu0 0
        %1578 = vmatprep.subr.bf16.mxu0 0
        %1579 = vmatpush2.bf16.msra.mxu0 0
        %1580 = vmatprep.mubr.bf16.mxu0 0
        %1581 = vmatmul.mubr.bf16.gmra.mxu0 %v1546
        %v1582 = vpop.f32.mrf.mxu0
        %v1583 = vadd.f32 %v1531, %v1582
        %v1584 = vpop.f32.mrf.mxu0
        %v1585 = vpop.f32.mrf.mxu0
        %v1586 = vpop.f32.mrf.mxu0
        %1587 = vdwg.mxu0
        %1589 = vrot.lane.b32.xlu0 %v1583, 120
        %v1590 = vpop.permute.xlu0 %1589
        %1592 = vrot.lane.b32.xlu0 %v1583, 112
        %v1593 = vpop.permute.xlu0 %1592
        %1595 = vrot.lane.b32.xlu0 %v1583, 104
        %v1596 = vpop.permute.xlu0 %1595
        %v1598 = vcombine.low %v1583, %v1593
        %v1599 = vcombine.high %v1583, %v1593
        %v1601 = vunpack.c.l.s4 1983009808
        %v1602 = vunpack.c.0.s8 %v1601
        %v1603 = vlaneseq
        %v1604 = vshrl.u32 %v1603, 7
        %v1605 = vsub.s32 %v1602, %v1604
        %v1606 = vrot.slane %v1598, %v1605
        %v1608 = vunpack.c.l.s4 1983009808
        %v1609 = vunpack.c.0.s8 %v1608
        %v1610 = vlaneseq
        %v1611 = vshrl.u32 %v1610, 7
        %v1612 = vsub.s32 %v1609, %v1611
        %v1613 = vrot.slane %v1599, %v1612
        %v1614 = vcombine.low %v1590, %v1596
        %v1615 = vcombine.high %v1590, %v1596
        %v1617 = vunpack.c.l.s4 1983009808
        %v1618 = vunpack.c.0.s8 %v1617
        %v1619 = vlaneseq
        %v1620 = vshrl.u32 %v1619, 7
        %v1621 = vsub.s32 %v1618, %v1620
        %v1622 = vrot.slane %v1614, %v1621
        %v1624 = vunpack.c.l.s4 1983009808
        %v1625 = vunpack.c.0.s8 %v1624
        %v1626 = vlaneseq
        %v1627 = vshrl.u32 %v1626, 7
        %v1628 = vsub.s32 %v1625, %v1627
        %v1629 = vrot.slane %v1615, %v1628
        %v1630 = vcombine.low %v1606, %v1622
        %v1631 = vcombine.high %v1606, %v1622
        %v1633 = vunpack.c.l.s4 1934713408
        %v1634 = vunpack.c.0.s8 %v1633
        %v1635 = vlaneseq
        %v1636 = vshrl.u32 %v1635, 7
        %v1637 = vsub.s32 %v1634, %v1636
        %v1638 = vrot.slane %v1630, %v1637
        %v1640 = vunpack.c.l.s4 1934713408
        %v1641 = vunpack.c.0.s8 %v1640
        %v1642 = vlaneseq
        %v1643 = vshrl.u32 %v1642, 7
        %v1644 = vsub.s32 %v1641, %v1643
        %v1645 = vrot.slane %v1631, %v1644
        %v1646 = vcombine.low %v1613, %v1629
        %v1647 = vcombine.high %v1613, %v1629
        %v1649 = vunpack.c.l.s4 1934713408
        %v1650 = vunpack.c.0.s8 %v1649
        %v1651 = vlaneseq
        %v1652 = vshrl.u32 %v1651, 7
        %v1653 = vsub.s32 %v1650, %v1652
        %v1654 = vrot.slane %v1646, %v1653
        %v1656 = vunpack.c.l.s4 1934713408
        %v1657 = vunpack.c.0.s8 %v1656
        %v1658 = vlaneseq
        %v1659 = vshrl.u32 %v1658, 7
        %v1660 = vsub.s32 %v1657, %v1659
        %v1661 = vrot.slane %v1647, %v1660
        %v1662 = vcombine.high %v1638, 0.0
        %v1663 = vcombine.high %v1645, 0.0
        %v1664 = vcombine.high %v1654, 0.0
        %v1665 = vcombine.high %v1661, 0.0
        %v1666 = vpack.c.bf16 %v1638, %v1638
        %v1667 = vpack.c.bf16 %v1662, %v1662
        %v1668 = vpack.c.bf16 %v1645, %v1645
        %v1669 = vpack.c.bf16 %v1663, %v1663
        %v1670 = vpack.c.bf16 %v1654, %v1654
        %v1671 = vpack.c.bf16 %v1664, %v1664
        %v1672 = vpack.c.bf16 %v1661, %v1661
        %v1673 = vpack.c.bf16 %v1665, %v1665
        %1674 = vrot.lane.b32.xlu0 %v1583, 96
        %v1675 = vpop.permute.xlu0 %1674
        %1676 = vrot.lane.b32.xlu0 %v1590, 96
        %v1677 = vpop.permute.xlu0 %1676
        %1678 = vrot.lane.b32.xlu0 %v1593, 96
        %v1679 = vpop.permute.xlu0 %1678
        %1680 = vrot.lane.b32.xlu0 %v1596, 96
        %v1681 = vpop.permute.xlu0 %1680
        %v1686 = vcombine.low %v1675, %v1679
        %v1687 = vcombine.high %v1675, %v1679
        %v1689 = vunpack.c.l.s4 1983009808
        %v1690 = vunpack.c.0.s8 %v1689
        %v1691 = vlaneseq
        %v1692 = vshrl.u32 %v1691, 7
        %v1693 = vsub.s32 %v1690, %v1692
        %v1694 = vrot.slane %v1686, %v1693
        %v1696 = vunpack.c.l.s4 1983009808
        %v1697 = vunpack.c.0.s8 %v1696
        %v1698 = vlaneseq
        %v1699 = vshrl.u32 %v1698, 7
        %v1700 = vsub.s32 %v1697, %v1699
        %v1701 = vrot.slane %v1687, %v1700
        %v1702 = vcombine.low %v1677, %v1681
        %v1703 = vcombine.high %v1677, %v1681
        %v1705 = vunpack.c.l.s4 1983009808
        %v1706 = vunpack.c.0.s8 %v1705
        %v1707 = vlaneseq
        %v1708 = vshrl.u32 %v1707, 7
        %v1709 = vsub.s32 %v1706, %v1708
        %v1710 = vrot.slane %v1702, %v1709
        %v1712 = vunpack.c.l.s4 1983009808
        %v1713 = vunpack.c.0.s8 %v1712
        %v1714 = vlaneseq
        %v1715 = vshrl.u32 %v1714, 7
        %v1716 = vsub.s32 %v1713, %v1715
        %v1717 = vrot.slane %v1703, %v1716
        %v1718 = vcombine.low %v1694, %v1710
        %v1719 = vcombine.high %v1694, %v1710
        %v1721 = vunpack.c.l.s4 1934713408
        %v1722 = vunpack.c.0.s8 %v1721
        %v1723 = vlaneseq
        %v1724 = vshrl.u32 %v1723, 7
        %v1725 = vsub.s32 %v1722, %v1724
        %v1726 = vrot.slane %v1718, %v1725
        %v1728 = vunpack.c.l.s4 1934713408
        %v1729 = vunpack.c.0.s8 %v1728
        %v1730 = vlaneseq
        %v1731 = vshrl.u32 %v1730, 7
        %v1732 = vsub.s32 %v1729, %v1731
        %v1733 = vrot.slane %v1719, %v1732
        %v1734 = vcombine.low %v1701, %v1717
        %v1735 = vcombine.high %v1701, %v1717
        %v1737 = vunpack.c.l.s4 1934713408
        %v1738 = vunpack.c.0.s8 %v1737
        %v1739 = vlaneseq
        %v1740 = vshrl.u32 %v1739, 7
        %v1741 = vsub.s32 %v1738, %v1740
        %v1742 = vrot.slane %v1734, %v1741
        %v1744 = vunpack.c.l.s4 1934713408
        %v1745 = vunpack.c.0.s8 %v1744
        %v1746 = vlaneseq
        %v1747 = vshrl.u32 %v1746, 7
        %v1748 = vsub.s32 %v1745, %v1747
        %v1749 = vrot.slane %v1735, %v1748
        %v1750 = vcombine.high %v1726, 0.0
        %v1751 = vcombine.high %v1733, 0.0
        %v1752 = vcombine.high %v1742, 0.0
        %v1753 = vcombine.high %v1749, 0.0
        %v1754 = vpack.c.bf16 %v1726, %v1726
        %v1755 = vpack.c.bf16 %v1750, %v1750
        %v1756 = vpack.c.bf16 %v1733, %v1733
        %v1757 = vpack.c.bf16 %v1751, %v1751
        %v1758 = vpack.c.bf16 %v1742, %v1742
        %v1759 = vpack.c.bf16 %v1752, %v1752
        %v1760 = vpack.c.bf16 %v1749, %v1749
        %v1761 = vpack.c.bf16 %v1753, %v1753
        %1762 = vrot.lane.b32.xlu0 %v1583, 64
        %v1763 = vpop.permute.xlu0 %1762
        %1764 = vrot.lane.b32.xlu0 %v1590, 64
        %v1765 = vpop.permute.xlu0 %1764
        %1766 = vrot.lane.b32.xlu0 %v1593, 64
        %v1767 = vpop.permute.xlu0 %1766
        %1768 = vrot.lane.b32.xlu0 %v1596, 64
        %v1769 = vpop.permute.xlu0 %1768
        %v1774 = vcombine.low %v1763, %v1767
        %v1775 = vcombine.high %v1763, %v1767
        %v1777 = vunpack.c.l.s4 1983009808
        %v1778 = vunpack.c.0.s8 %v1777
        %v1779 = vlaneseq
        %v1780 = vshrl.u32 %v1779, 7
        %v1781 = vsub.s32 %v1778, %v1780
        %v1782 = vrot.slane %v1774, %v1781
        %v1784 = vunpack.c.l.s4 1983009808
        %v1785 = vunpack.c.0.s8 %v1784
        %v1786 = vlaneseq
        %v1787 = vshrl.u32 %v1786, 7
        %v1788 = vsub.s32 %v1785, %v1787
        %v1789 = vrot.slane %v1775, %v1788
        %v1790 = vcombine.low %v1765, %v1769
        %v1791 = vcombine.high %v1765, %v1769
        %v1793 = vunpack.c.l.s4 1983009808
        %v1794 = vunpack.c.0.s8 %v1793
        %v1795 = vlaneseq
        %v1796 = vshrl.u32 %v1795, 7
        %v1797 = vsub.s32 %v1794, %v1796
        %v1798 = vrot.slane %v1790, %v1797
        %v1800 = vunpack.c.l.s4 1983009808
        %v1801 = vunpack.c.0.s8 %v1800
        %v1802 = vlaneseq
        %v1803 = vshrl.u32 %v1802, 7
        %v1804 = vsub.s32 %v1801, %v1803
        %v1805 = vrot.slane %v1791, %v1804
        %v1806 = vcombine.low %v1782, %v1798
        %v1807 = vcombine.high %v1782, %v1798
        %v1809 = vunpack.c.l.s4 1934713408
        %v1810 = vunpack.c.0.s8 %v1809
        %v1811 = vlaneseq
        %v1812 = vshrl.u32 %v1811, 7
        %v1813 = vsub.s32 %v1810, %v1812
        %v1814 = vrot.slane %v1806, %v1813
        %v1816 = vunpack.c.l.s4 1934713408
        %v1817 = vunpack.c.0.s8 %v1816
        %v1818 = vlaneseq
        %v1819 = vshrl.u32 %v1818, 7
        %v1820 = vsub.s32 %v1817, %v1819
        %v1821 = vrot.slane %v1807, %v1820
        %v1822 = vcombine.low %v1789, %v1805
        %v1823 = vcombine.high %v1789, %v1805
        %v1825 = vunpack.c.l.s4 1934713408
        %v1826 = vunpack.c.0.s8 %v1825
        %v1827 = vlaneseq
        %v1828 = vshrl.u32 %v1827, 7
        %v1829 = vsub.s32 %v1826, %v1828
        %v1830 = vrot.slane %v1822, %v1829
        %v1832 = vunpack.c.l.s4 1934713408
        %v1833 = vunpack.c.0.s8 %v1832
        %v1834 = vlaneseq
        %v1835 = vshrl.u32 %v1834, 7
        %v1836 = vsub.s32 %v1833, %v1835
        %v1837 = vrot.slane %v1823, %v1836
        %v1838 = vcombine.high %v1814, 0.0
        %v1839 = vcombine.high %v1821, 0.0
        %v1840 = vcombine.high %v1830, 0.0
        %v1841 = vcombine.high %v1837, 0.0
        %v1842 = vpack.c.bf16 %v1814, %v1814
        %v1843 = vpack.c.bf16 %v1838, %v1838
        %v1844 = vpack.c.bf16 %v1821, %v1821
        %v1845 = vpack.c.bf16 %v1839, %v1839
        %v1846 = vpack.c.bf16 %v1830, %v1830
        %v1847 = vpack.c.bf16 %v1840, %v1840
        %v1848 = vpack.c.bf16 %v1837, %v1837
        %v1849 = vpack.c.bf16 %v1841, %v1841
        %v1850 = vcombine.low %v1666, %v1670
        %v1852 = vunpack.c.l.s4 1983009808
        %v1853 = vunpack.c.0.s8 %v1852
        %v1854 = vlaneseq
        %v1855 = vshrl.u32 %v1854, 7
        %v1856 = vsub.s32 %v1853, %v1855
        %v1857 = vrot.slane %v1850, %v1856
        %v1858 = vcombine.low %v1668, %v1672
        %v1860 = vunpack.c.l.s4 1983009808
        %v1861 = vunpack.c.0.s8 %v1860
        %v1862 = vlaneseq
        %v1863 = vshrl.u32 %v1862, 7
        %v1864 = vsub.s32 %v1861, %v1863
        %v1865 = vrot.slane %v1858, %v1864
        %v1866 = vcombine.low %v1857, %v1865
        %v1868 = vunpack.c.l.s4 1934713408
        %v1869 = vunpack.c.0.s8 %v1868
        %v1870 = vlaneseq
        %v1871 = vshrl.u32 %v1870, 7
        %v1872 = vsub.s32 %v1869, %v1871
        %v1873 = vrot.slane %v1866, %v1872
        %v1874 = vcombine.high %v1873, 0
        %v1875 = vcombine.low %v1667, %v1671
        %v1877 = vunpack.c.l.s4 1983009808
        %v1878 = vunpack.c.0.s8 %v1877
        %v1879 = vlaneseq
        %v1880 = vshrl.u32 %v1879, 7
        %v1881 = vsub.s32 %v1878, %v1880
        %v1882 = vrot.slane %v1875, %v1881
        %v1883 = vcombine.low %v1669, %v1673
        %v1885 = vunpack.c.l.s4 1983009808
        %v1886 = vunpack.c.0.s8 %v1885
        %v1887 = vlaneseq
        %v1888 = vshrl.u32 %v1887, 7
        %v1889 = vsub.s32 %v1886, %v1888
        %v1890 = vrot.slane %v1883, %v1889
        %v1891 = vcombine.low %v1882, %v1890
        %v1893 = vunpack.c.l.s4 1934713408
        %v1894 = vunpack.c.0.s8 %v1893
        %v1895 = vlaneseq
        %v1896 = vshrl.u32 %v1895, 7
        %v1897 = vsub.s32 %v1894, %v1896
        %v1898 = vrot.slane %v1891, %v1897
        %v1899 = vcombine.high %v1898, 0
        %v1902 = vpack.i.b16 %v1898, %v1873
        %v1903 = vshrl.u32 %v1873, 16
        %v1904 = vshrl.u32 %v1898, 16
        %v1905 = vpack.i.b16 %v1904, %v1903
        %v1908 = vpack.i.b16 %v1899, %v1874
        %v1909 = vshrl.u32 %v1874, 16
        %v1910 = vshrl.u32 %v1899, 16
        %v1911 = vpack.i.b16 %v1910, %v1909
        %1912 = vxpose.xlu0.c.b16.start [1/8] %v1754, 128
        %1913 = vxpose.xlu0.c.b16.cont [2/8] 0, 128
        %1914 = vxpose.xlu0.c.b16.cont [3/8] 0, 128
        %1915 = vxpose.xlu0.c.b16.cont [4/8] 0, 128
        %1916 = vxpose.xlu0.c.b16.cont [5/8] 0, 128
        %1917 = vxpose.xlu0.c.b16.cont [6/8] 0, 128
        %1918 = vxpose.xlu0.c.b16.cont [7/8] 0, 128
        %1919 = vxpose.xlu0.c.b16.end [8/8] 0, 128
        %v1920 = vpop.trf.xlu0
        %v1921 = vpop.trf.xlu0
        %v1922 = vpop.trf.xlu0
        %v1923 = vpop.trf.xlu0
        %v1924 = vpop.trf.xlu0
        %v1925 = vpop.trf.xlu0
        %v1926 = vpop.trf.xlu0
        %v1927 = vpop.trf.xlu0
        %1928 = vxpose.xlu0.c.b16.start [1/8] %v1755, 128
        %1929 = vxpose.xlu0.c.b16.cont [2/8] 0, 128
        %1930 = vxpose.xlu0.c.b16.cont [3/8] 0, 128
        %1931 = vxpose.xlu0.c.b16.cont [4/8] 0, 128
        %1932 = vxpose.xlu0.c.b16.cont [5/8] 0, 128
        %1933 = vxpose.xlu0.c.b16.cont [6/8] 0, 128
        %1934 = vxpose.xlu0.c.b16.cont [7/8] 0, 128
        %1935 = vxpose.xlu0.c.b16.end [8/8] 0, 128
        %v1936 = vpop.trf.xlu0
        %v1937 = vpop.trf.xlu0
        %v1938 = vpop.trf.xlu0
        %v1939 = vpop.trf.xlu0
        %v1940 = vpop.trf.xlu0
        %v1941 = vpop.trf.xlu0
        %v1942 = vpop.trf.xlu0
        %v1943 = vpop.trf.xlu0
        %1944 = vxpose.xlu0.c.b16.start [1/8] %v1756, 128
        %1945 = vxpose.xlu0.c.b16.cont [2/8] 0, 128
        %1946 = vxpose.xlu0.c.b16.cont [3/8] 0, 128
        %1947 = vxpose.xlu0.c.b16.cont [4/8] 0, 128
        %1948 = vxpose.xlu0.c.b16.cont [5/8] 0, 128
        %1949 = vxpose.xlu0.c.b16.cont [6/8] 0, 128
        %1950 = vxpose.xlu0.c.b16.cont [7/8] 0, 128
        %1951 = vxpose.xlu0.c.b16.end [8/8] 0, 128
        %v1952 = vpop.trf.xlu0
        %v1953 = vpop.trf.xlu0
        %v1954 = vpop.trf.xlu0
        %v1955 = vpop.trf.xlu0
        %v1956 = vpop.trf.xlu0
        %v1957 = vpop.trf.xlu0
        %v1958 = vpop.trf.xlu0
        %v1959 = vpop.trf.xlu0
        %1960 = vxpose.xlu0.c.b16.start [1/8] %v1757, 128
        %1961 = vxpose.xlu0.c.b16.cont [2/8] 0, 128
        %1962 = vxpose.xlu0.c.b16.cont [3/8] 0, 128
        %1963 = vxpose.xlu0.c.b16.cont [4/8] 0, 128
        %1964 = vxpose.xlu0.c.b16.cont [5/8] 0, 128
        %1965 = vxpose.xlu0.c.b16.cont [6/8] 0, 128
        %1966 = vxpose.xlu0.c.b16.cont [7/8] 0, 128
        %1967 = vxpose.xlu0.c.b16.end [8/8] 0, 128
        %v1968 = vpop.trf.xlu0
        %v1969 = vpop.trf.xlu0
        %v1970 = vpop.trf.xlu0
        %v1971 = vpop.trf.xlu0
        %v1972 = vpop.trf.xlu0
        %v1973 = vpop.trf.xlu0
        %v1974 = vpop.trf.xlu0
        %v1975 = vpop.trf.xlu0
        %1976 = vxpose.xlu0.c.b16.start [1/8] %v1758, 128
        %1977 = vxpose.xlu0.c.b16.cont [2/8] 0, 128
        %1978 = vxpose.xlu0.c.b16.cont [3/8] 0, 128
        %1979 = vxpose.xlu0.c.b16.cont [4/8] 0, 128
        %1980 = vxpose.xlu0.c.b16.cont [5/8] 0, 128
        %1981 = vxpose.xlu0.c.b16.cont [6/8] 0, 128
        %1982 = vxpose.xlu0.c.b16.cont [7/8] 0, 128
        %1983 = vxpose.xlu0.c.b16.end [8/8] 0, 128
        %v1984 = vpop.trf.xlu0
        %v1985 = vpop.trf.xlu0
        %v1986 = vpop.trf.xlu0
        %v1987 = vpop.trf.xlu0
        %v1988 = vpop.trf.xlu0
        %v1989 = vpop.trf.xlu0
        %v1990 = vpop.trf.xlu0
        %v1991 = vpop.trf.xlu0
        %1992 = vxpose.xlu0.c.b16.start [1/8] %v1759, 128
        %1993 = vxpose.xlu0.c.b16.cont [2/8] 0, 128
        %1994 = vxpose.xlu0.c.b16.cont [3/8] 0, 128
        %1995 = vxpose.xlu0.c.b16.cont [4/8] 0, 128
        %1996 = vxpose.xlu0.c.b16.cont [5/8] 0, 128
        %1997 = vxpose.xlu0.c.b16.cont [6/8] 0, 128
        %1998 = vxpose.xlu0.c.b16.cont [7/8] 0, 128
        %1999 = vxpose.xlu0.c.b16.end [8/8] 0, 128
        %v2000 = vpop.trf.xlu0
        %v2001 = vpop.trf.xlu0
        %v2002 = vpop.trf.xlu0
        %v2003 = vpop.trf.xlu0
        %v2004 = vpop.trf.xlu0
        %v2005 = vpop.trf.xlu0
        %v2006 = vpop.trf.xlu0
        %v2007 = vpop.trf.xlu0
        %2008 = vxpose.xlu0.c.b16.start [1/8] %v1760, 128
        %2009 = vxpose.xlu0.c.b16.cont [2/8] 0, 128
        %2010 = vxpose.xlu0.c.b16.cont [3/8] 0, 128
        %2011 = vxpose.xlu0.c.b16.cont [4/8] 0, 128
        %2012 = vxpose.xlu0.c.b16.cont [5/8] 0, 128
        %2013 = vxpose.xlu0.c.b16.cont [6/8] 0, 128
        %2014 = vxpose.xlu0.c.b16.cont [7/8] 0, 128
        %2015 = vxpose.xlu0.c.b16.end [8/8] 0, 128
        %v2016 = vpop.trf.xlu0
        %v2017 = vpop.trf.xlu0
        %v2018 = vpop.trf.xlu0
        %v2019 = vpop.trf.xlu0
        %v2020 = vpop.trf.xlu0
        %v2021 = vpop.trf.xlu0
        %v2022 = vpop.trf.xlu0
        %v2023 = vpop.trf.xlu0
        %2024 = vxpose.xlu0.c.b16.start [1/8] %v1761, 128
        %2025 = vxpose.xlu0.c.b16.cont [2/8] 0, 128
        %2026 = vxpose.xlu0.c.b16.cont [3/8] 0, 128
        %2027 = vxpose.xlu0.c.b16.cont [4/8] 0, 128
        %2028 = vxpose.xlu0.c.b16.cont [5/8] 0, 128
        %2029 = vxpose.xlu0.c.b16.cont [6/8] 0, 128
        %2030 = vxpose.xlu0.c.b16.cont [7/8] 0, 128
        %2031 = vxpose.xlu0.c.b16.end [8/8] 0, 128
        %v2032 = vpop.trf.xlu0
        %v2033 = vpop.trf.xlu0
        %v2034 = vpop.trf.xlu0
        %v2035 = vpop.trf.xlu0
        %v2036 = vpop.trf.xlu0
        %v2037 = vpop.trf.xlu0
        %v2038 = vpop.trf.xlu0
        %v2039 = vpop.trf.xlu0
        %v2040 = vcombine.low %v1920, %v1984
        %v2042 = vunpack.c.l.s4 1983009808
        %v2043 = vunpack.c.0.s8 %v2042
        %v2044 = vlaneseq
        %v2045 = vshrl.u32 %v2044, 7
        %v2046 = vsub.s32 %v2043, %v2045
        %v2047 = vrot.slane %v2040, %v2046
        %v2048 = vcombine.low %v1952, %v2016
        %v2050 = vunpack.c.l.s4 1983009808
        %v2051 = vunpack.c.0.s8 %v2050
        %v2052 = vlaneseq
        %v2053 = vshrl.u32 %v2052, 7
        %v2054 = vsub.s32 %v2051, %v2053
        %v2055 = vrot.slane %v2048, %v2054
        %v2056 = vcombine.low %v2047, %v2055
        %v2057 = vcombine.high %v2047, %v2055
        %v2059 = vunpack.c.l.s4 1934713408
        %v2060 = vunpack.c.0.s8 %v2059
        %v2061 = vlaneseq
        %v2062 = vshrl.u32 %v2061, 7
        %v2063 = vsub.s32 %v2060, %v2062
        %v2064 = vrot.slane %v2056, %v2063
        %v2066 = vunpack.c.l.s4 1934713408
        %v2067 = vunpack.c.0.s8 %v2066
        %v2068 = vlaneseq
        %v2069 = vshrl.u32 %v2068, 7
        %v2070 = vsub.s32 %v2067, %v2069
        %v2071 = vrot.slane %v2057, %v2070
        %v2072 = vcombine.high %v2064, 0
        %v2073 = vcombine.high %v2071, 0
        %v2074 = vcombine.low %v1936, %v2000
        %v2076 = vunpack.c.l.s4 1983009808
        %v2077 = vunpack.c.0.s8 %v2076
        %v2078 = vlaneseq
        %v2079 = vshrl.u32 %v2078, 7
        %v2080 = vsub.s32 %v2077, %v2079
        %v2081 = vrot.slane %v2074, %v2080
        %v2082 = vcombine.low %v1968, %v2032
        %v2084 = vunpack.c.l.s4 1983009808
        %v2085 = vunpack.c.0.s8 %v2084
        %v2086 = vlaneseq
        %v2087 = vshrl.u32 %v2086, 7
        %v2088 = vsub.s32 %v2085, %v2087
        %v2089 = vrot.slane %v2082, %v2088
        %v2090 = vcombine.low %v2081, %v2089
        %v2091 = vcombine.high %v2081, %v2089
        %v2093 = vunpack.c.l.s4 1934713408
        %v2094 = vunpack.c.0.s8 %v2093
        %v2095 = vlaneseq
        %v2096 = vshrl.u32 %v2095, 7
        %v2097 = vsub.s32 %v2094, %v2096
        %v2098 = vrot.slane %v2090, %v2097
        %v2100 = vunpack.c.l.s4 1934713408
        %v2101 = vunpack.c.0.s8 %v2100
        %v2102 = vlaneseq
        %v2103 = vshrl.u32 %v2102, 7
        %v2104 = vsub.s32 %v2101, %v2103
        %v2105 = vrot.slane %v2091, %v2104
        %v2106 = vcombine.high %v2098, 0
        %v2107 = vcombine.high %v2105, 0
        %v2110 = vpack.i.b16 %v2098, %v2064
        %v2112 = vshrl.u32 %v2064, 16
        %v2113 = vshrl.u32 %v2098, 16
        %v2114 = vpack.i.b16 %v2113, %v2112
        %v2118 = vpack.i.b16 %v2106, %v2072
        %v2120 = vshrl.u32 %v2072, 16
        %v2121 = vshrl.u32 %v2106, 16
        %v2122 = vpack.i.b16 %v2121, %v2120
        %v2126 = vpack.i.b16 %v2105, %v2071
        %v2128 = vshrl.u32 %v2071, 16
        %v2129 = vshrl.u32 %v2105, 16
        %v2130 = vpack.i.b16 %v2129, %v2128
        %v2134 = vpack.i.b16 %v2107, %v2073
        %v2136 = vshrl.u32 %v2073, 16
        %v2137 = vshrl.u32 %v2107, 16
        %v2138 = vpack.i.b16 %v2137, %v2136
        %2140 = vxpose.xlu0.c.b16.start [1/8] %v2110, 128
        %2141 = vxpose.xlu0.c.b16.cont [2/8] 0, 128
        %2142 = vxpose.xlu0.c.b16.cont [3/8] 0, 128
        %2143 = vxpose.xlu0.c.b16.cont [4/8] 0, 128
        %2144 = vxpose.xlu0.c.b16.cont [5/8] 0, 128
        %2145 = vxpose.xlu0.c.b16.cont [6/8] 0, 128
        %2146 = vxpose.xlu0.c.b16.cont [7/8] 0, 128
        %2147 = vxpose.xlu0.c.b16.end [8/8] 0, 128
        %v2148 = vpop.trf.xlu0
        %v2149 = vpop.trf.xlu0
        %v2150 = vpop.trf.xlu0
        %v2151 = vpop.trf.xlu0
        %v2152 = vpop.trf.xlu0
        %v2153 = vpop.trf.xlu0
        %v2154 = vpop.trf.xlu0
        %v2155 = vpop.trf.xlu0
        %2156 = vxpose.xlu0.c.b16.start [1/8] %v2114, 128
        %2157 = vxpose.xlu0.c.b16.cont [2/8] 0, 128
        %2158 = vxpose.xlu0.c.b16.cont [3/8] 0, 128
        %2159 = vxpose.xlu0.c.b16.cont [4/8] 0, 128
        %2160 = vxpose.xlu0.c.b16.cont [5/8] 0, 128
        %2161 = vxpose.xlu0.c.b16.cont [6/8] 0, 128
        %2162 = vxpose.xlu0.c.b16.cont [7/8] 0, 128
        %2163 = vxpose.xlu0.c.b16.end [8/8] 0, 128
        %v2164 = vpop.trf.xlu0
        %v2165 = vpop.trf.xlu0
        %v2166 = vpop.trf.xlu0
        %v2167 = vpop.trf.xlu0
        %v2168 = vpop.trf.xlu0
        %v2169 = vpop.trf.xlu0
        %v2170 = vpop.trf.xlu0
        %v2171 = vpop.trf.xlu0
        %2172 = vxpose.xlu0.c.b16.start [1/8] %v2118, 128
        %2173 = vxpose.xlu0.c.b16.cont [2/8] 0, 128
        %2174 = vxpose.xlu0.c.b16.cont [3/8] 0, 128
        %2175 = vxpose.xlu0.c.b16.cont [4/8] 0, 128
        %2176 = vxpose.xlu0.c.b16.cont [5/8] 0, 128
        %2177 = vxpose.xlu0.c.b16.cont [6/8] 0, 128
        %2178 = vxpose.xlu0.c.b16.cont [7/8] 0, 128
        %2179 = vxpose.xlu0.c.b16.end [8/8] 0, 128
        %v2180 = vpop.trf.xlu0
        %v2181 = vpop.trf.xlu0
        %v2182 = vpop.trf.xlu0
        %v2183 = vpop.trf.xlu0
        %v2184 = vpop.trf.xlu0
        %v2185 = vpop.trf.xlu0
        %v2186 = vpop.trf.xlu0
        %v2187 = vpop.trf.xlu0
        %2188 = vxpose.xlu0.c.b16.start [1/8] %v2122, 128
        %2189 = vxpose.xlu0.c.b16.cont [2/8] 0, 128
        %2190 = vxpose.xlu0.c.b16.cont [3/8] 0, 128
        %2191 = vxpose.xlu0.c.b16.cont [4/8] 0, 128
        %2192 = vxpose.xlu0.c.b16.cont [5/8] 0, 128
        %2193 = vxpose.xlu0.c.b16.cont [6/8] 0, 128
        %2194 = vxpose.xlu0.c.b16.cont [7/8] 0, 128
        %2195 = vxpose.xlu0.c.b16.end [8/8] 0, 128
        %v2196 = vpop.trf.xlu0
        %v2197 = vpop.trf.xlu0
        %v2198 = vpop.trf.xlu0
        %v2199 = vpop.trf.xlu0
        %v2200 = vpop.trf.xlu0
        %v2201 = vpop.trf.xlu0
        %v2202 = vpop.trf.xlu0
        %v2203 = vpop.trf.xlu0
        %2204 = vxpose.xlu0.c.b16.start [1/8] %v2126, 128
        %2205 = vxpose.xlu0.c.b16.cont [2/8] 0, 128
        %2206 = vxpose.xlu0.c.b16.cont [3/8] 0, 128
        %2207 = vxpose.xlu0.c.b16.cont [4/8] 0, 128
        %2208 = vxpose.xlu0.c.b16.cont [5/8] 0, 128
        %2209 = vxpose.xlu0.c.b16.cont [6/8] 0, 128
        %2210 = vxpose.xlu0.c.b16.cont [7/8] 0, 128
        %2211 = vxpose.xlu0.c.b16.end [8/8] 0, 128
        %v2212 = vpop.trf.xlu0
        %v2213 = vpop.trf.xlu0
        %v2214 = vpop.trf.xlu0
        %v2215 = vpop.trf.xlu0
        %v2216 = vpop.trf.xlu0
        %v2217 = vpop.trf.xlu0
        %v2218 = vpop.trf.xlu0
        %v2219 = vpop.trf.xlu0
        %2220 = vxpose.xlu0.c.b16.start [1/8] %v2130, 128
        %2221 = vxpose.xlu0.c.b16.cont [2/8] 0, 128
        %2222 = vxpose.xlu0.c.b16.cont [3/8] 0, 128
        %2223 = vxpose.xlu0.c.b16.cont [4/8] 0, 128
        %2224 = vxpose.xlu0.c.b16.cont [5/8] 0, 128
        %2225 = vxpose.xlu0.c.b16.cont [6/8] 0, 128
        %2226 = vxpose.xlu0.c.b16.cont [7/8] 0, 128
        %2227 = vxpose.xlu0.c.b16.end [8/8] 0, 128
        %v2228 = vpop.trf.xlu0
        %v2229 = vpop.trf.xlu0
        %v2230 = vpop.trf.xlu0
        %v2231 = vpop.trf.xlu0
        %v2232 = vpop.trf.xlu0
        %v2233 = vpop.trf.xlu0
        %v2234 = vpop.trf.xlu0
        %v2235 = vpop.trf.xlu0
        %2236 = vxpose.xlu0.c.b16.start [1/8] %v2134, 128
        %2237 = vxpose.xlu0.c.b16.cont [2/8] 0, 128
        %2238 = vxpose.xlu0.c.b16.cont [3/8] 0, 128
        %2239 = vxpose.xlu0.c.b16.cont [4/8] 0, 128
        %2240 = vxpose.xlu0.c.b16.cont [5/8] 0, 128
        %2241 = vxpose.xlu0.c.b16.cont [6/8] 0, 128
        %2242 = vxpose.xlu0.c.b16.cont [7/8] 0, 128
        %2243 = vxpose.xlu0.c.b16.end [8/8] 0, 128
        %v2244 = vpop.trf.xlu0
        %v2245 = vpop.trf.xlu0
        %v2246 = vpop.trf.xlu0
        %v2247 = vpop.trf.xlu0
        %v2248 = vpop.trf.xlu0
        %v2249 = vpop.trf.xlu0
        %v2250 = vpop.trf.xlu0
        %v2251 = vpop.trf.xlu0
        %2252 = vxpose.xlu0.c.b16.start [1/8] %v2138, 128
        %2253 = vxpose.xlu0.c.b16.cont [2/8] 0, 128
        %2254 = vxpose.xlu0.c.b16.cont [3/8] 0, 128
        %2255 = vxpose.xlu0.c.b16.cont [4/8] 0, 128
        %2256 = vxpose.xlu0.c.b16.cont [5/8] 0, 128
        %2257 = vxpose.xlu0.c.b16.cont [6/8] 0, 128
        %2258 = vxpose.xlu0.c.b16.cont [7/8] 0, 128
        %2259 = vxpose.xlu0.c.b16.end [8/8] 0, 128
        %v2260 = vpop.trf.xlu0
        %v2261 = vpop.trf.xlu0
        %v2262 = vpop.trf.xlu0
        %v2263 = vpop.trf.xlu0
        %v2264 = vpop.trf.xlu0
        %v2265 = vpop.trf.xlu0
        %v2266 = vpop.trf.xlu0
        %v2267 = vpop.trf.xlu0
        %v2268 = vcombine.low %v2148, %v2212
        %v2270 = vunpack.c.l.s4 1983009808
        %v2271 = vunpack.c.0.s8 %v2270
        %v2272 = vlaneseq
        %v2273 = vshrl.u32 %v2272, 7
        %v2274 = vsub.s32 %v2271, %v2273
        %v2275 = vrot.slane %v2268, %v2274
        %v2276 = vcombine.low %v2180, %v2244
        %v2278 = vunpack.c.l.s4 1983009808
        %v2279 = vunpack.c.0.s8 %v2278
        %v2280 = vlaneseq
        %v2281 = vshrl.u32 %v2280, 7
        %v2282 = vsub.s32 %v2279, %v2281
        %v2283 = vrot.slane %v2276, %v2282
        %v2284 = vcombine.low %v2275, %v2283
        %v2286 = vunpack.c.l.s4 1934713408
        %v2287 = vunpack.c.0.s8 %v2286
        %v2288 = vlaneseq
        %v2289 = vshrl.u32 %v2288, 7
        %v2290 = vsub.s32 %v2287, %v2289
        %v2291 = vrot.slane %v2284, %v2290
        %v2292 = vcombine.high %v2291, 0
        %v2293 = vcombine.low %v2164, %v2228
        %v2295 = vunpack.c.l.s4 1983009808
        %v2296 = vunpack.c.0.s8 %v2295
        %v2297 = vlaneseq
        %v2298 = vshrl.u32 %v2297, 7
        %v2299 = vsub.s32 %v2296, %v2298
        %v2300 = vrot.slane %v2293, %v2299
        %v2301 = vcombine.low %v2196, %v2260
        %v2303 = vunpack.c.l.s4 1983009808
        %v2304 = vunpack.c.0.s8 %v2303
        %v2305 = vlaneseq
        %v2306 = vshrl.u32 %v2305, 7
        %v2307 = vsub.s32 %v2304, %v2306
        %v2308 = vrot.slane %v2301, %v2307
        %v2309 = vcombine.low %v2300, %v2308
        %v2311 = vunpack.c.l.s4 1934713408
        %v2312 = vunpack.c.0.s8 %v2311
        %v2313 = vlaneseq
        %v2314 = vshrl.u32 %v2313, 7
        %v2315 = vsub.s32 %v2312, %v2314
        %v2316 = vrot.slane %v2309, %v2315
        %v2317 = vcombine.high %v2316, 0
        %v2320 = vpack.i.b16 %v2316, %v2291
        %v2321 = vshrl.u32 %v2291, 16
        %v2322 = vshrl.u32 %v2316, 16
        %v2323 = vpack.i.b16 %v2322, %v2321
        %v2326 = vpack.i.b16 %v2317, %v2292
        %v2327 = vshrl.u32 %v2292, 16
        %v2328 = vshrl.u32 %v2317, 16
        %v2329 = vpack.i.b16 %v2328, %v2327
        %vm2330 = vcmask 64512
        %v2332 = vsel %vm2330, %v1902, 0
        %vm2334 = vcmask 1043456
        %v2336 = vsel %vm2334, %v2320, 0
        %2338 = vmatprep.subr.bf16.mxu0 0
        %2339 = vmatpush1.bf16.msra.mxu0 0
        %2340 = vmatprep.subr.bf16.mxu0 0
        %2341 = vmatpush1.bf16.msra.mxu0 0
        %2342 = vmatprep.subr.bf16.mxu0 0
        %2343 = vmatpush1.bf16.msra.mxu0 0
        %2344 = vmatprep.subr.bf16.mxu0 0
        %2345 = vmatpush1.bf16.msra.mxu0 0
        %2346 = vmatprep.subr.bf16.mxu0 0
        %2347 = vmatpush1.bf16.msra.mxu0 0
        %2348 = vmatprep.subr.bf16.mxu0 0
        %2349 = vmatpush1.bf16.msra.mxu0 0
        %2350 = vmatprep.subr.bf16.mxu0 0
        %2351 = vmatpush1.bf16.msra.mxu0 0
        %2352 = vmatprep.subr.bf16.mxu0 0
        %2353 = vmatpush1.bf16.msra.mxu0 %v2336
        %2354 = vmatprep.subr.bf16.mxu0 0
        %2355 = vmatpush2.bf16.msra.mxu0 0
        %2356 = vmatprep.subr.bf16.mxu0 0
        %2357 = vmatpush2.bf16.msra.mxu0 0
        %2358 = vmatprep.subr.bf16.mxu0 0
        %2359 = vmatpush2.bf16.msra.mxu0 0
        %2360 = vmatprep.subr.bf16.mxu0 0
        %2361 = vmatpush2.bf16.msra.mxu0 0
        %2362 = vmatprep.subr.bf16.mxu0 0
        %2363 = vmatpush2.bf16.msra.mxu0 0
        %2364 = vmatprep.subr.bf16.mxu0 0
        %2365 = vmatpush2.bf16.msra.mxu0 0
        %2366 = vmatprep.subr.bf16.mxu0 0
        %2367 = vmatpush2.bf16.msra.mxu0 0
        %2368 = vmatprep.subr.bf16.mxu0 0
        %2369 = vmatpush2.bf16.msra.mxu0 0
        %2370 = vmatprep.mubr.bf16.mxu0 0
        %2371 = vmatmul.mubr.bf16.gmra.mxu0 %v2332
        %v2372 = vpop.f32.mrf.mxu0
        %v2373 = vadd.f32 0.0, %v2372
        %v2374 = vpop.f32.mrf.mxu0
        %v2375 = vpop.f32.mrf.mxu0
        %v2376 = vpop.f32.mrf.mxu0
        %2377 = vdwg.mxu0
        %v2379 = vsel %vm2330, %v1905, 0
        %v2382 = vsel %vm2334, %v2323, 0
        %2384 = vmatprep.subr.bf16.mxu0 0
        %2385 = vmatpush1.bf16.msra.mxu0 0
        %2386 = vmatprep.subr.bf16.mxu0 0
        %2387 = vmatpush1.bf16.msra.mxu0 0
        %2388 = vmatprep.subr.bf16.mxu0 0
        %2389 = vmatpush1.bf16.msra.mxu0 0
        %2390 = vmatprep.subr.bf16.mxu0 0
        %2391 = vmatpush1.bf16.msra.mxu0 0
        %2392 = vmatprep.subr.bf16.mxu0 0
        %2393 = vmatpush1.bf16.msra.mxu0 0
        %2394 = vmatprep.subr.bf16.mxu0 0
        %2395 = vmatpush1.bf16.msra.mxu0 0
        %2396 = vmatprep.subr.bf16.mxu0 0
        %2397 = vmatpush1.bf16.msra.mxu0 0
        %2398 = vmatprep.subr.bf16.mxu0 0
        %2399 = vmatpush1.bf16.msra.mxu0 %v2382
        %2400 = vmatprep.subr.bf16.mxu0 0
        %2401 = vmatpush2.bf16.msra.mxu0 0
        %2402 = vmatprep.subr.bf16.mxu0 0
        %2403 = vmatpush2.bf16.msra.mxu0 0
        %2404 = vmatprep.subr.bf16.mxu0 0
        %2405 = vmatpush2.bf16.msra.mxu0 0
        %2406 = vmatprep.subr.bf16.mxu0 0
        %2407 = vmatpush2.bf16.msra.mxu0 0
        %2408 = vmatprep.subr.bf16.mxu0 0
        %2409 = vmatpush2.bf16.msra.mxu0 0
        %2410 = vmatprep.subr.bf16.mxu0 0
        %2411 = vmatpush2.bf16.msra.mxu0 0
        %2412 = vmatprep.subr.bf16.mxu0 0
        %2413 = vmatpush2.bf16.msra.mxu0 0
        %2414 = vmatprep.subr.bf16.mxu0 0
        %2415 = vmatpush2.bf16.msra.mxu0 0
        %2416 = vmatprep.mubr.bf16.mxu0 0
        %2417 = vmatmul.mubr.bf16.gmra.mxu0 %v2379
        %v2418 = vpop.f32.mrf.mxu0
        %v2419 = vadd.f32 0.0, %v2418
        %v2420 = vpop.f32.mrf.mxu0
        %v2421 = vpop.f32.mrf.mxu0
        %v2422 = vpop.f32.mrf.mxu0
        %2423 = vdwg.mxu0
        %v2425 = vsel %vm2330, %v1908, 0
        %v2428 = vsel %vm2334, %v2326, 0
        %2430 = vmatprep.subr.bf16.mxu0 0
        %2431 = vmatpush1.bf16.msra.mxu0 0
        %2432 = vmatprep.subr.bf16.mxu0 0
        %2433 = vmatpush1.bf16.msra.mxu0 0
        %2434 = vmatprep.subr.bf16.mxu0 0
        %2435 = vmatpush1.bf16.msra.mxu0 0
        %2436 = vmatprep.subr.bf16.mxu0 0
        %2437 = vmatpush1.bf16.msra.mxu0 0
        %2438 = vmatprep.subr.bf16.mxu0 0
        %2439 = vmatpush1.bf16.msra.mxu0 0
        %2440 = vmatprep.subr.bf16.mxu0 0
        %2441 = vmatpush1.bf16.msra.mxu0 0
        %2442 = vmatprep.subr.bf16.mxu0 0
        %2443 = vmatpush1.bf16.msra.mxu0 0
        %2444 = vmatprep.subr.bf16.mxu0 0
        %2445 = vmatpush1.bf16.msra.mxu0 %v2428
        %2446 = vmatprep.subr.bf16.mxu0 0
        %2447 = vmatpush2.bf16.msra.mxu0 0
        %2448 = vmatprep.subr.bf16.mxu0 0
        %2449 = vmatpush2.bf16.msra.mxu0 0
        %2450 = vmatprep.subr.bf16.mxu0 0
        %2451 = vmatpush2.bf16.msra.mxu0 0
        %2452 = vmatprep.subr.bf16.mxu0 0
        %2453 = vmatpush2.bf16.msra.mxu0 0
        %2454 = vmatprep.subr.bf16.mxu0 0
        %2455 = vmatpush2.bf16.msra.mxu0 0
        %2456 = vmatprep.subr.bf16.mxu0 0
        %2457 = vmatpush2.bf16.msra.mxu0 0
        %2458 = vmatprep.subr.bf16.mxu0 0
        %2459 = vmatpush2.bf16.msra.mxu0 0
        %2460 = vmatprep.subr.bf16.mxu0 0
        %2461 = vmatpush2.bf16.msra.mxu0 0
        %2462 = vmatprep.mubr.bf16.mxu0 0
        %2463 = vmatmul.mubr.bf16.gmra.mxu0 %v2425
        %v2464 = vpop.f32.mrf.mxu0
        %v2465 = vadd.f32 0.0, %v2464
        %v2466 = vpop.f32.mrf.mxu0
        %v2467 = vpop.f32.mrf.mxu0
        %v2468 = vpop.f32.mrf.mxu0
        %2469 = vdwg.mxu0
        %v2471 = vsel %vm2330, %v1911, 0
        %v2474 = vsel %vm2334, %v2329, 0
        %2476 = vmatprep.subr.bf16.mxu0 0
        %2477 = vmatpush1.bf16.msra.mxu0 0
        %2478 = vmatprep.subr.bf16.mxu0 0
        %2479 = vmatpush1.bf16.msra.mxu0 0
        %2480 = vmatprep.subr.bf16.mxu0 0
        %2481 = vmatpush1.bf16.msra.mxu0 0
        %2482 = vmatprep.subr.bf16.mxu0 0
        %2483 = vmatpush1.bf16.msra.mxu0 0
        %2484 = vmatprep.subr.bf16.mxu0 0
        %2485 = vmatpush1.bf16.msra.mxu0 0
        %2486 = vmatprep.subr.bf16.mxu0 0
        %2487 = vmatpush1.bf16.msra.mxu0 0
        %2488 = vmatprep.subr.bf16.mxu0 0
        %2489 = vmatpush1.bf16.msra.mxu0 0
        %2490 = vmatprep.subr.bf16.mxu0 0
        %2491 = vmatpush1.bf16.msra.mxu0 %v2474
        %2492 = vmatprep.subr.bf16.mxu0 0
        %2493 = vmatpush2.bf16.msra.mxu0 0
        %2494 = vmatprep.subr.bf16.mxu0 0
        %2495 = vmatpush2.bf16.msra.mxu0 0
        %2496 = vmatprep.subr.bf16.mxu0 0
        %2497 = vmatpush2.bf16.msra.mxu0 0
        %2498 = vmatprep.subr.bf16.mxu0 0
        %2499 = vmatpush2.bf16.msra.mxu0 0
        %2500 = vmatprep.subr.bf16.mxu0 0
        %2501 = vmatpush2.bf16.msra.mxu0 0
        %2502 = vmatprep.subr.bf16.mxu0 0
        %2503 = vmatpush2.bf16.msra.mxu0 0
        %2504 = vmatprep.subr.bf16.mxu0 0
        %2505 = vmatpush2.bf16.msra.mxu0 0
        %2506 = vmatprep.subr.bf16.mxu0 0
        %2507 = vmatpush2.bf16.msra.mxu0 0
        %2508 = vmatprep.mubr.bf16.mxu0 0
        %2509 = vmatmul.mubr.bf16.gmra.mxu0 %v2471
        %v2510 = vpop.f32.mrf.mxu0
        %v2511 = vadd.f32 0.0, %v2510
        %v2512 = vpop.f32.mrf.mxu0
        %v2513 = vpop.f32.mrf.mxu0
        %v2514 = vpop.f32.mrf.mxu0
        %2515 = vdwg.mxu0
        %v2516 = vmul.f32 %v2373, 0.35355338
        %v2517 = vmul.f32 %v2419, 0.35355338
        %v2518 = vmul.f32 %v2465, 0.35355338
        %v2519 = vmul.f32 %v2511, 0.35355338
        %v2520 = vlaneseq
        %v2521 = vand.u32 %v2520, 127
        %vm2522 = vcmp.lt.s32.totalorder %v2521, 5
        %v2523 = vsel %vm2522, %v2516, -1e+30
        %v2524 = vsel %vm2522, %v2517, -1e+30
        %v2525 = vsel %vm2522, %v2518, -1e+30
        %v2526 = vsel %vm2522, %v2519, -1e+30
        %v2527 = vsel %vm2330, %v2523, -inf
        %2528 = vmax.xlane.f32.xlu0 %v2527
        %v2529 = vpop.xlane.xlu0 %2528
        %v2530 = vsel %vm2330, %v2524, -inf
        %2531 = vmax.xlane.f32.xlu0 %v2530
        %v2532 = vpop.xlane.xlu0 %2531
        %v2533 = vsel %vm2330, %v2525, -inf
        %2534 = vmax.xlane.f32.xlu0 %v2533
        %v2535 = vpop.xlane.xlu0 %2534
        %v2536 = vsel %vm2330, %v2526, -inf
        %2537 = vmax.xlane.f32.xlu0 %v2536
        %v2538 = vpop.xlane.xlu0 %2537
        %v2539 = vsub.f32 %v2523, %v2529
        %v2540 = vsub.f32 %v2524, %v2532
        %v2541 = vsub.f32 %v2525, %v2535
        %v2542 = vsub.f32 %v2526, %v2538
        %v2543 = vmul.f32 %v2539, 1.442695
        %v2544 = vpow.pop %v2543
        %v2545 = vmul.f32 %v2540, 1.442695
        %v2546 = vpow.pop %v2545
        %v2547 = vmul.f32 %v2541, 1.442695
        %v2548 = vpow.pop %v2547
        %v2549 = vmul.f32 %v2542, 1.442695
        %v2550 = vpow.pop %v2549
        %v2551 = vsel %vm2330, %v2544, 0.0
        %2552 = vadd.xlane.f32.xlu0 %v2551
        %v2553 = vpop.xlane.xlu0 %2552
        %v2554 = vsel %vm2330, %v2546, 0.0
        %2555 = vadd.xlane.f32.xlu0 %v2554
        %v2556 = vpop.xlane.xlu0 %2555
        %v2557 = vsel %vm2330, %v2548, 0.0
        %2558 = vadd.xlane.f32.xlu0 %v2557
        %v2559 = vpop.xlane.xlu0 %2558
        %v2560 = vsel %vm2330, %v2550, 0.0
        %2561 = vadd.xlane.f32.xlu0 %v2560
        %v2562 = vpop.xlane.xlu0 %2561
        %v2563 = vrcp.pop %v2553
        %v2564 = vrcp.pop %v2556
        %v2565 = vrcp.pop %v2559
        %v2566 = vrcp.pop %v2562
        %v2567 = vmul.f32 %v2544, %v2563
        %v2568 = vmul.f32 %v2546, %v2564
        %v2569 = vmul.f32 %v2548, %v2565
        %v2570 = vmul.f32 %v2550, %v2566
        %v2571 = vpack.c.bf16 %v2567, %v2567
        %v2572 = vpack.c.bf16 %v2568, %v2568
        %v2573 = vpack.c.bf16 %v2569, %v2569
        %v2574 = vpack.c.bf16 %v2570, %v2570
        %2575 = vxpose.xlu0.c.b16.start [1/8] %v1842, 128
        %2576 = vxpose.xlu0.c.b16.cont [2/8] 0, 128
        %2577 = vxpose.xlu0.c.b16.cont [3/8] 0, 128
        %2578 = vxpose.xlu0.c.b16.cont [4/8] 0, 128
        %2579 = vxpose.xlu0.c.b16.cont [5/8] 0, 128
        %2580 = vxpose.xlu0.c.b16.cont [6/8] 0, 128
        %2581 = vxpose.xlu0.c.b16.cont [7/8] 0, 128
        %2582 = vxpose.xlu0.c.b16.end [8/8] 0, 128
        %v2583 = vpop.trf.xlu0
        %v2584 = vpop.trf.xlu0
        %v2585 = vpop.trf.xlu0
        %v2586 = vpop.trf.xlu0
        %v2587 = vpop.trf.xlu0
        %v2588 = vpop.trf.xlu0
        %v2589 = vpop.trf.xlu0
        %v2590 = vpop.trf.xlu0
        %2591 = vxpose.xlu0.c.b16.start [1/8] %v1843, 128
        %2592 = vxpose.xlu0.c.b16.cont [2/8] 0, 128
        %2593 = vxpose.xlu0.c.b16.cont [3/8] 0, 128
        %2594 = vxpose.xlu0.c.b16.cont [4/8] 0, 128
        %2595 = vxpose.xlu0.c.b16.cont [5/8] 0, 128
        %2596 = vxpose.xlu0.c.b16.cont [6/8] 0, 128
        %2597 = vxpose.xlu0.c.b16.cont [7/8] 0, 128
        %2598 = vxpose.xlu0.c.b16.end [8/8] 0, 128
        %v2599 = vpop.trf.xlu0
        %v2600 = vpop.trf.xlu0
        %v2601 = vpop.trf.xlu0
        %v2602 = vpop.trf.xlu0
        %v2603 = vpop.trf.xlu0
        %v2604 = vpop.trf.xlu0
        %v2605 = vpop.trf.xlu0
        %v2606 = vpop.trf.xlu0
        %2607 = vxpose.xlu0.c.b16.start [1/8] %v1844, 128
        %2608 = vxpose.xlu0.c.b16.cont [2/8] 0, 128
        %2609 = vxpose.xlu0.c.b16.cont [3/8] 0, 128
        %2610 = vxpose.xlu0.c.b16.cont [4/8] 0, 128
        %2611 = vxpose.xlu0.c.b16.cont [5/8] 0, 128
        %2612 = vxpose.xlu0.c.b16.cont [6/8] 0, 128
        %2613 = vxpose.xlu0.c.b16.cont [7/8] 0, 128
        %2614 = vxpose.xlu0.c.b16.end [8/8] 0, 128
        %v2615 = vpop.trf.xlu0
        %v2616 = vpop.trf.xlu0
        %v2617 = vpop.trf.xlu0
        %v2618 = vpop.trf.xlu0
        %v2619 = vpop.trf.xlu0
        %v2620 = vpop.trf.xlu0
        %v2621 = vpop.trf.xlu0
        %v2622 = vpop.trf.xlu0
        %2623 = vxpose.xlu0.c.b16.start [1/8] %v1845, 128
        %2624 = vxpose.xlu0.c.b16.cont [2/8] 0, 128
        %2625 = vxpose.xlu0.c.b16.cont [3/8] 0, 128
        %2626 = vxpose.xlu0.c.b16.cont [4/8] 0, 128
        %2627 = vxpose.xlu0.c.b16.cont [5/8] 0, 128
        %2628 = vxpose.xlu0.c.b16.cont [6/8] 0, 128
        %2629 = vxpose.xlu0.c.b16.cont [7/8] 0, 128
        %2630 = vxpose.xlu0.c.b16.end [8/8] 0, 128
        %v2631 = vpop.trf.xlu0
        %v2632 = vpop.trf.xlu0
        %v2633 = vpop.trf.xlu0
        %v2634 = vpop.trf.xlu0
        %v2635 = vpop.trf.xlu0
        %v2636 = vpop.trf.xlu0
        %v2637 = vpop.trf.xlu0
        %v2638 = vpop.trf.xlu0
        %2639 = vxpose.xlu0.c.b16.start [1/8] %v1846, 128
        %2640 = vxpose.xlu0.c.b16.cont [2/8] 0, 128
        %2641 = vxpose.xlu0.c.b16.cont [3/8] 0, 128
        %2642 = vxpose.xlu0.c.b16.cont [4/8] 0, 128
        %2643 = vxpose.xlu0.c.b16.cont [5/8] 0, 128
        %2644 = vxpose.xlu0.c.b16.cont [6/8] 0, 128
        %2645 = vxpose.xlu0.c.b16.cont [7/8] 0, 128
        %2646 = vxpose.xlu0.c.b16.end [8/8] 0, 128
        %v2647 = vpop.trf.xlu0
        %v2648 = vpop.trf.xlu0
        %v2649 = vpop.trf.xlu0
        %v2650 = vpop.trf.xlu0
        %v2651 = vpop.trf.xlu0
        %v2652 = vpop.trf.xlu0
        %v2653 = vpop.trf.xlu0
        %v2654 = vpop.trf.xlu0
        %2655 = vxpose.xlu0.c.b16.start [1/8] %v1847, 128
        %2656 = vxpose.xlu0.c.b16.cont [2/8] 0, 128
        %2657 = vxpose.xlu0.c.b16.cont [3/8] 0, 128
        %2658 = vxpose.xlu0.c.b16.cont [4/8] 0, 128
        %2659 = vxpose.xlu0.c.b16.cont [5/8] 0, 128
        %2660 = vxpose.xlu0.c.b16.cont [6/8] 0, 128
        %2661 = vxpose.xlu0.c.b16.cont [7/8] 0, 128
        %2662 = vxpose.xlu0.c.b16.end [8/8] 0, 128
        %v2663 = vpop.trf.xlu0
        %v2664 = vpop.trf.xlu0
        %v2665 = vpop.trf.xlu0
        %v2666 = vpop.trf.xlu0
        %v2667 = vpop.trf.xlu0
        %v2668 = vpop.trf.xlu0
        %v2669 = vpop.trf.xlu0
        %v2670 = vpop.trf.xlu0
        %2671 = vxpose.xlu0.c.b16.start [1/8] %v1848, 128
        %2672 = vxpose.xlu0.c.b16.cont [2/8] 0, 128
        %2673 = vxpose.xlu0.c.b16.cont [3/8] 0, 128
        %2674 = vxpose.xlu0.c.b16.cont [4/8] 0, 128
        %2675 = vxpose.xlu0.c.b16.cont [5/8] 0, 128
        %2676 = vxpose.xlu0.c.b16.cont [6/8] 0, 128
        %2677 = vxpose.xlu0.c.b16.cont [7/8] 0, 128
        %2678 = vxpose.xlu0.c.b16.end [8/8] 0, 128
        %v2679 = vpop.trf.xlu0
        %v2680 = vpop.trf.xlu0
        %v2681 = vpop.trf.xlu0
        %v2682 = vpop.trf.xlu0
        %v2683 = vpop.trf.xlu0
        %v2684 = vpop.trf.xlu0
        %v2685 = vpop.trf.xlu0
        %v2686 = vpop.trf.xlu0
        %2687 = vxpose.xlu0.c.b16.start [1/8] %v1849, 128
        %2688 = vxpose.xlu0.c.b16.cont [2/8] 0, 128
        %2689 = vxpose.xlu0.c.b16.cont [3/8] 0, 128
        %2690 = vxpose.xlu0.c.b16.cont [4/8] 0, 128
        %2691 = vxpose.xlu0.c.b16.cont [5/8] 0, 128
        %2692 = vxpose.xlu0.c.b16.cont [6/8] 0, 128
        %2693 = vxpose.xlu0.c.b16.cont [7/8] 0, 128
        %2694 = vxpose.xlu0.c.b16.end [8/8] 0, 128
        %v2695 = vpop.trf.xlu0
        %v2696 = vpop.trf.xlu0
        %v2697 = vpop.trf.xlu0
        %v2698 = vpop.trf.xlu0
        %v2699 = vpop.trf.xlu0
        %v2700 = vpop.trf.xlu0
        %v2701 = vpop.trf.xlu0
        %v2702 = vpop.trf.xlu0
        %v2703 = vcombine.low %v2583, %v2647
        %v2705 = vunpack.c.l.s4 1983009808
        %v2706 = vunpack.c.0.s8 %v2705
        %v2707 = vlaneseq
        %v2708 = vshrl.u32 %v2707, 7
        %v2709 = vsub.s32 %v2706, %v2708
        %v2710 = vrot.slane %v2703, %v2709
        %v2711 = vcombine.low %v2615, %v2679
        %v2713 = vunpack.c.l.s4 1983009808
        %v2714 = vunpack.c.0.s8 %v2713
        %v2715 = vlaneseq
        %v2716 = vshrl.u32 %v2715, 7
        %v2717 = vsub.s32 %v2714, %v2716
        %v2718 = vrot.slane %v2711, %v2717
        %v2719 = vcombine.low %v2710, %v2718
        %v2720 = vcombine.high %v2710, %v2718
        %v2722 = vunpack.c.l.s4 1934713408
        %v2723 = vunpack.c.0.s8 %v2722
        %v2724 = vlaneseq
        %v2725 = vshrl.u32 %v2724, 7
        %v2726 = vsub.s32 %v2723, %v2725
        %v2727 = vrot.slane %v2719, %v2726
        %v2729 = vunpack.c.l.s4 1934713408
        %v2730 = vunpack.c.0.s8 %v2729
        %v2731 = vlaneseq
        %v2732 = vshrl.u32 %v2731, 7
        %v2733 = vsub.s32 %v2730, %v2732
        %v2734 = vrot.slane %v2720, %v2733
        %v2735 = vcombine.high %v2727, 0
        %v2736 = vcombine.high %v2734, 0
        %v2737 = vcombine.low %v2599, %v2663
        %v2739 = vunpack.c.l.s4 1983009808
        %v2740 = vunpack.c.0.s8 %v2739
        %v2741 = vlaneseq
        %v2742 = vshrl.u32 %v2741, 7
        %v2743 = vsub.s32 %v2740, %v2742
        %v2744 = vrot.slane %v2737, %v2743
        %v2745 = vcombine.low %v2631, %v2695
        %v2747 = vunpack.c.l.s4 1983009808
        %v2748 = vunpack.c.0.s8 %v2747
        %v2749 = vlaneseq
        %v2750 = vshrl.u32 %v2749, 7
        %v2751 = vsub.s32 %v2748, %v2750
        %v2752 = vrot.slane %v2745, %v2751
        %v2753 = vcombine.low %v2744, %v2752
        %v2754 = vcombine.high %v2744, %v2752
        %v2756 = vunpack.c.l.s4 1934713408
        %v2757 = vunpack.c.0.s8 %v2756
        %v2758 = vlaneseq
        %v2759 = vshrl.u32 %v2758, 7
        %v2760 = vsub.s32 %v2757, %v2759
        %v2761 = vrot.slane %v2753, %v2760
        %v2763 = vunpack.c.l.s4 1934713408
        %v2764 = vunpack.c.0.s8 %v2763
        %v2765 = vlaneseq
        %v2766 = vshrl.u32 %v2765, 7
        %v2767 = vsub.s32 %v2764, %v2766
        %v2768 = vrot.slane %v2754, %v2767
        %v2769 = vcombine.high %v2761, 0
        %v2770 = vcombine.high %v2768, 0
        %v2773 = vpack.i.b16 %v2761, %v2727
        %v2775 = vshrl.u32 %v2727, 16
        %v2776 = vshrl.u32 %v2761, 16
        %v2777 = vpack.i.b16 %v2776, %v2775
        %v2781 = vpack.i.b16 %v2769, %v2735
        %v2783 = vshrl.u32 %v2735, 16
        %v2784 = vshrl.u32 %v2769, 16
        %v2785 = vpack.i.b16 %v2784, %v2783
        %v2789 = vpack.i.b16 %v2768, %v2734
        %v2791 = vshrl.u32 %v2734, 16
        %v2792 = vshrl.u32 %v2768, 16
        %v2793 = vpack.i.b16 %v2792, %v2791
        %v2797 = vpack.i.b16 %v2770, %v2736
        %v2799 = vshrl.u32 %v2736, 16
        %v2800 = vshrl.u32 %v2770, 16
        %v2801 = vpack.i.b16 %v2800, %v2799
        %2803 = vxpose.xlu0.c.b16.start [1/8] %v2773, 128
        %2804 = vxpose.xlu0.c.b16.cont [2/8] 0, 128
        %2805 = vxpose.xlu0.c.b16.cont [3/8] 0, 128
        %2806 = vxpose.xlu0.c.b16.cont [4/8] 0, 128
        %2807 = vxpose.xlu0.c.b16.cont [5/8] 0, 128
        %2808 = vxpose.xlu0.c.b16.cont [6/8] 0, 128
        %2809 = vxpose.xlu0.c.b16.cont [7/8] 0, 128
        %2810 = vxpose.xlu0.c.b16.end [8/8] 0, 128
        %v2811 = vpop.trf.xlu0
        %v2812 = vpop.trf.xlu0
        %v2813 = vpop.trf.xlu0
        %v2814 = vpop.trf.xlu0
        %v2815 = vpop.trf.xlu0
        %v2816 = vpop.trf.xlu0
        %v2817 = vpop.trf.xlu0
        %v2818 = vpop.trf.xlu0
        %2819 = vxpose.xlu0.c.b16.start [1/8] %v2777, 128
        %2820 = vxpose.xlu0.c.b16.cont [2/8] 0, 128
        %2821 = vxpose.xlu0.c.b16.cont [3/8] 0, 128
        %2822 = vxpose.xlu0.c.b16.cont [4/8] 0, 128
        %2823 = vxpose.xlu0.c.b16.cont [5/8] 0, 128
        %2824 = vxpose.xlu0.c.b16.cont [6/8] 0, 128
        %2825 = vxpose.xlu0.c.b16.cont [7/8] 0, 128
        %2826 = vxpose.xlu0.c.b16.end [8/8] 0, 128
        %v2827 = vpop.trf.xlu0
        %v2828 = vpop.trf.xlu0
        %v2829 = vpop.trf.xlu0
        %v2830 = vpop.trf.xlu0
        %v2831 = vpop.trf.xlu0
        %v2832 = vpop.trf.xlu0
        %v2833 = vpop.trf.xlu0
        %v2834 = vpop.trf.xlu0
        %2835 = vxpose.xlu0.c.b16.start [1/8] %v2781, 128
        %2836 = vxpose.xlu0.c.b16.cont [2/8] 0, 128
        %2837 = vxpose.xlu0.c.b16.cont [3/8] 0, 128
        %2838 = vxpose.xlu0.c.b16.cont [4/8] 0, 128
        %2839 = vxpose.xlu0.c.b16.cont [5/8] 0, 128
        %2840 = vxpose.xlu0.c.b16.cont [6/8] 0, 128
        %2841 = vxpose.xlu0.c.b16.cont [7/8] 0, 128
        %2842 = vxpose.xlu0.c.b16.end [8/8] 0, 128
        %v2843 = vpop.trf.xlu0
        %v2844 = vpop.trf.xlu0
        %v2845 = vpop.trf.xlu0
        %v2846 = vpop.trf.xlu0
        %v2847 = vpop.trf.xlu0
        %v2848 = vpop.trf.xlu0
        %v2849 = vpop.trf.xlu0
        %v2850 = vpop.trf.xlu0
        %2851 = vxpose.xlu0.c.b16.start [1/8] %v2785, 128
        %2852 = vxpose.xlu0.c.b16.cont [2/8] 0, 128
        %2853 = vxpose.xlu0.c.b16.cont [3/8] 0, 128
        %2854 = vxpose.xlu0.c.b16.cont [4/8] 0, 128
        %2855 = vxpose.xlu0.c.b16.cont [5/8] 0, 128
        %2856 = vxpose.xlu0.c.b16.cont [6/8] 0, 128
        %2857 = vxpose.xlu0.c.b16.cont [7/8] 0, 128
        %2858 = vxpose.xlu0.c.b16.end [8/8] 0, 128
        %v2859 = vpop.trf.xlu0
        %v2860 = vpop.trf.xlu0
        %v2861 = vpop.trf.xlu0
        %v2862 = vpop.trf.xlu0
        %v2863 = vpop.trf.xlu0
        %v2864 = vpop.trf.xlu0
        %v2865 = vpop.trf.xlu0
        %v2866 = vpop.trf.xlu0
        %2867 = vxpose.xlu0.c.b16.start [1/8] %v2789, 128
        %2868 = vxpose.xlu0.c.b16.cont [2/8] 0, 128
        %2869 = vxpose.xlu0.c.b16.cont [3/8] 0, 128
        %2870 = vxpose.xlu0.c.b16.cont [4/8] 0, 128
        %2871 = vxpose.xlu0.c.b16.cont [5/8] 0, 128
        %2872 = vxpose.xlu0.c.b16.cont [6/8] 0, 128
        %2873 = vxpose.xlu0.c.b16.cont [7/8] 0, 128
        %2874 = vxpose.xlu0.c.b16.end [8/8] 0, 128
        %v2875 = vpop.trf.xlu0
        %v2876 = vpop.trf.xlu0
        %v2877 = vpop.trf.xlu0
        %v2878 = vpop.trf.xlu0
        %v2879 = vpop.trf.xlu0
        %v2880 = vpop.trf.xlu0
        %v2881 = vpop.trf.xlu0
        %v2882 = vpop.trf.xlu0
        %2883 = vxpose.xlu0.c.b16.start [1/8] %v2793, 128
        %2884 = vxpose.xlu0.c.b16.cont [2/8] 0, 128
        %2885 = vxpose.xlu0.c.b16.cont [3/8] 0, 128
        %2886 = vxpose.xlu0.c.b16.cont [4/8] 0, 128
        %2887 = vxpose.xlu0.c.b16.cont [5/8] 0, 128
        %2888 = vxpose.xlu0.c.b16.cont [6/8] 0, 128
        %2889 = vxpose.xlu0.c.b16.cont [7/8] 0, 128
        %2890 = vxpose.xlu0.c.b16.end [8/8] 0, 128
        %v2891 = vpop.trf.xlu0
        %v2892 = vpop.trf.xlu0
        %v2893 = vpop.trf.xlu0
        %v2894 = vpop.trf.xlu0
        %v2895 = vpop.trf.xlu0
        %v2896 = vpop.trf.xlu0
        %v2897 = vpop.trf.xlu0
        %v2898 = vpop.trf.xlu0
        %2899 = vxpose.xlu0.c.b16.start [1/8] %v2797, 128
        %2900 = vxpose.xlu0.c.b16.cont [2/8] 0, 128
        %2901 = vxpose.xlu0.c.b16.cont [3/8] 0, 128
        %2902 = vxpose.xlu0.c.b16.cont [4/8] 0, 128
        %2903 = vxpose.xlu0.c.b16.cont [5/8] 0, 128
        %2904 = vxpose.xlu0.c.b16.cont [6/8] 0, 128
        %2905 = vxpose.xlu0.c.b16.cont [7/8] 0, 128
        %2906 = vxpose.xlu0.c.b16.end [8/8] 0, 128
        %v2907 = vpop.trf.xlu0
        %v2908 = vpop.trf.xlu0
        %v2909 = vpop.trf.xlu0
        %v2910 = vpop.trf.xlu0
        %v2911 = vpop.trf.xlu0
        %v2912 = vpop.trf.xlu0
        %v2913 = vpop.trf.xlu0
        %v2914 = vpop.trf.xlu0
        %2915 = vxpose.xlu0.c.b16.start [1/8] %v2801, 128
        %2916 = vxpose.xlu0.c.b16.cont [2/8] 0, 128
        %2917 = vxpose.xlu0.c.b16.cont [3/8] 0, 128
        %2918 = vxpose.xlu0.c.b16.cont [4/8] 0, 128
        %2919 = vxpose.xlu0.c.b16.cont [5/8] 0, 128
        %2920 = vxpose.xlu0.c.b16.cont [6/8] 0, 128
        %2921 = vxpose.xlu0.c.b16.cont [7/8] 0, 128
        %2922 = vxpose.xlu0.c.b16.end [8/8] 0, 128
        %v2923 = vpop.trf.xlu0
        %v2924 = vpop.trf.xlu0
        %v2925 = vpop.trf.xlu0
        %v2926 = vpop.trf.xlu0
        %v2927 = vpop.trf.xlu0
        %v2928 = vpop.trf.xlu0
        %v2929 = vpop.trf.xlu0
        %v2930 = vpop.trf.xlu0
        %v2931 = vcombine.low %v2811, %v2875
        %v2933 = vunpack.c.l.s4 1983009808
        %v2934 = vunpack.c.0.s8 %v2933
        %v2935 = vlaneseq
        %v2936 = vshrl.u32 %v2935, 7
        %v2937 = vsub.s32 %v2934, %v2936
        %v2938 = vrot.slane %v2931, %v2937
        %v2939 = vcombine.low %v2843, %v2907
        %v2941 = vunpack.c.l.s4 1983009808
        %v2942 = vunpack.c.0.s8 %v2941
        %v2943 = vlaneseq
        %v2944 = vshrl.u32 %v2943, 7
        %v2945 = vsub.s32 %v2942, %v2944
        %v2946 = vrot.slane %v2939, %v2945
        %v2947 = vcombine.low %v2938, %v2946
        %v2949 = vunpack.c.l.s4 1934713408
        %v2950 = vunpack.c.0.s8 %v2949
        %v2951 = vlaneseq
        %v2952 = vshrl.u32 %v2951, 7
        %v2953 = vsub.s32 %v2950, %v2952
        %v2954 = vrot.slane %v2947, %v2953
        %v2955 = vcombine.high %v2954, 0
        %v2956 = vcombine.low %v2827, %v2891
        %v2958 = vunpack.c.l.s4 1983009808
        %v2959 = vunpack.c.0.s8 %v2958
        %v2960 = vlaneseq
        %v2961 = vshrl.u32 %v2960, 7
        %v2962 = vsub.s32 %v2959, %v2961
        %v2963 = vrot.slane %v2956, %v2962
        %v2964 = vcombine.low %v2859, %v2923
        %v2966 = vunpack.c.l.s4 1983009808
        %v2967 = vunpack.c.0.s8 %v2966
        %v2968 = vlaneseq
        %v2969 = vshrl.u32 %v2968, 7
        %v2970 = vsub.s32 %v2967, %v2969
        %v2971 = vrot.slane %v2964, %v2970
        %v2972 = vcombine.low %v2963, %v2971
        %v2974 = vunpack.c.l.s4 1934713408
        %v2975 = vunpack.c.0.s8 %v2974
        %v2976 = vlaneseq
        %v2977 = vshrl.u32 %v2976, 7
        %v2978 = vsub.s32 %v2975, %v2977
        %v2979 = vrot.slane %v2972, %v2978
        %v2980 = vcombine.high %v2979, 0
        %v2983 = vpack.i.b16 %v2979, %v2954
        %v2984 = vshrl.u32 %v2954, 16
        %v2985 = vshrl.u32 %v2979, 16
        %v2986 = vpack.i.b16 %v2985, %v2984
        %v2989 = vpack.i.b16 %v2980, %v2955
        %v2990 = vshrl.u32 %v2955, 16
        %v2991 = vshrl.u32 %v2980, 16
        %v2992 = vpack.i.b16 %v2991, %v2990
        %v2994 = vsel %vm2330, %v2983, 0
        %v2997 = vsel %vm2330, %v2571, 0
        %2999 = vmatprep.subr.bf16.mxu0 0
        %3000 = vmatpush1.bf16.xpose.msra.mxu0 0
        %3001 = vmatprep.subr.bf16.mxu0 0
        %3002 = vmatpush1.bf16.xpose.msra.mxu0 0
        %3003 = vmatprep.subr.bf16.mxu0 0
        %3004 = vmatpush1.bf16.xpose.msra.mxu0 0
        %3005 = vmatprep.subr.bf16.mxu0 0
        %3006 = vmatpush1.bf16.xpose.msra.mxu0 0
        %3007 = vmatprep.subr.bf16.mxu0 0
        %3008 = vmatpush1.bf16.xpose.msra.mxu0 0
        %3009 = vmatprep.subr.bf16.mxu0 0
        %3010 = vmatpush1.bf16.xpose.msra.mxu0 0
        %3011 = vmatprep.subr.bf16.mxu0 0
        %3012 = vmatpush1.bf16.xpose.msra.mxu0 0
        %3013 = vmatprep.subr.bf16.mxu0 0
        %3014 = vmatpush1.bf16.xpose.msra.mxu0 %v2997
        %3015 = vmatprep.subr.bf16.mxu0 0
        %3016 = vmatpush2.bf16.xpose.msra.mxu0 0
        %3017 = vmatprep.subr.bf16.mxu0 0
        %3018 = vmatpush2.bf16.xpose.msra.mxu0 0
        %3019 = vmatprep.subr.bf16.mxu0 0
        %3020 = vmatpush2.bf16.xpose.msra.mxu0 0
        %3021 = vmatprep.subr.bf16.mxu0 0
        %3022 = vmatpush2.bf16.xpose.msra.mxu0 0
        %3023 = vmatprep.subr.bf16.mxu0 0
        %3024 = vmatpush2.bf16.xpose.msra.mxu0 0
        %3025 = vmatprep.subr.bf16.mxu0 0
        %3026 = vmatpush2.bf16.xpose.msra.mxu0 0
        %3027 = vmatprep.subr.bf16.mxu0 0
        %3028 = vmatpush2.bf16.xpose.msra.mxu0 0
        %3029 = vmatprep.subr.bf16.mxu0 0
        %3030 = vmatpush2.bf16.xpose.msra.mxu0 0
        %3031 = vmatprep.mubr.bf16.mxu0 0
        %3032 = vmatmul.mubr.bf16.gmra.mxu0 %v2994
        %v3033 = vpop.f32.mrf.mxu0
        %v3034 = vadd.f32 0.0, %v3033
        %v3035 = vpop.f32.mrf.mxu0
        %v3036 = vpop.f32.mrf.mxu0
        %v3037 = vpop.f32.mrf.mxu0
        %3038 = vdwg.mxu0
        %v3040 = vsel %vm2330, %v2986, 0
        %v3043 = vsel %vm2330, %v2572, 0
        %3045 = vmatprep.subr.bf16.mxu0 0
        %3046 = vmatpush1.bf16.xpose.msra.mxu0 0
        %3047 = vmatprep.subr.bf16.mxu0 0
        %3048 = vmatpush1.bf16.xpose.msra.mxu0 0
        %3049 = vmatprep.subr.bf16.mxu0 0
        %3050 = vmatpush1.bf16.xpose.msra.mxu0 0
        %3051 = vmatprep.subr.bf16.mxu0 0
        %3052 = vmatpush1.bf16.xpose.msra.mxu0 0
        %3053 = vmatprep.subr.bf16.mxu0 0
        %3054 = vmatpush1.bf16.xpose.msra.mxu0 0
        %3055 = vmatprep.subr.bf16.mxu0 0
        %3056 = vmatpush1.bf16.xpose.msra.mxu0 0
        %3057 = vmatprep.subr.bf16.mxu0 0
        %3058 = vmatpush1.bf16.xpose.msra.mxu0 0
        %3059 = vmatprep.subr.bf16.mxu0 0
        %3060 = vmatpush1.bf16.xpose.msra.mxu0 %v3043
        %3061 = vmatprep.subr.bf16.mxu0 0
        %3062 = vmatpush2.bf16.xpose.msra.mxu0 0
        %3063 = vmatprep.subr.bf16.mxu0 0
        %3064 = vmatpush2.bf16.xpose.msra.mxu0 0
        %3065 = vmatprep.subr.bf16.mxu0 0
        %3066 = vmatpush2.bf16.xpose.msra.mxu0 0
        %3067 = vmatprep.subr.bf16.mxu0 0
        %3068 = vmatpush2.bf16.xpose.msra.mxu0 0
        %3069 = vmatprep.subr.bf16.mxu0 0
        %3070 = vmatpush2.bf16.xpose.msra.mxu0 0
        %3071 = vmatprep.subr.bf16.mxu0 0
        %3072 = vmatpush2.bf16.xpose.msra.mxu0 0
        %3073 = vmatprep.subr.bf16.mxu0 0
        %3074 = vmatpush2.bf16.xpose.msra.mxu0 0
        %3075 = vmatprep.subr.bf16.mxu0 0
        %3076 = vmatpush2.bf16.xpose.msra.mxu0 0
        %3077 = vmatprep.mubr.bf16.mxu0 0
        %3078 = vmatmul.mubr.bf16.gmra.mxu0 %v3040
        %v3079 = vpop.f32.mrf.mxu0
        %v3080 = vadd.f32 0.0, %v3079
        %v3081 = vpop.f32.mrf.mxu0
        %v3082 = vpop.f32.mrf.mxu0
        %v3083 = vpop.f32.mrf.mxu0
        %3084 = vdwg.mxu0
        %v3086 = vsel %vm2330, %v2989, 0
        %v3089 = vsel %vm2330, %v2573, 0
        %3091 = vmatprep.subr.bf16.mxu0 0
        %3092 = vmatpush1.bf16.xpose.msra.mxu0 0
        %3093 = vmatprep.subr.bf16.mxu0 0
        %3094 = vmatpush1.bf16.xpose.msra.mxu0 0
        %3095 = vmatprep.subr.bf16.mxu0 0
        %3096 = vmatpush1.bf16.xpose.msra.mxu0 0
        %3097 = vmatprep.subr.bf16.mxu0 0
        %3098 = vmatpush1.bf16.xpose.msra.mxu0 0
        %3099 = vmatprep.subr.bf16.mxu0 0
        %3100 = vmatpush1.bf16.xpose.msra.mxu0 0
        %3101 = vmatprep.subr.bf16.mxu0 0
        %3102 = vmatpush1.bf16.xpose.msra.mxu0 0
        %3103 = vmatprep.subr.bf16.mxu0 0
        %3104 = vmatpush1.bf16.xpose.msra.mxu0 0
        %3105 = vmatprep.subr.bf16.mxu0 0
        %3106 = vmatpush1.bf16.xpose.msra.mxu0 %v3089
        %3107 = vmatprep.subr.bf16.mxu0 0
        %3108 = vmatpush2.bf16.xpose.msra.mxu0 0
        %3109 = vmatprep.subr.bf16.mxu0 0
        %3110 = vmatpush2.bf16.xpose.msra.mxu0 0
        %3111 = vmatprep.subr.bf16.mxu0 0
        %3112 = vmatpush2.bf16.xpose.msra.mxu0 0
        %3113 = vmatprep.subr.bf16.mxu0 0
        %3114 = vmatpush2.bf16.xpose.msra.mxu0 0
        %3115 = vmatprep.subr.bf16.mxu0 0
        %3116 = vmatpush2.bf16.xpose.msra.mxu0 0
        %3117 = vmatprep.subr.bf16.mxu0 0
        %3118 = vmatpush2.bf16.xpose.msra.mxu0 0
        %3119 = vmatprep.subr.bf16.mxu0 0
        %3120 = vmatpush2.bf16.xpose.msra.mxu0 0
        %3121 = vmatprep.subr.bf16.mxu0 0
        %3122 = vmatpush2.bf16.xpose.msra.mxu0 0
        %3123 = vmatprep.mubr.bf16.mxu0 0
        %3124 = vmatmul.mubr.bf16.gmra.mxu0 %v3086
        %v3125 = vpop.f32.mrf.mxu0
        %v3126 = vadd.f32 0.0, %v3125
        %v3127 = vpop.f32.mrf.mxu0
        %v3128 = vpop.f32.mrf.mxu0
        %v3129 = vpop.f32.mrf.mxu0
        %3130 = vdwg.mxu0
        %v3132 = vsel %vm2330, %v2992, 0
        %v3135 = vsel %vm2330, %v2574, 0
        %3137 = vmatprep.subr.bf16.mxu0 0
        %3138 = vmatpush1.bf16.xpose.msra.mxu0 0
        %3139 = vmatprep.subr.bf16.mxu0 0
        %3140 = vmatpush1.bf16.xpose.msra.mxu0 0
        %3141 = vmatprep.subr.bf16.mxu0 0
        %3142 = vmatpush1.bf16.xpose.msra.mxu0 0
        %3143 = vmatprep.subr.bf16.mxu0 0
        %3144 = vmatpush1.bf16.xpose.msra.mxu0 0
        %3145 = vmatprep.subr.bf16.mxu0 0
        %3146 = vmatpush1.bf16.xpose.msra.mxu0 0
        %3147 = vmatprep.subr.bf16.mxu0 0
        %3148 = vmatpush1.bf16.xpose.msra.mxu0 0
        %3149 = vmatprep.subr.bf16.mxu0 0
        %3150 = vmatpush1.bf16.xpose.msra.mxu0 0
        %3151 = vmatprep.subr.bf16.mxu0 0
        %3152 = vmatpush1.bf16.xpose.msra.mxu0 %v3135
        %3153 = vmatprep.subr.bf16.mxu0 0
        %3154 = vmatpush2.bf16.xpose.msra.mxu0 0
        %3155 = vmatprep.subr.bf16.mxu0 0
        %3156 = vmatpush2.bf16.xpose.msra.mxu0 0
        %3157 = vmatprep.subr.bf16.mxu0 0
        %3158 = vmatpush2.bf16.xpose.msra.mxu0 0
        %3159 = vmatprep.subr.bf16.mxu0 0
        %3160 = vmatpush2.bf16.xpose.msra.mxu0 0
        %3161 = vmatprep.subr.bf16.mxu0 0
        %3162 = vmatpush2.bf16.xpose.msra.mxu0 0
        %3163 = vmatprep.subr.bf16.mxu0 0
        %3164 = vmatpush2.bf16.xpose.msra.mxu0 0
        %3165 = vmatprep.subr.bf16.mxu0 0
        %3166 = vmatpush2.bf16.xpose.msra.mxu0 0
        %3167 = vmatprep.subr.bf16.mxu0 0
        %3168 = vmatpush2.bf16.xpose.msra.mxu0 0
        %3169 = vmatprep.mubr.bf16.mxu0 0
        %3170 = vmatmul.mubr.bf16.gmra.mxu0 %v3132
        %v3171 = vpop.f32.mrf.mxu0
        %v3172 = vadd.f32 0.0, %v3171
        %v3173 = vpop.f32.mrf.mxu0
        %v3174 = vpop.f32.mrf.mxu0
        %v3175 = vpop.f32.mrf.mxu0
        %3176 = vdwg.mxu0
        %3177 = vxpose.xlu0.b32.start [1/16] %v3034, 128
        %3178 = vxpose.xlu0.b32.cont [2/16] 0.0, 128
        %3179 = vxpose.xlu0.b32.cont [3/16] 0.0, 128
        %3180 = vxpose.xlu0.b32.cont [4/16] 0.0, 128
        %3181 = vxpose.xlu0.b32.cont [5/16] 0.0, 128
        %3182 = vxpose.xlu0.b32.cont [6/16] 0.0, 128
        %3183 = vxpose.xlu0.b32.cont [7/16] 0.0, 128
        %3184 = vxpose.xlu0.b32.cont [8/16] 0.0, 128
        %3185 = vxpose.xlu0.b32.cont [9/16] 0.0, 128
        %3186 = vxpose.xlu0.b32.cont [10/16] 0.0, 128
        %3187 = vxpose.xlu0.b32.cont [11/16] 0.0, 128
        %3188 = vxpose.xlu0.b32.cont [12/16] 0.0, 128
        %3189 = vxpose.xlu0.b32.cont [13/16] 0.0, 128
        %3190 = vxpose.xlu0.b32.cont [14/16] 0.0, 128
        %3191 = vxpose.xlu0.b32.cont [15/16] 0.0, 128
        %3192 = vxpose.xlu0.b32.end [16/16] 0.0, 128
        %v3193 = vpop.trf.xlu0
        %v3194 = vpop.trf.xlu0
        %v3195 = vpop.trf.xlu0
        %v3196 = vpop.trf.xlu0
        %v3197 = vpop.trf.xlu0
        %v3198 = vpop.trf.xlu0
        %v3199 = vpop.trf.xlu0
        %v3200 = vpop.trf.xlu0
        %v3201 = vpop.trf.xlu0
        %v3202 = vpop.trf.xlu0
        %v3203 = vpop.trf.xlu0
        %v3204 = vpop.trf.xlu0
        %v3205 = vpop.trf.xlu0
        %v3206 = vpop.trf.xlu0
        %v3207 = vpop.trf.xlu0
        %v3208 = vpop.trf.xlu0
        %3209 = vxpose.xlu0.b32.start [1/16] %v3080, 128
        %3210 = vxpose.xlu0.b32.cont [2/16] 0.0, 128
        %3211 = vxpose.xlu0.b32.cont [3/16] 0.0, 128
        %3212 = vxpose.xlu0.b32.cont [4/16] 0.0, 128
        %3213 = vxpose.xlu0.b32.cont [5/16] 0.0, 128
        %3214 = vxpose.xlu0.b32.cont [6/16] 0.0, 128
        %3215 = vxpose.xlu0.b32.cont [7/16] 0.0, 128
        %3216 = vxpose.xlu0.b32.cont [8/16] 0.0, 128
        %3217 = vxpose.xlu0.b32.cont [9/16] 0.0, 128
        %3218 = vxpose.xlu0.b32.cont [10/16] 0.0, 128
        %3219 = vxpose.xlu0.b32.cont [11/16] 0.0, 128
        %3220 = vxpose.xlu0.b32.cont [12/16] 0.0, 128
        %3221 = vxpose.xlu0.b32.cont [13/16] 0.0, 128
        %3222 = vxpose.xlu0.b32.cont [14/16] 0.0, 128
        %3223 = vxpose.xlu0.b32.cont [15/16] 0.0, 128
        %3224 = vxpose.xlu0.b32.end [16/16] 0.0, 128
        %v3225 = vpop.trf.xlu0
        %v3226 = vpop.trf.xlu0
        %v3227 = vpop.trf.xlu0
        %v3228 = vpop.trf.xlu0
        %v3229 = vpop.trf.xlu0
        %v3230 = vpop.trf.xlu0
        %v3231 = vpop.trf.xlu0
        %v3232 = vpop.trf.xlu0
        %v3233 = vpop.trf.xlu0
        %v3234 = vpop.trf.xlu0
        %v3235 = vpop.trf.xlu0
        %v3236 = vpop.trf.xlu0
        %v3237 = vpop.trf.xlu0
        %v3238 = vpop.trf.xlu0
        %v3239 = vpop.trf.xlu0
        %v3240 = vpop.trf.xlu0
        %3241 = vxpose.xlu0.b32.start [1/16] %v3126, 128
        %3242 = vxpose.xlu0.b32.cont [2/16] 0.0, 128
        %3243 = vxpose.xlu0.b32.cont [3/16] 0.0, 128
        %3244 = vxpose.xlu0.b32.cont [4/16] 0.0, 128
        %3245 = vxpose.xlu0.b32.cont [5/16] 0.0, 128
        %3246 = vxpose.xlu0.b32.cont [6/16] 0.0, 128
        %3247 = vxpose.xlu0.b32.cont [7/16] 0.0, 128
        %3248 = vxpose.xlu0.b32.cont [8/16] 0.0, 128
        %3249 = vxpose.xlu0.b32.cont [9/16] 0.0, 128
        %3250 = vxpose.xlu0.b32.cont [10/16] 0.0, 128
        %3251 = vxpose.xlu0.b32.cont [11/16] 0.0, 128
        %3252 = vxpose.xlu0.b32.cont [12/16] 0.0, 128
        %3253 = vxpose.xlu0.b32.cont [13/16] 0.0, 128
        %3254 = vxpose.xlu0.b32.cont [14/16] 0.0, 128
        %3255 = vxpose.xlu0.b32.cont [15/16] 0.0, 128
        %3256 = vxpose.xlu0.b32.end [16/16] 0.0, 128
        %v3257 = vpop.trf.xlu0
        %v3258 = vpop.trf.xlu0
        %v3259 = vpop.trf.xlu0
        %v3260 = vpop.trf.xlu0
        %v3261 = vpop.trf.xlu0
        %v3262 = vpop.trf.xlu0
        %v3263 = vpop.trf.xlu0
        %v3264 = vpop.trf.xlu0
        %v3265 = vpop.trf.xlu0
        %v3266 = vpop.trf.xlu0
        %v3267 = vpop.trf.xlu0
        %v3268 = vpop.trf.xlu0
        %v3269 = vpop.trf.xlu0
        %v3270 = vpop.trf.xlu0
        %v3271 = vpop.trf.xlu0
        %v3272 = vpop.trf.xlu0
        %3273 = vxpose.xlu0.b32.start [1/16] %v3172, 128
        %3274 = vxpose.xlu0.b32.cont [2/16] 0.0, 128
        %3275 = vxpose.xlu0.b32.cont [3/16] 0.0, 128
        %3276 = vxpose.xlu0.b32.cont [4/16] 0.0, 128
        %3277 = vxpose.xlu0.b32.cont [5/16] 0.0, 128
        %3278 = vxpose.xlu0.b32.cont [6/16] 0.0, 128
        %3279 = vxpose.xlu0.b32.cont [7/16] 0.0, 128
        %3280 = vxpose.xlu0.b32.cont [8/16] 0.0, 128
        %3281 = vxpose.xlu0.b32.cont [9/16] 0.0, 128
        %3282 = vxpose.xlu0.b32.cont [10/16] 0.0, 128
        %3283 = vxpose.xlu0.b32.cont [11/16] 0.0, 128
        %3284 = vxpose.xlu0.b32.cont [12/16] 0.0, 128
        %3285 = vxpose.xlu0.b32.cont [13/16] 0.0, 128
        %3286 = vxpose.xlu0.b32.cont [14/16] 0.0, 128
        %3287 = vxpose.xlu0.b32.cont [15/16] 0.0, 128
        %3288 = vxpose.xlu0.b32.end [16/16] 0.0, 128
        %v3289 = vpop.trf.xlu0
        %v3290 = vpop.trf.xlu0
        %v3291 = vpop.trf.xlu0
        %v3292 = vpop.trf.xlu0
        %v3293 = vpop.trf.xlu0
        %v3294 = vpop.trf.xlu0
        %v3295 = vpop.trf.xlu0
        %v3296 = vpop.trf.xlu0
        %v3297 = vpop.trf.xlu0
        %v3298 = vpop.trf.xlu0
        %v3299 = vpop.trf.xlu0
        %v3300 = vpop.trf.xlu0
        %v3301 = vpop.trf.xlu0
        %v3302 = vpop.trf.xlu0
        %v3303 = vpop.trf.xlu0
        %v3304 = vpop.trf.xlu0
        %v3305 = vcombine.low %v3193, %v3257
        %v3306 = vcombine.high %v3193, %v3257
        %v3308 = vunpack.c.l.s4 1983009808
        %v3309 = vunpack.c.0.s8 %v3308
        %v3310 = vlaneseq
        %v3311 = vshrl.u32 %v3310, 7
        %v3312 = vsub.s32 %v3309, %v3311
        %v3313 = vrot.slane %v3305, %v3312
        %v3315 = vunpack.c.l.s4 1983009808
        %v3316 = vunpack.c.0.s8 %v3315
        %v3317 = vlaneseq
        %v3318 = vshrl.u32 %v3317, 7
        %v3319 = vsub.s32 %v3316, %v3318
        %v3320 = vrot.slane %v3306, %v3319
        %v3321 = vcombine.low %v3225, %v3289
        %v3322 = vcombine.high %v3225, %v3289
        %v3324 = vunpack.c.l.s4 1983009808
        %v3325 = vunpack.c.0.s8 %v3324
        %v3326 = vlaneseq
        %v3327 = vshrl.u32 %v3326, 7
        %v3328 = vsub.s32 %v3325, %v3327
        %v3329 = vrot.slane %v3321, %v3328
        %v3331 = vunpack.c.l.s4 1983009808
        %v3332 = vunpack.c.0.s8 %v3331
        %v3333 = vlaneseq
        %v3334 = vshrl.u32 %v3333, 7
        %v3335 = vsub.s32 %v3332, %v3334
        %v3336 = vrot.slane %v3322, %v3335
        %v3337 = vcombine.low %v3313, %v3329
        %v3338 = vcombine.high %v3313, %v3329
        %v3340 = vunpack.c.l.s4 1934713408
        %v3341 = vunpack.c.0.s8 %v3340
        %v3342 = vlaneseq
        %v3343 = vshrl.u32 %v3342, 7
        %v3344 = vsub.s32 %v3341, %v3343
        %v3345 = vrot.slane %v3337, %v3344
        %v3347 = vunpack.c.l.s4 1934713408
        %v3348 = vunpack.c.0.s8 %v3347
        %v3349 = vlaneseq
        %v3350 = vshrl.u32 %v3349, 7
        %v3351 = vsub.s32 %v3348, %v3350
        %v3352 = vrot.slane %v3338, %v3351
        %v3353 = vcombine.low %v3320, %v3336
        %v3354 = vcombine.high %v3320, %v3336
        %v3356 = vunpack.c.l.s4 1934713408
        %v3357 = vunpack.c.0.s8 %v3356
        %v3358 = vlaneseq
        %v3359 = vshrl.u32 %v3358, 7
        %v3360 = vsub.s32 %v3357, %v3359
        %v3361 = vrot.slane %v3353, %v3360
        %v3363 = vunpack.c.l.s4 1934713408
        %v3364 = vunpack.c.0.s8 %v3363
        %v3365 = vlaneseq
        %v3366 = vshrl.u32 %v3365, 7
        %v3367 = vsub.s32 %v3364, %v3366
        %v3368 = vrot.slane %v3354, %v3367
        %v3369 = vcombine.high %v3345, 0.0
        %v3370 = vcombine.high %v3352, 0.0
        %v3371 = vcombine.high %v3361, 0.0
        %v3372 = vcombine.high %v3368, 0.0
        %v3373 = vcombine.low %v3345, %v3352
        %v3375 = vunpack.c.l.s4 1983009808
        %v3376 = vunpack.c.0.s8 %v3375
        %v3377 = vlaneseq
        %v3378 = vshrl.u32 %v3377, 7
        %v3379 = vsub.s32 %v3376, %v3378
        %v3380 = vrot.slane %v3373, %v3379
        %v3381 = vcombine.low %v3369, %v3370
        %v3383 = vunpack.c.l.s4 1983009808
        %v3384 = vunpack.c.0.s8 %v3383
        %v3385 = vlaneseq
        %v3386 = vshrl.u32 %v3385, 7
        %v3387 = vsub.s32 %v3384, %v3386
        %v3388 = vrot.slane %v3381, %v3387
        %v3389 = vcombine.low %v3361, %v3368
        %v3391 = vunpack.c.l.s4 1983009808
        %v3392 = vunpack.c.0.s8 %v3391
        %v3393 = vlaneseq
        %v3394 = vshrl.u32 %v3393, 7
        %v3395 = vsub.s32 %v3392, %v3394
        %v3396 = vrot.slane %v3389, %v3395
        %v3397 = vcombine.low %v3371, %v3372
        %v3399 = vunpack.c.l.s4 1983009808
        %v3400 = vunpack.c.0.s8 %v3399
        %v3401 = vlaneseq
        %v3402 = vshrl.u32 %v3401, 7
        %v3403 = vsub.s32 %v3400, %v3402
        %v3404 = vrot.slane %v3397, %v3403
        %v3405 = vcombine.low %v3380, %v3388
        %v3406 = vcombine.high %v3380, %v3388
        %v3408 = vunpack.c.l.s4 1934713408
        %v3409 = vunpack.c.0.s8 %v3408
        %v3410 = vlaneseq
        %v3411 = vshrl.u32 %v3410, 7
        %v3412 = vsub.s32 %v3409, %v3411
        %v3413 = vrot.slane %v3405, %v3412
        %v3415 = vunpack.c.l.s4 1934713408
        %v3416 = vunpack.c.0.s8 %v3415
        %v3417 = vlaneseq
        %v3418 = vshrl.u32 %v3417, 7
        %v3419 = vsub.s32 %v3416, %v3418
        %v3420 = vrot.slane %v3406, %v3419
        %v3421 = vcombine.low %v3396, %v3404
        %v3422 = vcombine.high %v3396, %v3404
        %v3424 = vunpack.c.l.s4 1934713408
        %v3425 = vunpack.c.0.s8 %v3424
        %v3426 = vlaneseq
        %v3427 = vshrl.u32 %v3426, 7
        %v3428 = vsub.s32 %v3425, %v3427
        %v3429 = vrot.slane %v3421, %v3428
        %v3431 = vunpack.c.l.s4 1934713408
        %v3432 = vunpack.c.0.s8 %v3431
        %v3433 = vlaneseq
        %v3434 = vshrl.u32 %v3433, 7
        %v3435 = vsub.s32 %v3432, %v3434
        %v3436 = vrot.slane %v3422, %v3435
        %v3437 = vcombine.low %v3413, %v3429
        %v3438 = vcombine.high %v3413, %v3429
        %v3439 = vcombine.low %v3420, %v3436
        %v3440 = vcombine.high %v3420, %v3436
        %3442 = vrot.lane.b32.xlu0 %v3438, 8
        %v3443 = vpop.permute.xlu0 %3442
        %3446 = vrot.lane.b32.xlu0 %v3439, 16
        %v3447 = vpop.permute.xlu0 %3446
        %3450 = vrot.lane.b32.xlu0 %v3440, 24
        %v3451 = vpop.permute.xlu0 %3450
        %v3453 = vsel %vm2330, %v3437, %v3443
        %vm3454 = vcmask 130048
        %v3455 = vsel %vm3454, %v3453, %v3447
        %vm3456 = vcmask 195584
        %v3457 = vsel %vm3456, %v3455, %v3451
        %v3458 = vpack.c.bf16 %v3457, %v3457
        %v3459 = vld [vmem:[%s1206] sm:$0xf]
        %v3460 = vld [vmem:[%s1206 + $0x4] sm:$0xf]
        %v3461 = vld [vmem:[%s1206 + $0x8] sm:$0xf]
        %v3462 = vld [vmem:[%s1206 + $0xc] sm:$0xf]
        %v3463 = vld [vmem:[%s1209] sm:$0x1]
        %v3465 = vlaneseq
        %v3466 = vshrl.u32 %v3465, 7
        %v3467 = vsub.s32 0, %v3466
        %v3468 = vrot.slane %v3463, %v3467
        %v3474 = vunpack.c.l.b16 %v3459
        %v3475 = vunpack.c.l.b16 %v3460
        %v3476 = vunpack.c.l.b16 %v3461
        %v3477 = vunpack.c.l.b16 %v3462
        %v3478 = vpack.c.b16 %v3475, %v3474
        %v3479 = vpack.c.b16 %v3477, %v3476
        %v3483 = vsel %vm1492, %v3458, 0
        %3485 = vmatprep.subr.bf16.mxu0 0
        %3486 = vmatpush1.bf16.msra.mxu0 0
        %3487 = vmatprep.subr.bf16.mxu0 0
        %3488 = vmatpush1.bf16.msra.mxu0 0
        %3489 = vmatprep.subr.bf16.mxu0 0
        %3490 = vmatpush1.bf16.msra.mxu0 0
        %3491 = vmatprep.subr.bf16.mxu0 0
        %3492 = vmatpush1.bf16.msra.mxu0 0
        %3493 = vmatprep.subr.bf16.mxu0 0
        %3494 = vmatpush1.bf16.msra.mxu0 0
        %3495 = vmatprep.subr.bf16.mxu0 0
        %3496 = vmatpush1.bf16.msra.mxu0 0
        %3497 = vmatprep.subr.bf16.mxu0 0
        %3498 = vmatpush1.bf16.msra.mxu0 %v3479
        %3499 = vmatprep.subr.bf16.mxu0 0
        %3500 = vmatpush1.bf16.msra.mxu0 %v3478
        %3501 = vmatprep.subr.bf16.mxu0 0
        %3502 = vmatpush2.bf16.msra.mxu0 0
        %3503 = vmatprep.subr.bf16.mxu0 0
        %3504 = vmatpush2.bf16.msra.mxu0 0
        %3505 = vmatprep.subr.bf16.mxu0 0
        %3506 = vmatpush2.bf16.msra.mxu0 0
        %3507 = vmatprep.subr.bf16.mxu0 0
        %3508 = vmatpush2.bf16.msra.mxu0 0
        %3509 = vmatprep.subr.bf16.mxu0 0
        %3510 = vmatpush2.bf16.msra.mxu0 0
        %3511 = vmatprep.subr.bf16.mxu0 0
        %3512 = vmatpush2.bf16.msra.mxu0 0
        %3513 = vmatprep.subr.bf16.mxu0 0
        %3514 = vmatpush2.bf16.msra.mxu0 0
        %3515 = vmatprep.subr.bf16.mxu0 0
        %3516 = vmatpush2.bf16.msra.mxu0 0
        %3517 = vmatprep.mubr.bf16.mxu0 0
        %3518 = vmatmul.mubr.bf16.gmra.mxu0 %v3483
        %v3519 = vpop.f32.mrf.mxu0
        %v3520 = vadd.f32 %v3468, %v3519
        %v3521 = vpop.f32.mrf.mxu0
        %v3522 = vpop.f32.mrf.mxu0
        %v3523 = vpop.f32.mrf.mxu0
        %3524 = vdwg.mxu0
        %v3525 = vpack.c.bf16 %v3520, %v3520
        %v3526 = vld [vmem:[%s1236] sm:$0xf]
        %v3527 = vld [vmem:[%s1236 + $0x4] sm:$0xf]
        %v3528 = vld [vmem:[%s1236 + $0x8] sm:$0xf]
        %v3529 = vld [vmem:[%s1236 + $0xc] sm:$0xf]
        %v3530 = vld [vmem:[%s1239] sm:$0x1]
        %v3532 = vlaneseq
        %v3533 = vshrl.u32 %v3532, 7
        %v3534 = vsub.s32 0, %v3533
        %v3535 = vrot.slane %v3530, %v3534
        %v3541 = vunpack.c.l.b16 %v3526
        %v3542 = vunpack.c.l.b16 %v3527
        %v3543 = vunpack.c.l.b16 %v3528
        %v3544 = vunpack.c.l.b16 %v3529
        %v3545 = vpack.c.b16 %v3542, %v3541
        %v3546 = vpack.c.b16 %v3544, %v3543
        %v3550 = vsel %vm1492, %v3525, 0
        %3552 = vmatprep.subr.bf16.mxu0 0
        %3553 = vmatpush1.bf16.msra.mxu0 0
        %3554 = vmatprep.subr.bf16.mxu0 0
        %3555 = vmatpush1.bf16.msra.mxu0 0
        %3556 = vmatprep.subr.bf16.mxu0 0
        %3557 = vmatpush1.bf16.msra.mxu0 0
        %3558 = vmatprep.subr.bf16.mxu0 0
        %3559 = vmatpush1.bf16.msra.mxu0 0
        %3560 = vmatprep.subr.bf16.mxu0 0
        %3561 = vmatpush1.bf16.msra.mxu0 0
        %3562 = vmatprep.subr.bf16.mxu0 0
        %3563 = vmatpush1.bf16.msra.mxu0 0
        %3564 = vmatprep.subr.bf16.mxu0 0
        %3565 = vmatpush1.bf16.msra.mxu0 %v3546
        %3566 = vmatprep.subr.bf16.mxu0 0
        %3567 = vmatpush1.bf16.msra.mxu0 %v3545
        %3568 = vmatprep.subr.bf16.mxu0 0
        %3569 = vmatpush2.bf16.msra.mxu0 0
        %3570 = vmatprep.subr.bf16.mxu0 0
        %3571 = vmatpush2.bf16.msra.mxu0 0
        %3572 = vmatprep.subr.bf16.mxu0 0
        %3573 = vmatpush2.bf16.msra.mxu0 0
        %3574 = vmatprep.subr.bf16.mxu0 0
        %3575 = vmatpush2.bf16.msra.mxu0 0
        %3576 = vmatprep.subr.bf16.mxu0 0
        %3577 = vmatpush2.bf16.msra.mxu0 0
        %3578 = vmatprep.subr.bf16.mxu0 0
        %3579 = vmatpush2.bf16.msra.mxu0 0
        %3580 = vmatprep.subr.bf16.mxu0 0
        %3581 = vmatpush2.bf16.msra.mxu0 0
        %3582 = vmatprep.subr.bf16.mxu0 0
        %3583 = vmatpush2.bf16.msra.mxu0 0
        %3584 = vmatprep.mubr.bf16.mxu0 0
        %3585 = vmatmul.mubr.bf16.gmra.mxu0 %v3550
        %v3586 = vpop.f32.mrf.mxu0
        %v3587 = vadd.f32 %v3535, %v3586
        %v3588 = vpop.f32.mrf.mxu0
        %v3589 = vpop.f32.mrf.mxu0
        %v3590 = vpop.f32.mrf.mxu0
        %3591 = vdwg.mxu0
        %v3592 = vmul.f32 %v3587, 0.5
        %v3593 = vmul.f32 %v3587, 0.044715
        %v3594 = vmul.f32 %v3593, %v3587
        %v3595 = vmul.f32 %v3594, %v3587
        %v3596 = vadd.f32 %v3587, %v3595
        %v3597 = vmul.f32 %v3596, 0.7978846
        %v3598 = vtanh.pop %v3597
        %v3599 = vadd.f32 %v3598, 1.0
        %v3600 = vmul.f32 %v3592, %v3599
        %v3601 = vpack.c.bf16 %v3600, %v3600
        %v3602 = vld [vmem:[%s1243] sm:$0xf]
        %v3603 = vld [vmem:[%s1246] sm:$0x1]
        %v3605 = vlaneseq
        %v3606 = vshrl.u32 %v3605, 7
        %v3607 = vsub.s32 0, %v3606
        %v3608 = vrot.slane %v3603, %v3607
        %v3611 = vsel %vm2330, %v3601, 0
        %v3614 = vsel %vm2334, %v3602, 0
        %3616 = vmatprep.subr.bf16.mxu0 0
        %3617 = vmatpush1.bf16.msra.mxu0 0
        %3618 = vmatprep.subr.bf16.mxu0 0
        %3619 = vmatpush1.bf16.msra.mxu0 0
        %3620 = vmatprep.subr.bf16.mxu0 0
        %3621 = vmatpush1.bf16.msra.mxu0 0
        %3622 = vmatprep.subr.bf16.mxu0 0
        %3623 = vmatpush1.bf16.msra.mxu0 0
        %3624 = vmatprep.subr.bf16.mxu0 0
        %3625 = vmatpush1.bf16.msra.mxu0 0
        %3626 = vmatprep.subr.bf16.mxu0 0
        %3627 = vmatpush1.bf16.msra.mxu0 0
        %3628 = vmatprep.subr.bf16.mxu0 0
        %3629 = vmatpush1.bf16.msra.mxu0 0
        %3630 = vmatprep.subr.bf16.mxu0 0
        %3631 = vmatpush1.bf16.msra.mxu0 %v3614
        %3632 = vmatprep.subr.bf16.mxu0 0
        %3633 = vmatpush2.bf16.msra.mxu0 0
        %3634 = vmatprep.subr.bf16.mxu0 0
        %3635 = vmatpush2.bf16.msra.mxu0 0
        %3636 = vmatprep.subr.bf16.mxu0 0
        %3637 = vmatpush2.bf16.msra.mxu0 0
        %3638 = vmatprep.subr.bf16.mxu0 0
        %3639 = vmatpush2.bf16.msra.mxu0 0
        %3640 = vmatprep.subr.bf16.mxu0 0
        %3641 = vmatpush2.bf16.msra.mxu0 0
        %3642 = vmatprep.subr.bf16.mxu0 0
        %3643 = vmatpush2.bf16.msra.mxu0 0
        %3644 = vmatprep.subr.bf16.mxu0 0
        %3645 = vmatpush2.bf16.msra.mxu0 0
        %3646 = vmatprep.subr.bf16.mxu0 0
        %3647 = vmatpush2.bf16.msra.mxu0 0
        %3648 = vmatprep.mubr.bf16.mxu0 0
        %3649 = vmatmul.mubr.bf16.gmra.mxu0 %v3611
        %v3650 = vpop.f32.mrf.mxu0
        %v3651 = vadd.f32 %v3608, %v3650
        %v3652 = vpop.f32.mrf.mxu0
        %v3653 = vpop.f32.mrf.mxu0
        %v3654 = vpop.f32.mrf.mxu0
        %3655 = vdwg.mxu0
        %v3656 = vadd.f32 %v1489, %v3520
        %v3657 = vadd.f32 %v3656, %v3651
        %v3658 = vld [vmem:[%s1212] sm:$0x1]
        %v3659 = vld [vmem:[%s1215] sm:$0x1]
        %v3660 = vsel %vm1492, %v3657, 0.0
        %3661 = vadd.xlane.f32.xlu0 %v3660
        %v3662 = vpop.xlane.xlu0 %3661
        %v3663 = vmul.f32 %v3662, %v1496
        %v3664 = vsub.f32 %v3657, %v3663
        %v3665 = vmul.f32 %v3664, %v3664
        %v3666 = vsel %vm1492, %v3665, 0.0
        %3667 = vadd.xlane.f32.xlu0 %v3666
        %v3668 = vpop.xlane.xlu0 %3667
        %v3669 = vmul.f32 %v3668, %v1496
        %v3670 = vadd.f32 %v3669, 1e-05
        %v3671 = vrsqrt.pop %v3670
        %v3672 = vmul.f32 %v3664, %v3671
        %v3674 = vlaneseq
        %v3675 = vshrl.u32 %v3674, 7
        %v3676 = vsub.s32 0, %v3675
        %v3677 = vrot.slane %v3658, %v3676
        %v3679 = vmul.f32 %v3672, %v3677
        %v3681 = vlaneseq
        %v3682 = vshrl.u32 %v3681, 7
        %v3683 = vsub.s32 0, %v3682
        %v3684 = vrot.slane %v3659, %v3683
        %v3686 = vadd.f32 %v3679, %v3684
        %v3687 = vpack.c.bf16 %v3686, %v3686
        %v3688 = vld [vmem:[%s1220] sm:$0xf]
        %v3689 = vld [vmem:[%s1220 + $0x4] sm:$0xf]
        %v3690 = vld [vmem:[%s1220 + $0x8] sm:$0xf]
        %v3691 = vld [vmem:[%s1220 + $0xc] sm:$0xf]
        %v3692 = vld [vmem:[%s1223] sm:$0x1]
        %v3694 = vlaneseq
        %v3695 = vshrl.u32 %v3694, 7
        %v3696 = vsub.s32 0, %v3695
        %v3697 = vrot.slane %v3692, %v3696
        %v3703 = vunpack.c.l.b16 %v3688
        %v3704 = vunpack.c.l.b16 %v3689
        %v3705 = vunpack.c.l.b16 %v3690
        %v3706 = vunpack.c.l.b16 %v3691
        %v3707 = vpack.c.b16 %v3704, %v3703
        %v3708 = vpack.c.b16 %v3706, %v3705
        %v3712 = vsel %vm1492, %v3687, 0
        %3714 = vmatprep.subr.bf16.mxu0 0
        %3715 = vmatpush1.bf16.msra.mxu0 0
        %3716 = vmatprep.subr.bf16.mxu0 0
        %3717 = vmatpush1.bf16.msra.mxu0 0
        %3718 = vmatprep.subr.bf16.mxu0 0
        %3719 = vmatpush1.bf16.msra.mxu0 0
        %3720 = vmatprep.subr.bf16.mxu0 0
        %3721 = vmatpush1.bf16.msra.mxu0 0
        %3722 = vmatprep.subr.bf16.mxu0 0
        %3723 = vmatpush1.bf16.msra.mxu0 0
        %3724 = vmatprep.subr.bf16.mxu0 0
        %3725 = vmatpush1.bf16.msra.mxu0 0
        %3726 = vmatprep.subr.bf16.mxu0 0
        %3727 = vmatpush1.bf16.msra.mxu0 %v3708
        %3728 = vmatprep.subr.bf16.mxu0 0
        %3729 = vmatpush1.bf16.msra.mxu0 %v3707
        %3730 = vmatprep.subr.bf16.mxu0 0
        %3731 = vmatpush2.bf16.msra.mxu0 0
        %3732 = vmatprep.subr.bf16.mxu0 0
        %3733 = vmatpush2.bf16.msra.mxu0 0
        %3734 = vmatprep.subr.bf16.mxu0 0
        %3735 = vmatpush2.bf16.msra.mxu0 0
        %3736 = vmatprep.subr.bf16.mxu0 0
        %3737 = vmatpush2.bf16.msra.mxu0 0
        %3738 = vmatprep.subr.bf16.mxu0 0
        %3739 = vmatpush2.bf16.msra.mxu0 0
        %3740 = vmatprep.subr.bf16.mxu0 0
        %3741 = vmatpush2.bf16.msra.mxu0 0
        %3742 = vmatprep.subr.bf16.mxu0 0
        %3743 = vmatpush2.bf16.msra.mxu0 0
        %3744 = vmatprep.subr.bf16.mxu0 0
        %3745 = vmatpush2.bf16.msra.mxu0 0
        %3746 = vmatprep.mubr.bf16.mxu0 0
        %3747 = vmatmul.mubr.bf16.gmra.mxu0 %v3712
        %v3748 = vpop.f32.mrf.mxu0
        %v3749 = vadd.f32 %v3697, %v3748
        %v3750 = vpop.f32.mrf.mxu0
        %v3751 = vpop.f32.mrf.mxu0
        %v3752 = vpop.f32.mrf.mxu0
        %3753 = vdwg.mxu0
        %v3754 = vmul.f32 %v3749, -1.702
        %v3755 = vmul.f32 %v3754, 1.442695
        %v3756 = vpow.pop %v3755
        %v3757 = vadd.f32 %v3756, 1.0
        %v3758 = vrcp.pop %v3757
        %v3759 = vmul.f32 1.0, %v3758
        %v3760 = vmul.f32 %v3749, %v3759
        %v3761 = vpack.c.bf16 %v3760, %v3760
        %v3762 = vld [vmem:[%s1228] sm:$0xf]
        %v3763 = vld [vmem:[%s1228 + $0x4] sm:$0xf]
        %v3764 = vld [vmem:[%s1228 + $0x8] sm:$0xf]
        %v3765 = vld [vmem:[%s1228 + $0xc] sm:$0xf]
        %v3766 = vld [vmem:[%s1228 + $0x10] sm:$0xf]
        %v3767 = vld [vmem:[%s1228 + $0x14] sm:$0xf]
        %v3768 = vld [vmem:[%s1228 + $0x18] sm:$0xf]
        %v3769 = vld [vmem:[%s1228 + $0x1c] sm:$0xf]
        %v3770 = vld [vmem:[%s1228 + $0x20] sm:$0xf]
        %v3771 = vld [vmem:[%s1228 + $0x24] sm:$0xf]
        %v3772 = vld [vmem:[%s1228 + $0x28] sm:$0xf]
        %v3773 = vld [vmem:[%s1228 + $0x2c] sm:$0xf]
        %v3774 = vld [vmem:[%s1228 + $0x30] sm:$0xf]
        %v3775 = vld [vmem:[%s1228 + $0x34] sm:$0xf]
        %v3776 = vld [vmem:[%s1228 + $0x38] sm:$0xf]
        %v3777 = vld [vmem:[%s1228 + $0x3c] sm:$0xf]
        %v3778 = vld [vmem:[%s1231] sm:$0x1]
        %v3780 = vlaneseq
        %v3781 = vshrl.u32 %v3780, 7
        %v3782 = vsub.s32 0, %v3781
        %v3783 = vrot.slane %v3778, %v3782
        %v3801 = vunpack.c.l.b16 %v3762
        %v3802 = vunpack.c.l.b16 %v3763
        %v3803 = vunpack.c.l.b16 %v3764
        %v3804 = vunpack.c.l.b16 %v3765
        %v3805 = vunpack.c.l.b16 %v3766
        %v3806 = vunpack.c.l.b16 %v3767
        %v3807 = vunpack.c.l.b16 %v3768
        %v3808 = vunpack.c.l.b16 %v3769
        %v3809 = vunpack.c.l.b16 %v3770
        %v3810 = vunpack.c.l.b16 %v3771
        %v3811 = vunpack.c.l.b16 %v3772
        %v3812 = vunpack.c.l.b16 %v3773
        %v3813 = vunpack.c.l.b16 %v3774
        %v3814 = vunpack.c.l.b16 %v3775
        %v3815 = vunpack.c.l.b16 %v3776
        %v3816 = vunpack.c.l.b16 %v3777
        %v3817 = vpack.c.b16 %v3802, %v3801
        %v3818 = vpack.c.b16 %v3804, %v3803
        %v3819 = vpack.c.b16 %v3806, %v3805
        %v3820 = vpack.c.b16 %v3808, %v3807
        %v3821 = vpack.c.b16 %v3810, %v3809
        %v3822 = vpack.c.b16 %v3812, %v3811
        %v3823 = vpack.c.b16 %v3814, %v3813
        %v3824 = vpack.c.b16 %v3816, %v3815
        %3833 = vmatprep.subr.bf16.mxu0 0
        %3834 = vmatpush1.bf16.msra.mxu0 %v3824
        %3835 = vmatprep.subr.bf16.mxu0 0
        %3836 = vmatpush1.bf16.msra.mxu0 %v3823
        %3837 = vmatprep.subr.bf16.mxu0 0
        %3838 = vmatpush1.bf16.msra.mxu0 %v3822
        %3839 = vmatprep.subr.bf16.mxu0 0
        %3840 = vmatpush1.bf16.msra.mxu0 %v3821
        %3841 = vmatprep.subr.bf16.mxu0 0
        %3842 = vmatpush1.bf16.msra.mxu0 %v3820
        %3843 = vmatprep.subr.bf16.mxu0 0
        %3844 = vmatpush1.bf16.msra.mxu0 %v3819
        %3845 = vmatprep.subr.bf16.mxu0 0
        %3846 = vmatpush1.bf16.msra.mxu0 %v3818
        %3847 = vmatprep.subr.bf16.mxu0 0
        %3848 = vmatpush1.bf16.msra.mxu0 %v3817
        %3849 = vmatprep.subr.bf16.mxu0 0
        %3850 = vmatpush2.bf16.msra.mxu0 0
        %3851 = vmatprep.subr.bf16.mxu0 0
        %3852 = vmatpush2.bf16.msra.mxu0 0
        %3853 = vmatprep.subr.bf16.mxu0 0
        %3854 = vmatpush2.bf16.msra.mxu0 0
        %3855 = vmatprep.subr.bf16.mxu0 0
        %3856 = vmatpush2.bf16.msra.mxu0 0
        %3857 = vmatprep.subr.bf16.mxu0 0
        %3858 = vmatpush2.bf16.msra.mxu0 0
        %3859 = vmatprep.subr.bf16.mxu0 0
        %3860 = vmatpush2.bf16.msra.mxu0 0
        %3861 = vmatprep.subr.bf16.mxu0 0
        %3862 = vmatpush2.bf16.msra.mxu0 0
        %3863 = vmatprep.subr.bf16.mxu0 0
        %3864 = vmatpush2.bf16.msra.mxu0 0
        %3865 = vmatprep.mubr.bf16.mxu0 0
        %3866 = vmatmul.mubr.bf16.gmra.mxu0 %v3761
        %v3867 = vpop.f32.mrf.mxu0
        %v3868 = vadd.f32 %v3783, %v3867
        %v3869 = vpop.f32.mrf.mxu0
        %v3870 = vpop.f32.mrf.mxu0
        %v3871 = vpop.f32.mrf.mxu0
        %3872 = vdwg.mxu0
        %v3873 = vld [vmem:[%s1251] sm:$0xf]
        %v3874 = vld [vmem:[%s1251 + $0x4] sm:$0xf]
        %v3875 = vld [vmem:[%s1251 + $0x8] sm:$0xf]
        %v3876 = vld [vmem:[%s1251 + $0xc] sm:$0xf]
        %v3877 = vld [vmem:[%s1254] sm:$0x1]
        %v3879 = vlaneseq
        %v3880 = vshrl.u32 %v3879, 7
        %v3881 = vsub.s32 0, %v3880
        %v3882 = vrot.slane %v3877, %v3881
        %v3888 = vunpack.c.l.b16 %v3873
        %v3889 = vunpack.c.l.b16 %v3874
        %v3890 = vunpack.c.l.b16 %v3875
        %v3891 = vunpack.c.l.b16 %v3876
        %v3892 = vpack.c.b16 %v3889, %v3888
        %v3893 = vpack.c.b16 %v3891, %v3890
        %3896 = vmatprep.subr.bf16.mxu0 0
        %3897 = vmatpush1.bf16.msra.mxu0 0
        %3898 = vmatprep.subr.bf16.mxu0 0
        %3899 = vmatpush1.bf16.msra.mxu0 0
        %3900 = vmatprep.subr.bf16.mxu0 0
        %3901 = vmatpush1.bf16.msra.mxu0 0
        %3902 = vmatprep.subr.bf16.mxu0 0
        %3903 = vmatpush1.bf16.msra.mxu0 0
        %3904 = vmatprep.subr.bf16.mxu0 0
        %3905 = vmatpush1.bf16.msra.mxu0 0
        %3906 = vmatprep.subr.bf16.mxu0 0
        %3907 = vmatpush1.bf16.msra.mxu0 0
        %3908 = vmatprep.subr.bf16.mxu0 0
        %3909 = vmatpush1.bf16.msra.mxu0 %v3893
        %3910 = vmatprep.subr.bf16.mxu0 0
        %3911 = vmatpush1.bf16.msra.mxu0 %v3892
        %3912 = vmatprep.subr.bf16.mxu0 0
        %3913 = vmatpush2.bf16.msra.mxu0 0
        %3914 = vmatprep.subr.bf16.mxu0 0
        %3915 = vmatpush2.bf16.msra.mxu0 0
        %3916 = vmatprep.subr.bf16.mxu0 0
        %3917 = vmatpush2.bf16.msra.mxu0 0
        %3918 = vmatprep.subr.bf16.mxu0 0
        %3919 = vmatpush2.bf16.msra.mxu0 0
        %3920 = vmatprep.subr.bf16.mxu0 0
        %3921 = vmatpush2.bf16.msra.mxu0 0
        %3922 = vmatprep.subr.bf16.mxu0 0
        %3923 = vmatpush2.bf16.msra.mxu0 0
        %3924 = vmatprep.subr.bf16.mxu0 0
        %3925 = vmatpush2.bf16.msra.mxu0 0
        %3926 = vmatprep.subr.bf16.mxu0 0
        %3927 = vmatpush2.bf16.msra.mxu0 0
        %3928 = vmatprep.mubr.bf16.mxu0 0
        %3929 = vmatmul.mubr.bf16.gmra.mxu0 %v3712
        %v3930 = vpop.f32.mrf.mxu0
        %v3931 = vadd.f32 %v3882, %v3930
        %v3932 = vpop.f32.mrf.mxu0
        %v3933 = vpop.f32.mrf.mxu0
        %v3934 = vpop.f32.mrf.mxu0
        %3935 = vdwg.mxu0
        %v3936 = vmul.f32 %v3931, 0.5
        %v3937 = vmul.f32 %v3931, 0.044715
        %v3938 = vmul.f32 %v3937, %v3931
        %v3939 = vmul.f32 %v3938, %v3931
        %v3940 = vadd.f32 %v3931, %v3939
        %v3941 = vmul.f32 %v3940, 0.7978846
        %v3942 = vtanh.pop %v3941
        %v3943 = vadd.f32 %v3942, 1.0
        %v3944 = vmul.f32 %v3936, %v3943
        %v3945 = vpack.c.bf16 %v3944, %v3944
        %v3946 = vld [vmem:[%s1258] sm:$0xf]
        %v3947 = vld [vmem:[%s1261] sm:$0x1]
        %v3949 = vlaneseq
        %v3950 = vshrl.u32 %v3949, 7
        %v3951 = vsub.s32 0, %v3950
        %v3952 = vrot.slane %v3947, %v3951
        %v3955 = vsel %vm2330, %v3945, 0
        %v3958 = vsel %vm2334, %v3946, 0
        %3960 = vmatprep.subr.bf16.mxu0 0
        %3961 = vmatpush1.bf16.msra.mxu0 0
        %3962 = vmatprep.subr.bf16.mxu0 0
        %3963 = vmatpush1.bf16.msra.mxu0 0
        %3964 = vmatprep.subr.bf16.mxu0 0
        %3965 = vmatpush1.bf16.msra.mxu0 0
        %3966 = vmatprep.subr.bf16.mxu0 0
        %3967 = vmatpush1.bf16.msra.mxu0 0
        %3968 = vmatprep.subr.bf16.mxu0 0
        %3969 = vmatpush1.bf16.msra.mxu0 0
        %3970 = vmatprep.subr.bf16.mxu0 0
        %3971 = vmatpush1.bf16.msra.mxu0 0
        %3972 = vmatprep.subr.bf16.mxu0 0
        %3973 = vmatpush1.bf16.msra.mxu0 0
        %3974 = vmatprep.subr.bf16.mxu0 0
        %3975 = vmatpush1.bf16.msra.mxu0 %v3958
        %3976 = vmatprep.subr.bf16.mxu0 0
        %3977 = vmatpush2.bf16.msra.mxu0 0
        %3978 = vmatprep.subr.bf16.mxu0 0
        %3979 = vmatpush2.bf16.msra.mxu0 0
        %3980 = vmatprep.subr.bf16.mxu0 0
        %3981 = vmatpush2.bf16.msra.mxu0 0
        %3982 = vmatprep.subr.bf16.mxu0 0
        %3983 = vmatpush2.bf16.msra.mxu0 0
        %3984 = vmatprep.subr.bf16.mxu0 0
        %3985 = vmatpush2.bf16.msra.mxu0 0
        %3986 = vmatprep.subr.bf16.mxu0 0
        %3987 = vmatpush2.bf16.msra.mxu0 0
        %3988 = vmatprep.subr.bf16.mxu0 0
        %3989 = vmatpush2.bf16.msra.mxu0 0
        %3990 = vmatprep.subr.bf16.mxu0 0
        %3991 = vmatpush2.bf16.msra.mxu0 0
        %3992 = vmatprep.mubr.bf16.mxu0 0
        %3993 = vmatmul.mubr.bf16.gmra.mxu0 %v3955
        %v3994 = vpop.f32.mrf.mxu0
        %v3995 = vadd.f32 %v3952, %v3994
        %v3996 = vpop.f32.mrf.mxu0
        %v3997 = vpop.f32.mrf.mxu0
        %v3998 = vpop.f32.mrf.mxu0
        %3999 = vdwg.mxu0
        %v4000 = vadd.f32 %v3657, %v3868
        %v4001 = vmul.f32 %v3995, 0.5
        %v4002 = vadd.f32 %v4000, %v4001
        %4003 = vst.msk [vmem:[#allocation2] sm:$0xff] %vm1492, %v4002
        %p4004 = scmp.eq.s32.totalorder %s80, 1
        // Predicated region
        $region145: #{tpu_custom_call.1} parent=139 // pred_check
          %p4005 = pneg %p4004
        $region146: #{tpu_custom_call.1} parent=139 // pred_check_branch
          %4007 = sbr.rel (%p4005) target = $region148
        $region147: #{tpu_custom_call.1} parent=139 // pred_region
          %v4008 = vld [vmem:[%s53] sm:$0x1]
          %v4009 = vld [vmem:[%s55] sm:$0x1]
          %vm4010 = vcmask 253952
          %v4011 = vsel %vm4010, %v4002, 0.0
          %4012 = vadd.xlane.f32.xlu0 %v4011
          %v4013 = vpop.xlane.xlu0 %4012
          %v4014 = vmul.f32 %v4013, %v1496
          %v4015 = vsub.f32 %v4002, %v4014
          %v4016 = vmul.f32 %v4015, %v4015
          %v4017 = vsel %vm4010, %v4016, 0.0
          %4018 = vadd.xlane.f32.xlu0 %v4017
          %v4019 = vpop.xlane.xlu0 %4018
          %v4020 = vmul.f32 %v4019, %v1496
          %v4021 = vadd.f32 %v4020, 1e-05
          %v4022 = vrsqrt.pop %v4021
          %v4023 = vmul.f32 %v4015, %v4022
          %v4024 = vmul.f32 %v4023, %v4008
          %v4025 = vadd.f32 %v4024, %v4009
          %v4026 = vpack.c.bf16 %v4025, %v4025
          %v4027 = vld [vmem:[%s57] sm:$0xf]
          %v4028 = vld [vmem:[%s57 + $0x4] sm:$0xf]
          %v4029 = vld [vmem:[%s57 + $0x8] sm:$0xf]
          %v4030 = vld [vmem:[%s57 + $0xc] sm:$0xf]
          %v4031 = vld [vmem:[%s59] sm:$0x1]
          %v4036 = vunpack.c.l.b16 %v4027
          %v4037 = vunpack.c.l.b16 %v4028
          %v4038 = vunpack.c.l.b16 %v4029
          %v4039 = vunpack.c.l.b16 %v4030
          %v4040 = vpack.c.b16 %v4037, %v4036
          %v4041 = vpack.c.b16 %v4039, %v4038
          %v4045 = vsel %vm1492, %v4026, 0
          %4047 = vmatprep.subr.bf16.mxu0 0
          %4048 = vmatpush1.bf16.msra.mxu0 0
          %4049 = vmatprep.subr.bf16.mxu0 0
          %4050 = vmatpush1.bf16.msra.mxu0 0
          %4051 = vmatprep.subr.bf16.mxu0 0
          %4052 = vmatpush1.bf16.msra.mxu0 0
          %4053 = vmatprep.subr.bf16.mxu0 0
          %4054 = vmatpush1.bf16.msra.mxu0 0
          %4055 = vmatprep.subr.bf16.mxu0 0
          %4056 = vmatpush1.bf16.msra.mxu0 0
          %4057 = vmatprep.subr.bf16.mxu0 0
          %4058 = vmatpush1.bf16.msra.mxu0 0
          %4059 = vmatprep.subr.bf16.mxu0 0
          %4060 = vmatpush1.bf16.msra.mxu0 %v4041
          %4061 = vmatprep.subr.bf16.mxu0 0
          %4062 = vmatpush1.bf16.msra.mxu0 %v4040
          %4063 = vmatprep.subr.bf16.mxu0 0
          %4064 = vmatpush2.bf16.msra.mxu0 0
          %4065 = vmatprep.subr.bf16.mxu0 0
          %4066 = vmatpush2.bf16.msra.mxu0 0
          %4067 = vmatprep.subr.bf16.mxu0 0
          %4068 = vmatpush2.bf16.msra.mxu0 0
          %4069 = vmatprep.subr.bf16.mxu0 0
          %4070 = vmatpush2.bf16.msra.mxu0 0
          %4071 = vmatprep.subr.bf16.mxu0 0
          %4072 = vmatpush2.bf16.msra.mxu0 0
          %4073 = vmatprep.subr.bf16.mxu0 0
          %4074 = vmatpush2.bf16.msra.mxu0 0
          %4075 = vmatprep.subr.bf16.mxu0 0
          %4076 = vmatpush2.bf16.msra.mxu0 0
          %4077 = vmatprep.subr.bf16.mxu0 0
          %4078 = vmatpush2.bf16.msra.mxu0 0
          %4079 = vmatprep.mubr.bf16.mxu0 0
          %4080 = vmatmul.mubr.bf16.gmra.mxu0 %v4045
          %v4081 = vpop.f32.mrf.mxu0
          %v4082 = vadd.f32 %v4031, %v4081
          %v4083 = vpop.f32.mrf.mxu0
          %v4084 = vpop.f32.mrf.mxu0
          %v4085 = vpop.f32.mrf.mxu0
          %4086 = vdwg.mxu0
          %vm4087 = vcmask 73728
          %4088 = vst.msk [vmem:[%s1182] sm:$0x1] %vm4087, %v4082
        $region148: #{tpu_custom_call.1} parent=139 // pred_fallthru
          _
        %s4089 = sand.u32 %s830, 1
        %s4090 = scalar_lea.sflag [#allocation4], %s4089
        %s4091 = sand.u32 %s830, 1
        %s4092 = scalar_lea.vmem [#allocation3], %s4091
        // Predicated region
        $region149: #{tpu_custom_call.1} parent=139 // pred_check
          %p4093 = pneg %p840
        $region150: #{tpu_custom_call.1} parent=139 // pred_check_branch
          %4095 = sbr.rel (%p4093) target = $region152
        $region151: #{tpu_custom_call.1} parent=139 // pred_region
          %s4097 = ssub.s32 16, 16
          %4098 = vsyncadd %s4090, %s4097
          %s4099 = smul.addr %s79, 16
          %s4100 = scalar_lea.hbm %s61, %s4099
          %s4102 = sshll.u32 %s4092, 4
          %s4103 = int_to_ptr.vmem [resolvable:$true] %s4102
          %4105 = dma.vmem_to_hbm [thread:$0]  %s4103, 16, %s4100, %s4090
        $region152: #{tpu_custom_call.1} parent=139 // pred_fallthru
          _
      $region140: #{tpu_custom_call.1} parent=5 // pred_fallthru
        _
      %p4106 = scmp.le.s32.totalorder 2, %s70
      // Predicated region
      $region153: #{tpu_custom_call.1} parent=5 // pred_check
        %p4107 = pneg %p4106
      $region154: #{tpu_custom_call.1} parent=5 // pred_check_branch
        %4109 = sbr.rel (%p4107) target = $region156
      $region155: #{tpu_custom_call.1} parent=5 // pred_region
        %s4110 = ssub.s32 %s70, 2
        // Predicated region
        $region157: #{tpu_custom_call.1} parent=155 // pred_check
          %p4111 = pneg %p846
        $region158: #{tpu_custom_call.1} parent=155 // pred_check_branch
          %4113 = sbr.rel (%p4111) target = $region160
        $region159: #{tpu_custom_call.1} parent=155 // pred_region
          %s4114 = sand.u32 %s831, 1
          %s4115 = scalar_lea.sflag [#allocation4], %s4114
          %s4116 = sand.u32 %s831, 1
          %s4117 = scalar_lea.vmem [#allocation3], %s4116
          %4118 = dma.done %s4115, 16
        $region160: #{tpu_custom_call.1} parent=155 // pred_fallthru
          _
      $region156: #{tpu_custom_call.1} parent=5 // pred_fallthru
        _
    $region6: #{tpu_custom_call.1} parent=1 // loop_footer
      %s74 = sadd.s32 1, %s70
    $region7: #{tpu_custom_call.1} parent=1 // loop_footer_branch
      %69 = sbr.rel target = $region3
    $region8: #{tpu_custom_call.1} parent=1 // loop_exit
      _
    %4119 = vsyncpa [#allocation4], 1
    %s4120 = scalar_lea.sflag [#allocation4], 1
    %4121 = vsyncpa %s4120, 1

</llo_original>
